<compile_context>
chip_gen: v7x
topology: tpu7x:2x2x1
jax: 0.10.0
libtpu: 0.0.40
codegen_flags: <defaults>
</compile_context>

<pallas_src>
import functools
import math

import jax
import jax.numpy as jnp
from jax.experimental import pallas as pl
from jax.experimental.pallas import tpu as pltpu

_EPS = 1e-5          # nn.LayerNorm default eps
_BF16 = jnp.bfloat16
_NEG = -1e10         # masked_fill value


# ----------------------------- kernel helpers ------------------------------

def _layer_norm(s, g, b):
    """Row-wise LayerNorm in f32. s:[L,hid], g/b:[1,hid]."""
    mu = jnp.mean(s, axis=-1, keepdims=True)
    var = jnp.mean((s - mu) ** 2, axis=-1, keepdims=True)
    return (s - mu) * jax.lax.rsqrt(var + _EPS) * g + b


def _mha(x_q, x_kv, mask, wq, wk, wv, wo_h, bq, bk, bv, bo, *, n_heads,
         inv_scale):
    """Fused multi-head attention.

    x_q : [Lq, hid] f32 (query side, also the residual outside)
    x_kv: [Lk, hid] f32
    mask: [Lq, Lk]  f32 (0 = masked, nonzero = keep)
    wq/wk/wv: [hid, hid] bf16; wo_h: [H, dh, hid] bf16 (pre-reshaped per head)
    bq/bk/bv/bo: [1, hid] f32
    Returns (out [Lq, hid] f32, attn [H, Lq, Lk] f32).
    """
    hid = x_q.shape[-1]
    dh = hid // n_heads

    # Projections: bf16 MXU operands, f32 accumulation, f32 bias add.
    xq_b = x_q.astype(_BF16)
    xkv_b = x_kv.astype(_BF16)
    q = jnp.dot(xq_b, wq, preferred_element_type=jnp.float32) + bq
    k = jnp.dot(xkv_b, wk, preferred_element_type=jnp.float32) + bk
    v = jnp.dot(xkv_b, wv, preferred_element_type=jnp.float32) + bv

    # Single bf16 cast each (1/sqrt(dh) folded into Q).
    q_b = (q * inv_scale).astype(_BF16)
    k_b = k.astype(_BF16)
    v_b = v.astype(_BF16)

    # Per-head energies (static unrolled loop, static dh-lane slices).
    e_parts = []
    for h in range(n_heads):
        sl = slice(h * dh, (h + 1) * dh)
        e_parts.append(jax.lax.dot_general(
            q_b[:, sl], k_b[:, sl], (((1,), (1,)), ((), ())),
            preferred_element_type=jnp.float32))            # [Lq, Lk] f32

    # Head-batched masked softmax in f32 (exact masked_fill + exact divide).
    e_all = jnp.stack(e_parts, axis=0)                        # [H, Lq, Lk]
    e_all = jnp.where(mask[None, :, :] == 0.0, _NEG, e_all)
    mx = jnp.max(e_all, axis=-1, keepdims=True)
    p = jnp.exp(e_all - mx)
    attn = p / jnp.sum(p, axis=-1, keepdims=True)             # [H, Lq, Lk] f32
    attn_b = attn.astype(_BF16)                               # one cast total

    # ctx_h @ Wo_h accumulation (concat(ctx) @ Wo == sum_h ctx_h @ Wo_h).
    out = bo                                                  # [1, hid] f32
    for h in range(n_heads):
        sl = slice(h * dh, (h + 1) * dh)
        ctx_h = jnp.dot(attn_b[h], v_b[:, sl],
                        preferred_element_type=jnp.float32)   # [Lq, dh]
        out = out + jnp.dot(ctx_h.astype(_BF16), wo_h[h],
                            preferred_element_type=jnp.float32)  # [Lq, hid]
    return out, attn


# ----------------------------- fused kernel --------------------------------

def decoder_layer_kernel(
        trg_ref, enc_ref, tmask_ref, smask_ref,
        # self-attention weights
        sa_wq_ref, sa_wk_ref, sa_wv_ref, sa_wo_ref,
        sa_bq_ref, sa_bk_ref, sa_bv_ref, sa_bo_ref,
        ln1_g_ref, ln1_b_ref,
        # encoder (cross) attention weights
        ea_wq_ref, ea_wk_ref, ea_wv_ref, ea_wo_ref,
        ea_bq_ref, ea_bk_ref, ea_bv_ref, ea_bo_ref,
        ln2_g_ref, ln2_b_ref,
        # FFN weights
        w1_ref, b1_ref, w2_ref, b2_ref, ln3_g_ref, ln3_b_ref,
        # outputs
        out_ref, attn_ref,
        *, n_heads, inv_scale):
    trg = trg_ref[0]            # [Lt, hid] f32
    enc = enc_ref[0]            # [Ls, hid] f32
    tmask = tmask_ref[0]        # [Lt, Lt]  f32
    smask = smask_ref[0]        # [Lt, Ls]  f32

    # --- masked self-attention + residual + LayerNorm (dropout = identity) ---
    sa_out, _ = _mha(trg, trg, tmask,
                     sa_wq_ref[...], sa_wk_ref[...], sa_wv_ref[...],
                     sa_wo_ref[...],
                     sa_bq_ref[...], sa_bk_ref[...], sa_bv_ref[...],
                     sa_bo_ref[...],
                     n_heads=n_heads, inv_scale=inv_scale)
    x1 = _layer_norm(trg + sa_out, ln1_g_ref[...], ln1_b_ref[...])

    # --- encoder cross-attention + residual + LayerNorm ---
    ea_out, attn = _mha(x1, enc, smask,
                        ea_wq_ref[...], ea_wk_ref[...], ea_wv_ref[...],
                        ea_wo_ref[...],
                        ea_bq_ref[...], ea_bk_ref[...], ea_bv_ref[...],
                        ea_bo_ref[...],
                        n_heads=n_heads, inv_scale=inv_scale)
    x2 = _layer_norm(x1 + ea_out, ln2_g_ref[...], ln2_b_ref[...])

    # --- position-wise FFN + residual + LayerNorm ---
    hdn = jnp.dot(x2.astype(_BF16), w1_ref[...],
                  preferred_element_type=jnp.float32) + b1_ref[...]
    hdn = jnp.maximum(hdn, 0.0)
    ffn = jnp.dot(hdn.astype(_BF16), w2_ref[...],
                  preferred_element_type=jnp.float32) + b2_ref[...]
    x3 = _layer_norm(x2 + ffn, ln3_g_ref[...], ln3_b_ref[...])

    out_ref[0] = x3             # single block store
    attn_ref[0] = attn          # single block store of all heads


# ----------------------------- wrapper --------------------------------------

def decoder_layer_forward(trg, enc_src, trg_mask, src_mask, params, *, n_heads):
    B, Lt, hid = trg.shape
    Ls = enc_src.shape[1]
    pf = params["W1"].shape[1]
    dh = hid // n_heads
    inv_scale = 1.0 / math.sqrt(dh)

    sa, ea = params["sa"], params["ea"]

    act_t = pl.BlockSpec((1, Lt, hid), lambda b: (b, 0, 0))
    act_s = pl.BlockSpec((1, Ls, hid), lambda b: (b, 0, 0))
    mask_t = pl.BlockSpec((1, Lt, Lt), lambda b: (b, 0, 0))
    mask_s = pl.BlockSpec((1, Lt, Ls), lambda b: (b, 0, 0))
    w_hh = pl.BlockSpec((hid, hid), lambda b: (0, 0))
    w_o = pl.BlockSpec((n_heads, dh, hid), lambda b: (0, 0, 0))
    vec_h = pl.BlockSpec((1, hid), lambda b: (0, 0))
    w_1 = pl.BlockSpec((hid, pf), lambda b: (0, 0))
    vec_p = pl.BlockSpec((1, pf), lambda b: (0, 0))
    w_2 = pl.BlockSpec((pf, hid), lambda b: (0, 0))

    in_specs = [
        act_t, act_s, mask_t, mask_s,
        w_hh, w_hh, w_hh, w_o,                 # sa Wq Wk Wv Wo
        vec_h, vec_h, vec_h, vec_h,            # sa bq bk bv bo
        vec_h, vec_h,                          # ln1 gamma / beta
        w_hh, w_hh, w_hh, w_o,                 # ea Wq Wk Wv Wo
        vec_h, vec_h, vec_h, vec_h,            # ea bq bk bv bo
        vec_h, vec_h,                          # ln2 gamma / beta
        w_1, vec_p, w_2, vec_h,                # FFN W1 b1 W2 b2
        vec_h, vec_h,                          # ln3 gamma / beta
    ]
    out_specs = [
        pl.BlockSpec((1, Lt, hid), lambda b: (b, 0, 0)),
        pl.BlockSpec((1, n_heads, Lt, Ls), lambda b: (b, 0, 0, 0)),
    ]
    out_shape = [
        jax.ShapeDtypeStruct((B, Lt, hid), jnp.float32),
        jax.ShapeDtypeStruct((B, n_heads, Lt, Ls), jnp.float32),
    ]

    kernel = functools.partial(decoder_layer_kernel,
                               n_heads=n_heads, inv_scale=inv_scale)

    out, attention = pl.pallas_call(
        kernel,
        grid=(B,),
        in_specs=in_specs,
        out_specs=out_specs,
        out_shape=out_shape,
        compiler_params=pltpu.CompilerParams(
            dimension_semantics=("parallel",),
            vmem_limit_bytes=32 * 1024 * 1024),
    )(trg, enc_src, trg_mask, src_mask,
      sa["Wq"], sa["Wk"], sa["Wv"], sa["Wo"],
      sa["bq"], sa["bk"], sa["bv"], sa["bo"],
      params["ln1_g"], params["ln1_b"],
      ea["Wq"], ea["Wk"], ea["Wv"], ea["Wo"],
      ea["bq"], ea["bk"], ea["bv"], ea["bo"],
      params["ln2_g"], params["ln2_b"],
      params["W1"], params["b1"], params["W2"], params["b2"],
      params["ln3_g"], params["ln3_b"])
    return out, attention


# ----------------------------- parameter init ------------------------------

def init_params(key, hid_dim, pf_dim, n_heads):
    """MXU weights stored in bf16 once; biases / LayerNorm params stay f32.
    The out-projection weight is stored as [H, dh, hid] so the kernel indexes
    heads along the major dim (no unaligned bf16 sublane slicing)."""
    dh = hid_dim // n_heads
    keys = iter(jax.random.split(key, 16))

    def dense(din, dout):
        w = 0.02 * jax.random.normal(next(keys), (din, dout), jnp.float32)
        b = jnp.zeros((1, dout), jnp.float32)
        return w, b

    def mha():
        Wq, bq = dense(hid_dim, hid_dim)
        Wk, bk = dense(hid_dim, hid_dim)
        Wv, bv = dense(hid_dim, hid_dim)
        Wo, bo = dense(hid_dim, hid_dim)
        return dict(
            Wq=Wq.astype(_BF16), bq=bq,
            Wk=Wk.astype(_BF16), bk=bk,
            Wv=Wv.astype(_BF16), bv=bv,
            Wo=Wo.astype(_BF16).reshape(n_heads, dh, hid_dim), bo=bo)

    W1, b1 = dense(hid_dim, pf_dim)
    W2, b2 = dense(pf_dim, hid_dim)
    ones = jnp.ones((1, hid_dim), jnp.float32)
    zeros = jnp.zeros((1, hid_dim), jnp.float32)
    return dict(sa=mha(), ea=mha(),
                W1=W1.astype(_BF16), b1=b1,
                W2=W2.astype(_BF16), b2=b2,
                ln1_g=ones, ln1_b=zeros,
                ln2_g=ones, ln2_b=zeros,
                ln3_g=ones, ln3_b=zeros)


# ----------------------------- main ----------------------------------------

if __name__ == "__main__":
    # Small shapes consistent with the module.
    B, trg_len, src_len = 2, 8, 10
    hid_dim, n_heads, pf_dim = 32, 4, 64

    key = jax.random.PRNGKey(0)
    k_trg, k_enc, k_par = jax.random.split(key, 3)

    trg = jax.random.normal(k_trg, (B, trg_len, hid_dim), jnp.float32)
    enc_src = jax.random.normal(k_enc, (B, src_len, hid_dim), jnp.float32)

    # trg_mask: causal lower-triangular; src_mask: all keep.
    trg_mask = jnp.tril(jnp.ones((trg_len, trg_len), jnp.float32))[None]
    trg_mask = jnp.broadcast_to(trg_mask, (B, trg_len, trg_len))
    src_mask = jnp.ones((B, trg_len, src_len), jnp.float32)

    params = init_params(k_par, hid_dim, pf_dim, n_heads)

    fwd = jax.jit(functools.partial(decoder_layer_forward, n_heads=n_heads))
    output, attention = fwd(trg, enc_src, trg_mask, src_mask, params)
    output = jax.block_until_ready(output)
    attention = jax.block_until_ready(attention)

    assert output.shape == (B, trg_len, hid_dim)
    assert attention.shape == (B, n_heads, trg_len, src_len)
    assert bool(jnp.all(jnp.isfinite(output)))
    assert bool(jnp.all(jnp.isfinite(attention)))
    # exact softmax divide -> rows sum to 1 to f32 tolerance
    assert bool(jnp.allclose(jnp.sum(attention, axis=-1), 1.0, atol=1e-4))

    print("KERNEL_OK")
</pallas_src>

<mosaic_0001>
module attributes {stable_mosaic.version = 11 : i64} {
  func.func @decoder_layer_kernel(%arg0: i32, %arg1: memref<1x8x32xf32, #tpu.memory_space<vmem>>, %arg2: memref<1x10x32xf32, #tpu.memory_space<vmem>>, %arg3: memref<1x8x8xf32, #tpu.memory_space<vmem>>, %arg4: memref<1x8x10xf32, #tpu.memory_space<vmem>>, %arg5: memref<32x32xbf16, #tpu.memory_space<vmem>>, %arg6: memref<32x32xbf16, #tpu.memory_space<vmem>>, %arg7: memref<32x32xbf16, #tpu.memory_space<vmem>>, %arg8: memref<4x8x32xbf16, #tpu.memory_space<vmem>>, %arg9: memref<1x32xf32, #tpu.memory_space<vmem>>, %arg10: memref<1x32xf32, #tpu.memory_space<vmem>>, %arg11: memref<1x32xf32, #tpu.memory_space<vmem>>, %arg12: memref<1x32xf32, #tpu.memory_space<vmem>>, %arg13: memref<1x32xf32, #tpu.memory_space<vmem>>, %arg14: memref<1x32xf32, #tpu.memory_space<vmem>>, %arg15: memref<32x32xbf16, #tpu.memory_space<vmem>>, %arg16: memref<32x32xbf16, #tpu.memory_space<vmem>>, %arg17: memref<32x32xbf16, #tpu.memory_space<vmem>>, %arg18: memref<4x8x32xbf16, #tpu.memory_space<vmem>>, %arg19: memref<1x32xf32, #tpu.memory_space<vmem>>, %arg20: memref<1x32xf32, #tpu.memory_space<vmem>>, %arg21: memref<1x32xf32, #tpu.memory_space<vmem>>, %arg22: memref<1x32xf32, #tpu.memory_space<vmem>>, %arg23: memref<1x32xf32, #tpu.memory_space<vmem>>, %arg24: memref<1x32xf32, #tpu.memory_space<vmem>>, %arg25: memref<32x64xbf16, #tpu.memory_space<vmem>>, %arg26: memref<1x64xf32, #tpu.memory_space<vmem>>, %arg27: memref<64x32xbf16, #tpu.memory_space<vmem>>, %arg28: memref<1x32xf32, #tpu.memory_space<vmem>>, %arg29: memref<1x32xf32, #tpu.memory_space<vmem>>, %arg30: memref<1x32xf32, #tpu.memory_space<vmem>>, %arg31: memref<1x8x32xf32, #tpu.memory_space<vmem>>, %arg32: memref<1x4x8x10xf32, #tpu.memory_space<vmem>>) attributes {dimension_semantics = [#tpu.dimension_semantics<parallel>], iteration_bounds = array<i64: 2>, scalar_prefetch = 0 : i64, scratch_operands = 0 : i64, tpu.core_type = #tpu.core_type<tc>, window_params = [{transform_indices = @transform_0, window_bounds = array<i64: 1, 8, 32>}, {transform_indices = @transform_1, window_bounds = array<i64: 1, 10, 32>}, {transform_indices = @transform_2, window_bounds = array<i64: 1, 8, 8>}, {transform_indices = @transform_3, window_bounds = array<i64: 1, 8, 10>}, {pipeline_mode = #tpu.pipeline_mode<synchronous>, transform_indices = @transform_4, window_bounds = array<i64: 32, 32>}, {pipeline_mode = #tpu.pipeline_mode<synchronous>, transform_indices = @transform_5, window_bounds = array<i64: 32, 32>}, {pipeline_mode = #tpu.pipeline_mode<synchronous>, transform_indices = @transform_6, window_bounds = array<i64: 32, 32>}, {pipeline_mode = #tpu.pipeline_mode<synchronous>, transform_indices = @transform_7, window_bounds = array<i64: 4, 8, 32>}, {pipeline_mode = #tpu.pipeline_mode<synchronous>, transform_indices = @transform_8, window_bounds = array<i64: 1, 32>}, {pipeline_mode = #tpu.pipeline_mode<synchronous>, transform_indices = @transform_9, window_bounds = array<i64: 1, 32>}, {pipeline_mode = #tpu.pipeline_mode<synchronous>, transform_indices = @transform_10, window_bounds = array<i64: 1, 32>}, {pipeline_mode = #tpu.pipeline_mode<synchronous>, transform_indices = @transform_11, window_bounds = array<i64: 1, 32>}, {pipeline_mode = #tpu.pipeline_mode<synchronous>, transform_indices = @transform_12, window_bounds = array<i64: 1, 32>}, {pipeline_mode = #tpu.pipeline_mode<synchronous>, transform_indices = @transform_13, window_bounds = array<i64: 1, 32>}, {pipeline_mode = #tpu.pipeline_mode<synchronous>, transform_indices = @transform_14, window_bounds = array<i64: 32, 32>}, {pipeline_mode = #tpu.pipeline_mode<synchronous>, transform_indices = @transform_15, window_bounds = array<i64: 32, 32>}, {pipeline_mode = #tpu.pipeline_mode<synchronous>, transform_indices = @transform_16, window_bounds = array<i64: 32, 32>}, {pipeline_mode = #tpu.pipeline_mode<synchronous>, transform_indices = @transform_17, window_bounds = array<i64: 4, 8, 32>}, {pipeline_mode = #tpu.pipeline_mode<synchronous>, transform_indices = @transform_18, window_bounds = array<i64: 1, 32>}, {pipeline_mode = #tpu.pipeline_mode<synchronous>, transform_indices = @transform_19, window_bounds = array<i64: 1, 32>}, {pipeline_mode = #tpu.pipeline_mode<synchronous>, transform_indices = @transform_20, window_bounds = array<i64: 1, 32>}, {pipeline_mode = #tpu.pipeline_mode<synchronous>, transform_indices = @transform_21, window_bounds = array<i64: 1, 32>}, {pipeline_mode = #tpu.pipeline_mode<synchronous>, transform_indices = @transform_22, window_bounds = array<i64: 1, 32>}, {pipeline_mode = #tpu.pipeline_mode<synchronous>, transform_indices = @transform_23, window_bounds = array<i64: 1, 32>}, {pipeline_mode = #tpu.pipeline_mode<synchronous>, transform_indices = @transform_24, window_bounds = array<i64: 32, 64>}, {pipeline_mode = #tpu.pipeline_mode<synchronous>, transform_indices = @transform_25, window_bounds = array<i64: 1, 64>}, {pipeline_mode = #tpu.pipeline_mode<synchronous>, transform_indices = @transform_26, window_bounds = array<i64: 64, 32>}, {pipeline_mode = #tpu.pipeline_mode<synchronous>, transform_indices = @transform_27, window_bounds = array<i64: 1, 32>}, {pipeline_mode = #tpu.pipeline_mode<synchronous>, transform_indices = @transform_28, window_bounds = array<i64: 1, 32>}, {pipeline_mode = #tpu.pipeline_mode<synchronous>, transform_indices = @transform_29, window_bounds = array<i64: 1, 32>}, {transform_indices = @transform_30, window_bounds = array<i64: 1, 8, 32>}, {transform_indices = @transform_31, window_bounds = array<i64: 1, 4, 8, 10>}]} {
    %c0 = arith.constant 0 : index
    %c0_0 = arith.constant 0 : index
    %c0_1 = arith.constant 0 : index
    %0 = vector.load %arg1[%c0, %c0_0, %c0_1] : memref<1x8x32xf32, #tpu.memory_space<vmem>>, vector<1x8x32xf32>
    %1 = vector.shape_cast %0 : vector<1x8x32xf32> to vector<8x32xf32>
    %c0_2 = arith.constant 0 : index
    %c0_3 = arith.constant 0 : index
    %c0_4 = arith.constant 0 : index
    %2 = vector.load %arg2[%c0_2, %c0_3, %c0_4] : memref<1x10x32xf32, #tpu.memory_space<vmem>>, vector<1x10x32xf32>
    %3 = vector.shape_cast %2 : vector<1x10x32xf32> to vector<10x32xf32>
    %c0_5 = arith.constant 0 : index
    %c0_6 = arith.constant 0 : index
    %c0_7 = arith.constant 0 : index
    %4 = vector.load %arg3[%c0_5, %c0_6, %c0_7] : memref<1x8x8xf32, #tpu.memory_space<vmem>>, vector<1x8x8xf32>
    %5 = vector.shape_cast %4 : vector<1x8x8xf32> to vector<8x8xf32>
    %c0_8 = arith.constant 0 : index
    %c0_9 = arith.constant 0 : index
    %c0_10 = arith.constant 0 : index
    %6 = vector.load %arg4[%c0_8, %c0_9, %c0_10] : memref<1x8x10xf32, #tpu.memory_space<vmem>>, vector<1x8x10xf32>
    %7 = vector.shape_cast %6 : vector<1x8x10xf32> to vector<8x10xf32>
    %c0_11 = arith.constant 0 : index
    %c0_12 = arith.constant 0 : index
    %8 = vector.load %arg5[%c0_11, %c0_12] : memref<32x32xbf16, #tpu.memory_space<vmem>>, vector<32x32xbf16>
    %c0_13 = arith.constant 0 : index
    %c0_14 = arith.constant 0 : index
    %9 = vector.load %arg6[%c0_13, %c0_14] : memref<32x32xbf16, #tpu.memory_space<vmem>>, vector<32x32xbf16>
    %c0_15 = arith.constant 0 : index
    %c0_16 = arith.constant 0 : index
    %10 = vector.load %arg7[%c0_15, %c0_16] : memref<32x32xbf16, #tpu.memory_space<vmem>>, vector<32x32xbf16>
    %c0_17 = arith.constant 0 : index
    %c0_18 = arith.constant 0 : index
    %c0_19 = arith.constant 0 : index
    %11 = vector.load %arg8[%c0_17, %c0_18, %c0_19] : memref<4x8x32xbf16, #tpu.memory_space<vmem>>, vector<4x8x32xbf16>
    %c0_20 = arith.constant 0 : index
    %c0_21 = arith.constant 0 : index
    %12 = vector.load %arg9[%c0_20, %c0_21] : memref<1x32xf32, #tpu.memory_space<vmem>>, vector<1x32xf32>
    %c0_22 = arith.constant 0 : index
    %c0_23 = arith.constant 0 : index
    %13 = vector.load %arg10[%c0_22, %c0_23] : memref<1x32xf32, #tpu.memory_space<vmem>>, vector<1x32xf32>
    %c0_24 = arith.constant 0 : index
    %c0_25 = arith.constant 0 : index
    %14 = vector.load %arg11[%c0_24, %c0_25] : memref<1x32xf32, #tpu.memory_space<vmem>>, vector<1x32xf32>
    %c0_26 = arith.constant 0 : index
    %c0_27 = arith.constant 0 : index
    %15 = vector.load %arg12[%c0_26, %c0_27] : memref<1x32xf32, #tpu.memory_space<vmem>>, vector<1x32xf32>
    %16 = arith.truncf %1 : vector<8x32xf32> to vector<8x32xbf16>
    %17 = arith.truncf %1 : vector<8x32xf32> to vector<8x32xbf16>
    %cst = arith.constant dense<0.000000e+00> : vector<8x32xf32>
    %18 = tpu.matmul %16, %8, %cst {dimension_numbers = #tpu.dot_dimension_numbers<[1], [0], [0], [1], [0, 0, 1, 1], [], []>} : vector<8x32xbf16>, vector<32x32xbf16>, vector<8x32xf32> -> vector<8x32xf32>
    %19 = vector.broadcast %12 : vector<1x32xf32> to vector<8x32xf32>
    %20 = arith.addf %18, %19 : vector<8x32xf32>
    %cst_28 = arith.constant dense<0.000000e+00> : vector<8x32xf32>
    %21 = tpu.matmul %17, %9, %cst_28 {dimension_numbers = #tpu.dot_dimension_numbers<[1], [0], [0], [1], [0, 0, 1, 1], [], []>} : vector<8x32xbf16>, vector<32x32xbf16>, vector<8x32xf32> -> vector<8x32xf32>
    %22 = vector.broadcast %13 : vector<1x32xf32> to vector<8x32xf32>
    %23 = arith.addf %21, %22 : vector<8x32xf32>
    %cst_29 = arith.constant dense<0.000000e+00> : vector<8x32xf32>
    %24 = tpu.matmul %17, %10, %cst_29 {dimension_numbers = #tpu.dot_dimension_numbers<[1], [0], [0], [1], [0, 0, 1, 1], [], []>} : vector<8x32xbf16>, vector<32x32xbf16>, vector<8x32xf32> -> vector<8x32xf32>
    %25 = vector.broadcast %14 : vector<1x32xf32> to vector<8x32xf32>
    %26 = arith.addf %24, %25 : vector<8x32xf32>
    %cst_30 = arith.constant 0.353553385 : f32
    %27 = vector.broadcast %cst_30 : f32 to vector<8x32xf32>
    %28 = arith.mulf %20, %27 : vector<8x32xf32>
    %29 = arith.truncf %28 : vector<8x32xf32> to vector<8x32xbf16>
    %30 = arith.truncf %23 : vector<8x32xf32> to vector<8x32xbf16>
    %31 = arith.truncf %26 : vector<8x32xf32> to vector<8x32xbf16>
    %32 = vector.extract_strided_slice %29 {offsets = [0, 0], sizes = [8, 8], strides = [1, 1]} : vector<8x32xbf16> to vector<8x8xbf16>
    %33 = vector.extract_strided_slice %30 {offsets = [0, 0], sizes = [8, 8], strides = [1, 1]} : vector<8x32xbf16> to vector<8x8xbf16>
    %cst_31 = arith.constant dense<0.000000e+00> : vector<8x8xf32>
    %34 = tpu.matmul %32, %33, %cst_31 {dimension_numbers = #tpu.dot_dimension_numbers<[1], [1], [0], [0], [0, 0, 1, 0], [], []>} : vector<8x8xbf16>, vector<8x8xbf16>, vector<8x8xf32> -> vector<8x8xf32>
    %35 = vector.extract_strided_slice %29 {offsets = [0, 8], sizes = [8, 8], strides = [1, 1]} : vector<8x32xbf16> to vector<8x8xbf16>
    %36 = vector.extract_strided_slice %30 {offsets = [0, 8], sizes = [8, 8], strides = [1, 1]} : vector<8x32xbf16> to vector<8x8xbf16>
    %cst_32 = arith.constant dense<0.000000e+00> : vector<8x8xf32>
    %37 = tpu.matmul %35, %36, %cst_32 {dimension_numbers = #tpu.dot_dimension_numbers<[1], [1], [0], [0], [0, 0, 1, 0], [], []>} : vector<8x8xbf16>, vector<8x8xbf16>, vector<8x8xf32> -> vector<8x8xf32>
    %38 = vector.extract_strided_slice %29 {offsets = [0, 16], sizes = [8, 8], strides = [1, 1]} : vector<8x32xbf16> to vector<8x8xbf16>
    %39 = vector.extract_strided_slice %30 {offsets = [0, 16], sizes = [8, 8], strides = [1, 1]} : vector<8x32xbf16> to vector<8x8xbf16>
    %cst_33 = arith.constant dense<0.000000e+00> : vector<8x8xf32>
    %40 = tpu.matmul %38, %39, %cst_33 {dimension_numbers = #tpu.dot_dimension_numbers<[1], [1], [0], [0], [0, 0, 1, 0], [], []>} : vector<8x8xbf16>, vector<8x8xbf16>, vector<8x8xf32> -> vector<8x8xf32>
    %41 = vector.extract_strided_slice %29 {offsets = [0, 24], sizes = [8, 8], strides = [1, 1]} : vector<8x32xbf16> to vector<8x8xbf16>
    %42 = vector.extract_strided_slice %30 {offsets = [0, 24], sizes = [8, 8], strides = [1, 1]} : vector<8x32xbf16> to vector<8x8xbf16>
    %cst_34 = arith.constant dense<0.000000e+00> : vector<8x8xf32>
    %43 = tpu.matmul %41, %42, %cst_34 {dimension_numbers = #tpu.dot_dimension_numbers<[1], [1], [0], [0], [0, 0, 1, 0], [], []>} : vector<8x8xbf16>, vector<8x8xbf16>, vector<8x8xf32> -> vector<8x8xf32>
    %44 = vector.shape_cast %34 : vector<8x8xf32> to vector<1x8x8xf32>
    %45 = vector.shape_cast %37 : vector<8x8xf32> to vector<1x8x8xf32>
    %46 = vector.shape_cast %40 : vector<8x8xf32> to vector<1x8x8xf32>
    %47 = vector.shape_cast %43 : vector<8x8xf32> to vector<1x8x8xf32>
    %48 = tpu.concatenate %44, %45, %46, %47 in 0 : vector<1x8x8xf32>, vector<1x8x8xf32>, vector<1x8x8xf32>, vector<1x8x8xf32> -> vector<4x8x8xf32>
    %49 = vector.shape_cast %5 : vector<8x8xf32> to vector<1x8x8xf32>
    %cst_35 = arith.constant 0.000000e+00 : f32
    %50 = vector.broadcast %cst_35 : f32 to vector<1x8x8xf32>
    %51 = arith.cmpf oeq, %49, %50 : vector<1x8x8xf32>
    %cst_36 = arith.constant -1.000000e+10 : f32
    %52 = vector.shape_cast %51 : vector<1x8x8xi1> to vector<1x8x8xi1>
    %53 = vector.broadcast %52 : vector<1x8x8xi1> to vector<4x8x8xi1>
    %54 = vector.broadcast %cst_36 : f32 to vector<4x8x8xf32>
    %55 = arith.select %53, %54, %48 : vector<4x8x8xi1>, vector<4x8x8xf32>
    %cst_37 = arith.constant dense<0xFF800000> : vector<4x8xf32>
    %56 = vector.multi_reduction <maximumf>, %55, %cst_37 [2] : vector<4x8x8xf32> to vector<4x8xf32>
    %57 = vector.shape_cast %56 : vector<4x8xf32> to vector<4x8x1xf32>
    %58 = vector.broadcast %57 : vector<4x8x1xf32> to vector<4x8x8xf32>
    %59 = arith.subf %55, %58 : vector<4x8x8xf32>
    %60 = math.exp %59 : vector<4x8x8xf32>
    %cst_38 = arith.constant dense<0.000000e+00> : vector<4x8xf32>
    %61 = vector.multi_reduction <add>, %60, %cst_38 [2] : vector<4x8x8xf32> to vector<4x8xf32>
    %62 = vector.shape_cast %61 : vector<4x8xf32> to vector<4x8x1xf32>
    %63 = vector.broadcast %62 : vector<4x8x1xf32> to vector<4x8x8xf32>
    %64 = arith.divf %60, %63 : vector<4x8x8xf32>
    %65 = arith.truncf %64 : vector<4x8x8xf32> to vector<4x8x8xbf16>
    %66 = vector.extract_strided_slice %65 {offsets = [0, 0, 0], sizes = [1, 8, 8], strides = [1, 1, 1]} : vector<4x8x8xbf16> to vector<1x8x8xbf16>
    %67 = vector.shape_cast %66 : vector<1x8x8xbf16> to vector<8x8xbf16>
    %68 = vector.extract_strided_slice %31 {offsets = [0, 0], sizes = [8, 8], strides = [1, 1]} : vector<8x32xbf16> to vector<8x8xbf16>
    %cst_39 = arith.constant dense<0.000000e+00> : vector<8x8xf32>
    %69 = tpu.matmul %67, %68, %cst_39 {dimension_numbers = #tpu.dot_dimension_numbers<[1], [0], [0], [1], [0, 0, 1, 1], [], []>} : vector<8x8xbf16>, vector<8x8xbf16>, vector<8x8xf32> -> vector<8x8xf32>
    %70 = arith.truncf %69 : vector<8x8xf32> to vector<8x8xbf16>
    %71 = vector.extract_strided_slice %11 {offsets = [0, 0, 0], sizes = [1, 8, 32], strides = [1, 1, 1]} : vector<4x8x32xbf16> to vector<1x8x32xbf16>
    %72 = vector.shape_cast %71 : vector<1x8x32xbf16> to vector<8x32xbf16>
    %cst_40 = arith.constant dense<0.000000e+00> : vector<8x32xf32>
    %73 = tpu.matmul %70, %72, %cst_40 {dimension_numbers = #tpu.dot_dimension_numbers<[1], [0], [0], [1], [0, 0, 1, 1], [], []>} : vector<8x8xbf16>, vector<8x32xbf16>, vector<8x32xf32> -> vector<8x32xf32>
    %74 = vector.broadcast %15 : vector<1x32xf32> to vector<8x32xf32>
    %75 = arith.addf %74, %73 : vector<8x32xf32>
    %76 = vector.extract_strided_slice %65 {offsets = [1, 0, 0], sizes = [1, 8, 8], strides = [1, 1, 1]} : vector<4x8x8xbf16> to vector<1x8x8xbf16>
    %77 = vector.shape_cast %76 : vector<1x8x8xbf16> to vector<8x8xbf16>
    %78 = vector.extract_strided_slice %31 {offsets = [0, 8], sizes = [8, 8], strides = [1, 1]} : vector<8x32xbf16> to vector<8x8xbf16>
    %cst_41 = arith.constant dense<0.000000e+00> : vector<8x8xf32>
    %79 = tpu.matmul %77, %78, %cst_41 {dimension_numbers = #tpu.dot_dimension_numbers<[1], [0], [0], [1], [0, 0, 1, 1], [], []>} : vector<8x8xbf16>, vector<8x8xbf16>, vector<8x8xf32> -> vector<8x8xf32>
    %80 = arith.truncf %79 : vector<8x8xf32> to vector<8x8xbf16>
    %81 = vector.extract_strided_slice %11 {offsets = [1, 0, 0], sizes = [1, 8, 32], strides = [1, 1, 1]} : vector<4x8x32xbf16> to vector<1x8x32xbf16>
    %82 = vector.shape_cast %81 : vector<1x8x32xbf16> to vector<8x32xbf16>
    %cst_42 = arith.constant dense<0.000000e+00> : vector<8x32xf32>
    %83 = tpu.matmul %80, %82, %cst_42 {dimension_numbers = #tpu.dot_dimension_numbers<[1], [0], [0], [1], [0, 0, 1, 1], [], []>} : vector<8x8xbf16>, vector<8x32xbf16>, vector<8x32xf32> -> vector<8x32xf32>
    %84 = arith.addf %75, %83 : vector<8x32xf32>
    %85 = vector.extract_strided_slice %65 {offsets = [2, 0, 0], sizes = [1, 8, 8], strides = [1, 1, 1]} : vector<4x8x8xbf16> to vector<1x8x8xbf16>
    %86 = vector.shape_cast %85 : vector<1x8x8xbf16> to vector<8x8xbf16>
    %87 = vector.extract_strided_slice %31 {offsets = [0, 16], sizes = [8, 8], strides = [1, 1]} : vector<8x32xbf16> to vector<8x8xbf16>
    %cst_43 = arith.constant dense<0.000000e+00> : vector<8x8xf32>
    %88 = tpu.matmul %86, %87, %cst_43 {dimension_numbers = #tpu.dot_dimension_numbers<[1], [0], [0], [1], [0, 0, 1, 1], [], []>} : vector<8x8xbf16>, vector<8x8xbf16>, vector<8x8xf32> -> vector<8x8xf32>
    %89 = arith.truncf %88 : vector<8x8xf32> to vector<8x8xbf16>
    %90 = vector.extract_strided_slice %11 {offsets = [2, 0, 0], sizes = [1, 8, 32], strides = [1, 1, 1]} : vector<4x8x32xbf16> to vector<1x8x32xbf16>
    %91 = vector.shape_cast %90 : vector<1x8x32xbf16> to vector<8x32xbf16>
    %cst_44 = arith.constant dense<0.000000e+00> : vector<8x32xf32>
    %92 = tpu.matmul %89, %91, %cst_44 {dimension_numbers = #tpu.dot_dimension_numbers<[1], [0], [0], [1], [0, 0, 1, 1], [], []>} : vector<8x8xbf16>, vector<8x32xbf16>, vector<8x32xf32> -> vector<8x32xf32>
    %93 = arith.addf %84, %92 : vector<8x32xf32>
    %94 = vector.extract_strided_slice %65 {offsets = [3, 0, 0], sizes = [1, 8, 8], strides = [1, 1, 1]} : vector<4x8x8xbf16> to vector<1x8x8xbf16>
    %95 = vector.shape_cast %94 : vector<1x8x8xbf16> to vector<8x8xbf16>
    %96 = vector.extract_strided_slice %31 {offsets = [0, 24], sizes = [8, 8], strides = [1, 1]} : vector<8x32xbf16> to vector<8x8xbf16>
    %cst_45 = arith.constant dense<0.000000e+00> : vector<8x8xf32>
    %97 = tpu.matmul %95, %96, %cst_45 {dimension_numbers = #tpu.dot_dimension_numbers<[1], [0], [0], [1], [0, 0, 1, 1], [], []>} : vector<8x8xbf16>, vector<8x8xbf16>, vector<8x8xf32> -> vector<8x8xf32>
    %98 = arith.truncf %97 : vector<8x8xf32> to vector<8x8xbf16>
    %99 = vector.extract_strided_slice %11 {offsets = [3, 0, 0], sizes = [1, 8, 32], strides = [1, 1, 1]} : vector<4x8x32xbf16> to vector<1x8x32xbf16>
    %100 = vector.shape_cast %99 : vector<1x8x32xbf16> to vector<8x32xbf16>
    %cst_46 = arith.constant dense<0.000000e+00> : vector<8x32xf32>
    %101 = tpu.matmul %98, %100, %cst_46 {dimension_numbers = #tpu.dot_dimension_numbers<[1], [0], [0], [1], [0, 0, 1, 1], [], []>} : vector<8x8xbf16>, vector<8x32xbf16>, vector<8x32xf32> -> vector<8x32xf32>
    %102 = arith.addf %93, %101 : vector<8x32xf32>
    %103 = arith.addf %1, %102 : vector<8x32xf32>
    %c0_47 = arith.constant 0 : index
    %c0_48 = arith.constant 0 : index
    %104 = vector.load %arg13[%c0_47, %c0_48] : memref<1x32xf32, #tpu.memory_space<vmem>>, vector<1x32xf32>
    %c0_49 = arith.constant 0 : index
    %c0_50 = arith.constant 0 : index
    %105 = vector.load %arg14[%c0_49, %c0_50] : memref<1x32xf32, #tpu.memory_space<vmem>>, vector<1x32xf32>
    %cst_51 = arith.constant dense<0.000000e+00> : vector<8xf32>
    %106 = vector.multi_reduction <add>, %103, %cst_51 [1] : vector<8x32xf32> to vector<8xf32>
    %107 = vector.shape_cast %106 : vector<8xf32> to vector<8x1xf32>
    %cst_52 = arith.constant 3.200000e+01 : f32
    %108 = vector.broadcast %cst_52 : f32 to vector<8x1xf32>
    %109 = arith.divf %107, %108 : vector<8x1xf32>
    %110 = vector.broadcast %109 : vector<8x1xf32> to vector<8x32xf32>
    %111 = arith.subf %103, %110 : vector<8x32xf32>
    %112 = arith.mulf %111, %111 : vector<8x32xf32>
    %cst_53 = arith.constant dense<0.000000e+00> : vector<8xf32>
    %113 = vector.multi_reduction <add>, %112, %cst_53 [1] : vector<8x32xf32> to vector<8xf32>
    %114 = vector.shape_cast %113 : vector<8xf32> to vector<8x1xf32>
    %cst_54 = arith.constant 3.200000e+01 : f32
    %115 = vector.broadcast %cst_54 : f32 to vector<8x1xf32>
    %116 = arith.divf %114, %115 : vector<8x1xf32>
    %117 = vector.broadcast %109 : vector<8x1xf32> to vector<8x32xf32>
    %118 = arith.subf %103, %117 : vector<8x32xf32>
    %cst_55 = arith.constant 9.99999974E-6 : f32
    %119 = vector.broadcast %cst_55 : f32 to vector<8x1xf32>
    %120 = arith.addf %116, %119 : vector<8x1xf32>
    %121 = math.rsqrt %120 : vector<8x1xf32>
    %122 = vector.broadcast %121 : vector<8x1xf32> to vector<8x32xf32>
    %123 = arith.mulf %118, %122 : vector<8x32xf32>
    %124 = vector.broadcast %104 : vector<1x32xf32> to vector<8x32xf32>
    %125 = arith.mulf %123, %124 : vector<8x32xf32>
    %126 = vector.broadcast %105 : vector<1x32xf32> to vector<8x32xf32>
    %127 = arith.addf %125, %126 : vector<8x32xf32>
    %c0_56 = arith.constant 0 : index
    %c0_57 = arith.constant 0 : index
    %128 = vector.load %arg15[%c0_56, %c0_57] : memref<32x32xbf16, #tpu.memory_space<vmem>>, vector<32x32xbf16>
    %c0_58 = arith.constant 0 : index
    %c0_59 = arith.constant 0 : index
    %129 = vector.load %arg16[%c0_58, %c0_59] : memref<32x32xbf16, #tpu.memory_space<vmem>>, vector<32x32xbf16>
    %c0_60 = arith.constant 0 : index
    %c0_61 = arith.constant 0 : index
    %130 = vector.load %arg17[%c0_60, %c0_61] : memref<32x32xbf16, #tpu.memory_space<vmem>>, vector<32x32xbf16>
    %c0_62 = arith.constant 0 : index
    %c0_63 = arith.constant 0 : index
    %c0_64 = arith.constant 0 : index
    %131 = vector.load %arg18[%c0_62, %c0_63, %c0_64] : memref<4x8x32xbf16, #tpu.memory_space<vmem>>, vector<4x8x32xbf16>
    %c0_65 = arith.constant 0 : index
    %c0_66 = arith.constant 0 : index
    %132 = vector.load %arg19[%c0_65, %c0_66] : memref<1x32xf32, #tpu.memory_space<vmem>>, vector<1x32xf32>
    %c0_67 = arith.constant 0 : index
    %c0_68 = arith.constant 0 : index
    %133 = vector.load %arg20[%c0_67, %c0_68] : memref<1x32xf32, #tpu.memory_space<vmem>>, vector<1x32xf32>
    %c0_69 = arith.constant 0 : index
    %c0_70 = arith.constant 0 : index
    %134 = vector.load %arg21[%c0_69, %c0_70] : memref<1x32xf32, #tpu.memory_space<vmem>>, vector<1x32xf32>
    %c0_71 = arith.constant 0 : index
    %c0_72 = arith.constant 0 : index
    %135 = vector.load %arg22[%c0_71, %c0_72] : memref<1x32xf32, #tpu.memory_space<vmem>>, vector<1x32xf32>
    %136 = arith.truncf %127 : vector<8x32xf32> to vector<8x32xbf16>
    %137 = arith.truncf %3 : vector<10x32xf32> to vector<10x32xbf16>
    %cst_73 = arith.constant dense<0.000000e+00> : vector<8x32xf32>
    %138 = tpu.matmul %136, %128, %cst_73 {dimension_numbers = #tpu.dot_dimension_numbers<[1], [0], [0], [1], [0, 0, 1, 1], [], []>} : vector<8x32xbf16>, vector<32x32xbf16>, vector<8x32xf32> -> vector<8x32xf32>
    %139 = vector.broadcast %132 : vector<1x32xf32> to vector<8x32xf32>
    %140 = arith.addf %138, %139 : vector<8x32xf32>
    %cst_74 = arith.constant dense<0.000000e+00> : vector<10x32xf32>
    %141 = tpu.matmul %137, %129, %cst_74 {dimension_numbers = #tpu.dot_dimension_numbers<[1], [0], [0], [1], [0, 0, 1, 1], [], []>} : vector<10x32xbf16>, vector<32x32xbf16>, vector<10x32xf32> -> vector<10x32xf32>
    %142 = vector.broadcast %133 : vector<1x32xf32> to vector<10x32xf32>
    %143 = arith.addf %141, %142 : vector<10x32xf32>
    %cst_75 = arith.constant dense<0.000000e+00> : vector<10x32xf32>
    %144 = tpu.matmul %137, %130, %cst_75 {dimension_numbers = #tpu.dot_dimension_numbers<[1], [0], [0], [1], [0, 0, 1, 1], [], []>} : vector<10x32xbf16>, vector<32x32xbf16>, vector<10x32xf32> -> vector<10x32xf32>
    %145 = vector.broadcast %134 : vector<1x32xf32> to vector<10x32xf32>
    %146 = arith.addf %144, %145 : vector<10x32xf32>
    %cst_76 = arith.constant 0.353553385 : f32
    %147 = vector.broadcast %cst_76 : f32 to vector<8x32xf32>
    %148 = arith.mulf %140, %147 : vector<8x32xf32>
    %149 = arith.truncf %148 : vector<8x32xf32> to vector<8x32xbf16>
    %150 = arith.truncf %143 : vector<10x32xf32> to vector<10x32xbf16>
    %151 = arith.truncf %146 : vector<10x32xf32> to vector<10x32xbf16>
    %152 = vector.extract_strided_slice %149 {offsets = [0, 0], sizes = [8, 8], strides = [1, 1]} : vector<8x32xbf16> to vector<8x8xbf16>
    %153 = vector.extract_strided_slice %150 {offsets = [0, 0], sizes = [10, 8], strides = [1, 1]} : vector<10x32xbf16> to vector<10x8xbf16>
    %cst_77 = arith.constant dense<0.000000e+00> : vector<8x10xf32>
    %154 = tpu.matmul %152, %153, %cst_77 {dimension_numbers = #tpu.dot_dimension_numbers<[1], [1], [0], [0], [0, 0, 1, 0], [], []>} : vector<8x8xbf16>, vector<10x8xbf16>, vector<8x10xf32> -> vector<8x10xf32>
    %155 = vector.extract_strided_slice %149 {offsets = [0, 8], sizes = [8, 8], strides = [1, 1]} : vector<8x32xbf16> to vector<8x8xbf16>
    %156 = vector.extract_strided_slice %150 {offsets = [0, 8], sizes = [10, 8], strides = [1, 1]} : vector<10x32xbf16> to vector<10x8xbf16>
    %cst_78 = arith.constant dense<0.000000e+00> : vector<8x10xf32>
    %157 = tpu.matmul %155, %156, %cst_78 {dimension_numbers = #tpu.dot_dimension_numbers<[1], [1], [0], [0], [0, 0, 1, 0], [], []>} : vector<8x8xbf16>, vector<10x8xbf16>, vector<8x10xf32> -> vector<8x10xf32>
    %158 = vector.extract_strided_slice %149 {offsets = [0, 16], sizes = [8, 8], strides = [1, 1]} : vector<8x32xbf16> to vector<8x8xbf16>
    %159 = vector.extract_strided_slice %150 {offsets = [0, 16], sizes = [10, 8], strides = [1, 1]} : vector<10x32xbf16> to vector<10x8xbf16>
    %cst_79 = arith.constant dense<0.000000e+00> : vector<8x10xf32>
    %160 = tpu.matmul %158, %159, %cst_79 {dimension_numbers = #tpu.dot_dimension_numbers<[1], [1], [0], [0], [0, 0, 1, 0], [], []>} : vector<8x8xbf16>, vector<10x8xbf16>, vector<8x10xf32> -> vector<8x10xf32>
    %161 = vector.extract_strided_slice %149 {offsets = [0, 24], sizes = [8, 8], strides = [1, 1]} : vector<8x32xbf16> to vector<8x8xbf16>
    %162 = vector.extract_strided_slice %150 {offsets = [0, 24], sizes = [10, 8], strides = [1, 1]} : vector<10x32xbf16> to vector<10x8xbf16>
    %cst_80 = arith.constant dense<0.000000e+00> : vector<8x10xf32>
    %163 = tpu.matmul %161, %162, %cst_80 {dimension_numbers = #tpu.dot_dimension_numbers<[1], [1], [0], [0], [0, 0, 1, 0], [], []>} : vector<8x8xbf16>, vector<10x8xbf16>, vector<8x10xf32> -> vector<8x10xf32>
    %164 = vector.shape_cast %154 : vector<8x10xf32> to vector<1x8x10xf32>
    %165 = vector.shape_cast %157 : vector<8x10xf32> to vector<1x8x10xf32>
    %166 = vector.shape_cast %160 : vector<8x10xf32> to vector<1x8x10xf32>
    %167 = vector.shape_cast %163 : vector<8x10xf32> to vector<1x8x10xf32>
    %168 = tpu.concatenate %164, %165, %166, %167 in 0 : vector<1x8x10xf32>, vector<1x8x10xf32>, vector<1x8x10xf32>, vector<1x8x10xf32> -> vector<4x8x10xf32>
    %169 = vector.shape_cast %7 : vector<8x10xf32> to vector<1x8x10xf32>
    %cst_81 = arith.constant 0.000000e+00 : f32
    %170 = vector.broadcast %cst_81 : f32 to vector<1x8x10xf32>
    %171 = arith.cmpf oeq, %169, %170 : vector<1x8x10xf32>
    %cst_82 = arith.constant -1.000000e+10 : f32
    %172 = vector.shape_cast %171 : vector<1x8x10xi1> to vector<1x8x10xi1>
    %173 = vector.broadcast %172 : vector<1x8x10xi1> to vector<4x8x10xi1>
    %174 = vector.broadcast %cst_82 : f32 to vector<4x8x10xf32>
    %175 = arith.select %173, %174, %168 : vector<4x8x10xi1>, vector<4x8x10xf32>
    %cst_83 = arith.constant dense<0xFF800000> : vector<4x8xf32>
    %176 = vector.multi_reduction <maximumf>, %175, %cst_83 [2] : vector<4x8x10xf32> to vector<4x8xf32>
    %177 = vector.shape_cast %176 : vector<4x8xf32> to vector<4x8x1xf32>
    %178 = vector.broadcast %177 : vector<4x8x1xf32> to vector<4x8x10xf32>
    %179 = arith.subf %175, %178 : vector<4x8x10xf32>
    %180 = math.exp %179 : vector<4x8x10xf32>
    %cst_84 = arith.constant dense<0.000000e+00> : vector<4x8xf32>
    %181 = vector.multi_reduction <add>, %180, %cst_84 [2] : vector<4x8x10xf32> to vector<4x8xf32>
    %182 = vector.shape_cast %181 : vector<4x8xf32> to vector<4x8x1xf32>
    %183 = vector.broadcast %182 : vector<4x8x1xf32> to vector<4x8x10xf32>
    %184 = arith.divf %180, %183 : vector<4x8x10xf32>
    %185 = arith.truncf %184 : vector<4x8x10xf32> to vector<4x8x10xbf16>
    %186 = vector.extract_strided_slice %185 {offsets = [0, 0, 0], sizes = [1, 8, 10], strides = [1, 1, 1]} : vector<4x8x10xbf16> to vector<1x8x10xbf16>
    %187 = vector.shape_cast %186 : vector<1x8x10xbf16> to vector<8x10xbf16>
    %188 = vector.extract_strided_slice %151 {offsets = [0, 0], sizes = [10, 8], strides = [1, 1]} : vector<10x32xbf16> to vector<10x8xbf16>
    %cst_85 = arith.constant dense<0.000000e+00> : vector<8x8xf32>
    %189 = tpu.matmul %187, %188, %cst_85 {dimension_numbers = #tpu.dot_dimension_numbers<[1], [0], [0], [1], [0, 0, 1, 1], [], []>} : vector<8x10xbf16>, vector<10x8xbf16>, vector<8x8xf32> -> vector<8x8xf32>
    %190 = arith.truncf %189 : vector<8x8xf32> to vector<8x8xbf16>
    %191 = vector.extract_strided_slice %131 {offsets = [0, 0, 0], sizes = [1, 8, 32], strides = [1, 1, 1]} : vector<4x8x32xbf16> to vector<1x8x32xbf16>
    %192 = vector.shape_cast %191 : vector<1x8x32xbf16> to vector<8x32xbf16>
    %cst_86 = arith.constant dense<0.000000e+00> : vector<8x32xf32>
    %193 = tpu.matmul %190, %192, %cst_86 {dimension_numbers = #tpu.dot_dimension_numbers<[1], [0], [0], [1], [0, 0, 1, 1], [], []>} : vector<8x8xbf16>, vector<8x32xbf16>, vector<8x32xf32> -> vector<8x32xf32>
    %194 = vector.broadcast %135 : vector<1x32xf32> to vector<8x32xf32>
    %195 = arith.addf %194, %193 : vector<8x32xf32>
    %196 = vector.extract_strided_slice %185 {offsets = [1, 0, 0], sizes = [1, 8, 10], strides = [1, 1, 1]} : vector<4x8x10xbf16> to vector<1x8x10xbf16>
    %197 = vector.shape_cast %196 : vector<1x8x10xbf16> to vector<8x10xbf16>
    %198 = vector.extract_strided_slice %151 {offsets = [0, 8], sizes = [10, 8], strides = [1, 1]} : vector<10x32xbf16> to vector<10x8xbf16>
    %cst_87 = arith.constant dense<0.000000e+00> : vector<8x8xf32>
    %199 = tpu.matmul %197, %198, %cst_87 {dimension_numbers = #tpu.dot_dimension_numbers<[1], [0], [0], [1], [0, 0, 1, 1], [], []>} : vector<8x10xbf16>, vector<10x8xbf16>, vector<8x8xf32> -> vector<8x8xf32>
    %200 = arith.truncf %199 : vector<8x8xf32> to vector<8x8xbf16>
    %201 = vector.extract_strided_slice %131 {offsets = [1, 0, 0], sizes = [1, 8, 32], strides = [1, 1, 1]} : vector<4x8x32xbf16> to vector<1x8x32xbf16>
    %202 = vector.shape_cast %201 : vector<1x8x32xbf16> to vector<8x32xbf16>
    %cst_88 = arith.constant dense<0.000000e+00> : vector<8x32xf32>
    %203 = tpu.matmul %200, %202, %cst_88 {dimension_numbers = #tpu.dot_dimension_numbers<[1], [0], [0], [1], [0, 0, 1, 1], [], []>} : vector<8x8xbf16>, vector<8x32xbf16>, vector<8x32xf32> -> vector<8x32xf32>
    %204 = arith.addf %195, %203 : vector<8x32xf32>
    %205 = vector.extract_strided_slice %185 {offsets = [2, 0, 0], sizes = [1, 8, 10], strides = [1, 1, 1]} : vector<4x8x10xbf16> to vector<1x8x10xbf16>
    %206 = vector.shape_cast %205 : vector<1x8x10xbf16> to vector<8x10xbf16>
    %207 = vector.extract_strided_slice %151 {offsets = [0, 16], sizes = [10, 8], strides = [1, 1]} : vector<10x32xbf16> to vector<10x8xbf16>
    %cst_89 = arith.constant dense<0.000000e+00> : vector<8x8xf32>
    %208 = tpu.matmul %206, %207, %cst_89 {dimension_numbers = #tpu.dot_dimension_numbers<[1], [0], [0], [1], [0, 0, 1, 1], [], []>} : vector<8x10xbf16>, vector<10x8xbf16>, vector<8x8xf32> -> vector<8x8xf32>
    %209 = arith.truncf %208 : vector<8x8xf32> to vector<8x8xbf16>
    %210 = vector.extract_strided_slice %131 {offsets = [2, 0, 0], sizes = [1, 8, 32], strides = [1, 1, 1]} : vector<4x8x32xbf16> to vector<1x8x32xbf16>
    %211 = vector.shape_cast %210 : vector<1x8x32xbf16> to vector<8x32xbf16>
    %cst_90 = arith.constant dense<0.000000e+00> : vector<8x32xf32>
    %212 = tpu.matmul %209, %211, %cst_90 {dimension_numbers = #tpu.dot_dimension_numbers<[1], [0], [0], [1], [0, 0, 1, 1], [], []>} : vector<8x8xbf16>, vector<8x32xbf16>, vector<8x32xf32> -> vector<8x32xf32>
    %213 = arith.addf %204, %212 : vector<8x32xf32>
    %214 = vector.extract_strided_slice %185 {offsets = [3, 0, 0], sizes = [1, 8, 10], strides = [1, 1, 1]} : vector<4x8x10xbf16> to vector<1x8x10xbf16>
    %215 = vector.shape_cast %214 : vector<1x8x10xbf16> to vector<8x10xbf16>
    %216 = vector.extract_strided_slice %151 {offsets = [0, 24], sizes = [10, 8], strides = [1, 1]} : vector<10x32xbf16> to vector<10x8xbf16>
    %cst_91 = arith.constant dense<0.000000e+00> : vector<8x8xf32>
    %217 = tpu.matmul %215, %216, %cst_91 {dimension_numbers = #tpu.dot_dimension_numbers<[1], [0], [0], [1], [0, 0, 1, 1], [], []>} : vector<8x10xbf16>, vector<10x8xbf16>, vector<8x8xf32> -> vector<8x8xf32>
    %218 = arith.truncf %217 : vector<8x8xf32> to vector<8x8xbf16>
    %219 = vector.extract_strided_slice %131 {offsets = [3, 0, 0], sizes = [1, 8, 32], strides = [1, 1, 1]} : vector<4x8x32xbf16> to vector<1x8x32xbf16>
    %220 = vector.shape_cast %219 : vector<1x8x32xbf16> to vector<8x32xbf16>
    %cst_92 = arith.constant dense<0.000000e+00> : vector<8x32xf32>
    %221 = tpu.matmul %218, %220, %cst_92 {dimension_numbers = #tpu.dot_dimension_numbers<[1], [0], [0], [1], [0, 0, 1, 1], [], []>} : vector<8x8xbf16>, vector<8x32xbf16>, vector<8x32xf32> -> vector<8x32xf32>
    %222 = arith.addf %213, %221 : vector<8x32xf32>
    %223 = arith.addf %127, %222 : vector<8x32xf32>
    %c0_93 = arith.constant 0 : index
    %c0_94 = arith.constant 0 : index
    %224 = vector.load %arg23[%c0_93, %c0_94] : memref<1x32xf32, #tpu.memory_space<vmem>>, vector<1x32xf32>
    %c0_95 = arith.constant 0 : index
    %c0_96 = arith.constant 0 : index
    %225 = vector.load %arg24[%c0_95, %c0_96] : memref<1x32xf32, #tpu.memory_space<vmem>>, vector<1x32xf32>
    %cst_97 = arith.constant dense<0.000000e+00> : vector<8xf32>
    %226 = vector.multi_reduction <add>, %223, %cst_97 [1] : vector<8x32xf32> to vector<8xf32>
    %227 = vector.shape_cast %226 : vector<8xf32> to vector<8x1xf32>
    %cst_98 = arith.constant 3.200000e+01 : f32
    %228 = vector.broadcast %cst_98 : f32 to vector<8x1xf32>
    %229 = arith.divf %227, %228 : vector<8x1xf32>
    %230 = vector.broadcast %229 : vector<8x1xf32> to vector<8x32xf32>
    %231 = arith.subf %223, %230 : vector<8x32xf32>
    %232 = arith.mulf %231, %231 : vector<8x32xf32>
    %cst_99 = arith.constant dense<0.000000e+00> : vector<8xf32>
    %233 = vector.multi_reduction <add>, %232, %cst_99 [1] : vector<8x32xf32> to vector<8xf32>
    %234 = vector.shape_cast %233 : vector<8xf32> to vector<8x1xf32>
    %cst_100 = arith.constant 3.200000e+01 : f32
    %235 = vector.broadcast %cst_100 : f32 to vector<8x1xf32>
    %236 = arith.divf %234, %235 : vector<8x1xf32>
    %237 = vector.broadcast %229 : vector<8x1xf32> to vector<8x32xf32>
    %238 = arith.subf %223, %237 : vector<8x32xf32>
    %cst_101 = arith.constant 9.99999974E-6 : f32
    %239 = vector.broadcast %cst_101 : f32 to vector<8x1xf32>
    %240 = arith.addf %236, %239 : vector<8x1xf32>
    %241 = math.rsqrt %240 : vector<8x1xf32>
    %242 = vector.broadcast %241 : vector<8x1xf32> to vector<8x32xf32>
    %243 = arith.mulf %238, %242 : vector<8x32xf32>
    %244 = vector.broadcast %224 : vector<1x32xf32> to vector<8x32xf32>
    %245 = arith.mulf %243, %244 : vector<8x32xf32>
    %246 = vector.broadcast %225 : vector<1x32xf32> to vector<8x32xf32>
    %247 = arith.addf %245, %246 : vector<8x32xf32>
    %248 = arith.truncf %247 : vector<8x32xf32> to vector<8x32xbf16>
    %c0_102 = arith.constant 0 : index
    %c0_103 = arith.constant 0 : index
    %249 = vector.load %arg25[%c0_102, %c0_103] : memref<32x64xbf16, #tpu.memory_space<vmem>>, vector<32x64xbf16>
    %cst_104 = arith.constant dense<0.000000e+00> : vector<8x64xf32>
    %250 = tpu.matmul %248, %249, %cst_104 {dimension_numbers = #tpu.dot_dimension_numbers<[1], [0], [0], [1], [0, 0, 1, 1], [], []>} : vector<8x32xbf16>, vector<32x64xbf16>, vector<8x64xf32> -> vector<8x64xf32>
    %c0_105 = arith.constant 0 : index
    %c0_106 = arith.constant 0 : index
    %251 = vector.load %arg26[%c0_105, %c0_106] : memref<1x64xf32, #tpu.memory_space<vmem>>, vector<1x64xf32>
    %252 = vector.broadcast %251 : vector<1x64xf32> to vector<8x64xf32>
    %253 = arith.addf %250, %252 : vector<8x64xf32>
    %cst_107 = arith.constant 0.000000e+00 : f32
    %254 = vector.broadcast %cst_107 : f32 to vector<8x64xf32>
    %255 = arith.maximumf %253, %254 : vector<8x64xf32>
    %256 = arith.truncf %255 : vector<8x64xf32> to vector<8x64xbf16>
    %c0_108 = arith.constant 0 : index
    %c0_109 = arith.constant 0 : index
    %257 = vector.load %arg27[%c0_108, %c0_109] : memref<64x32xbf16, #tpu.memory_space<vmem>>, vector<64x32xbf16>
    %cst_110 = arith.constant dense<0.000000e+00> : vector<8x32xf32>
    %258 = tpu.matmul %256, %257, %cst_110 {dimension_numbers = #tpu.dot_dimension_numbers<[1], [0], [0], [1], [0, 0, 1, 1], [], []>} : vector<8x64xbf16>, vector<64x32xbf16>, vector<8x32xf32> -> vector<8x32xf32>
    %c0_111 = arith.constant 0 : index
    %c0_112 = arith.constant 0 : index
    %259 = vector.load %arg28[%c0_111, %c0_112] : memref<1x32xf32, #tpu.memory_space<vmem>>, vector<1x32xf32>
    %260 = vector.broadcast %259 : vector<1x32xf32> to vector<8x32xf32>
    %261 = arith.addf %258, %260 : vector<8x32xf32>
    %262 = arith.addf %247, %261 : vector<8x32xf32>
    %c0_113 = arith.constant 0 : index
    %c0_114 = arith.constant 0 : index
    %263 = vector.load %arg29[%c0_113, %c0_114] : memref<1x32xf32, #tpu.memory_space<vmem>>, vector<1x32xf32>
    %c0_115 = arith.constant 0 : index
    %c0_116 = arith.constant 0 : index
    %264 = vector.load %arg30[%c0_115, %c0_116] : memref<1x32xf32, #tpu.memory_space<vmem>>, vector<1x32xf32>
    %cst_117 = arith.constant dense<0.000000e+00> : vector<8xf32>
    %265 = vector.multi_reduction <add>, %262, %cst_117 [1] : vector<8x32xf32> to vector<8xf32>
    %266 = vector.shape_cast %265 : vector<8xf32> to vector<8x1xf32>
    %cst_118 = arith.constant 3.200000e+01 : f32
    %267 = vector.broadcast %cst_118 : f32 to vector<8x1xf32>
    %268 = arith.divf %266, %267 : vector<8x1xf32>
    %269 = vector.broadcast %268 : vector<8x1xf32> to vector<8x32xf32>
    %270 = arith.subf %262, %269 : vector<8x32xf32>
    %271 = arith.mulf %270, %270 : vector<8x32xf32>
    %cst_119 = arith.constant dense<0.000000e+00> : vector<8xf32>
    %272 = vector.multi_reduction <add>, %271, %cst_119 [1] : vector<8x32xf32> to vector<8xf32>
    %273 = vector.shape_cast %272 : vector<8xf32> to vector<8x1xf32>
    %cst_120 = arith.constant 3.200000e+01 : f32
    %274 = vector.broadcast %cst_120 : f32 to vector<8x1xf32>
    %275 = arith.divf %273, %274 : vector<8x1xf32>
    %276 = vector.broadcast %268 : vector<8x1xf32> to vector<8x32xf32>
    %277 = arith.subf %262, %276 : vector<8x32xf32>
    %cst_121 = arith.constant 9.99999974E-6 : f32
    %278 = vector.broadcast %cst_121 : f32 to vector<8x1xf32>
    %279 = arith.addf %275, %278 : vector<8x1xf32>
    %280 = math.rsqrt %279 : vector<8x1xf32>
    %281 = vector.broadcast %280 : vector<8x1xf32> to vector<8x32xf32>
    %282 = arith.mulf %277, %281 : vector<8x32xf32>
    %283 = vector.broadcast %263 : vector<1x32xf32> to vector<8x32xf32>
    %284 = arith.mulf %282, %283 : vector<8x32xf32>
    %285 = vector.broadcast %264 : vector<1x32xf32> to vector<8x32xf32>
    %286 = arith.addf %284, %285 : vector<8x32xf32>
    %c0_122 = arith.constant 0 : index
    %c0_123 = arith.constant 0 : index
    %c0_124 = arith.constant 0 : index
    %287 = vector.load %arg31[%c0_122, %c0_123, %c0_124] : memref<1x8x32xf32, #tpu.memory_space<vmem>>, vector<1x8x32xf32>
    %288 = vector.shape_cast %287 : vector<1x8x32xf32> to vector<8x32xf32>
    %289 = vector.shape_cast %286 : vector<8x32xf32> to vector<1x8x32xf32>
    tpu.vector_store %arg31[%c0_122, %c0_123, %c0_124], %289 {strides = array<i32>} : memref<1x8x32xf32, #tpu.memory_space<vmem>>, vector<1x8x32xf32>,
    %c0_125 = arith.constant 0 : index
    %c0_126 = arith.constant 0 : index
    %c0_127 = arith.constant 0 : index
    %c0_128 = arith.constant 0 : index
    %290 = vector.load %arg32[%c0_125, %c0_126, %c0_127, %c0_128] : memref<1x4x8x10xf32, #tpu.memory_space<vmem>>, vector<1x4x8x10xf32>
    %291 = vector.shape_cast %290 : vector<1x4x8x10xf32> to vector<4x8x10xf32>
    %292 = vector.shape_cast %184 : vector<4x8x10xf32> to vector<1x4x8x10xf32>
    tpu.vector_store %arg32[%c0_125, %c0_126, %c0_127, %c0_128], %292 {strides = array<i32>} : memref<1x4x8x10xf32, #tpu.memory_space<vmem>>, vector<1x4x8x10xf32>,
    return
  }
  func.func @transform_0(%arg0: i32) -> (i32, i32, i32) {
    %c0_i32 = arith.constant 0 : i32
    %c0_i32_0 = arith.constant 0 : i32
    %c0_i32_1 = arith.constant 0 : i32
    return %arg0, %c0_i32, %c0_i32_0 : i32, i32, i32
  }
  func.func @transform_1(%arg0: i32) -> (i32, i32, i32) {
    %c0_i32 = arith.constant 0 : i32
    %c0_i32_0 = arith.constant 0 : i32
    %c0_i32_1 = arith.constant 0 : i32
    return %arg0, %c0_i32, %c0_i32_0 : i32, i32, i32
  }
  func.func @transform_2(%arg0: i32) -> (i32, i32, i32) {
    %c0_i32 = arith.constant 0 : i32
    %c0_i32_0 = arith.constant 0 : i32
    %c0_i32_1 = arith.constant 0 : i32
    return %arg0, %c0_i32, %c0_i32_0 : i32, i32, i32
  }
  func.func @transform_3(%arg0: i32) -> (i32, i32, i32) {
    %c0_i32 = arith.constant 0 : i32
    %c0_i32_0 = arith.constant 0 : i32
    %c0_i32_1 = arith.constant 0 : i32
    return %arg0, %c0_i32, %c0_i32_0 : i32, i32, i32
  }
  func.func @transform_4(%arg0: i32) -> (i32, i32) {
    %c0_i32 = arith.constant 0 : i32
    %c0_i32_0 = arith.constant 0 : i32
    %c0_i32_1 = arith.constant 0 : i32
    return %c0_i32, %c0_i32_0 : i32, i32
  }
  func.func @transform_5(%arg0: i32) -> (i32, i32) {
    %c0_i32 = arith.constant 0 : i32
    %c0_i32_0 = arith.constant 0 : i32
    %c0_i32_1 = arith.constant 0 : i32
    return %c0_i32, %c0_i32_0 : i32, i32
  }
  func.func @transform_6(%arg0: i32) -> (i32, i32) {
    %c0_i32 = arith.constant 0 : i32
    %c0_i32_0 = arith.constant 0 : i32
    %c0_i32_1 = arith.constant 0 : i32
    return %c0_i32, %c0_i32_0 : i32, i32
  }
  func.func @transform_7(%arg0: i32) -> (i32, i32, i32) {
    %c0_i32 = arith.constant 0 : i32
    %c0_i32_0 = arith.constant 0 : i32
    %c0_i32_1 = arith.constant 0 : i32
    %c0_i32_2 = arith.constant 0 : i32
    return %c0_i32, %c0_i32_0, %c0_i32_1 : i32, i32, i32
  }
  func.func @transform_8(%arg0: i32) -> (i32, i32) {
    %c0_i32 = arith.constant 0 : i32
    %c0_i32_0 = arith.constant 0 : i32
    %c0_i32_1 = arith.constant 0 : i32
    return %c0_i32, %c0_i32_0 : i32, i32
  }
  func.func @transform_9(%arg0: i32) -> (i32, i32) {
    %c0_i32 = arith.constant 0 : i32
    %c0_i32_0 = arith.constant 0 : i32
    %c0_i32_1 = arith.constant 0 : i32
    return %c0_i32, %c0_i32_0 : i32, i32
  }
  func.func @transform_10(%arg0: i32) -> (i32, i32) {
    %c0_i32 = arith.constant 0 : i32
    %c0_i32_0 = arith.constant 0 : i32
    %c0_i32_1 = arith.constant 0 : i32
    return %c0_i32, %c0_i32_0 : i32, i32
  }
  func.func @transform_11(%arg0: i32) -> (i32, i32) {
    %c0_i32 = arith.constant 0 : i32
    %c0_i32_0 = arith.constant 0 : i32
    %c0_i32_1 = arith.constant 0 : i32
    return %c0_i32, %c0_i32_0 : i32, i32
  }
  func.func @transform_12(%arg0: i32) -> (i32, i32) {
    %c0_i32 = arith.constant 0 : i32
    %c0_i32_0 = arith.constant 0 : i32
    %c0_i32_1 = arith.constant 0 : i32
    return %c0_i32, %c0_i32_0 : i32, i32
  }
  func.func @transform_13(%arg0: i32) -> (i32, i32) {
    %c0_i32 = arith.constant 0 : i32
    %c0_i32_0 = arith.constant 0 : i32
    %c0_i32_1 = arith.constant 0 : i32
    return %c0_i32, %c0_i32_0 : i32, i32
  }
  func.func @transform_14(%arg0: i32) -> (i32, i32) {
    %c0_i32 = arith.constant 0 : i32
    %c0_i32_0 = arith.constant 0 : i32
    %c0_i32_1 = arith.constant 0 : i32
    return %c0_i32, %c0_i32_0 : i32, i32
  }
  func.func @transform_15(%arg0: i32) -> (i32, i32) {
    %c0_i32 = arith.constant 0 : i32
    %c0_i32_0 = arith.constant 0 : i32
    %c0_i32_1 = arith.constant 0 : i32
    return %c0_i32, %c0_i32_0 : i32, i32
  }
  func.func @transform_16(%arg0: i32) -> (i32, i32) {
    %c0_i32 = arith.constant 0 : i32
    %c0_i32_0 = arith.constant 0 : i32
    %c0_i32_1 = arith.constant 0 : i32
    return %c0_i32, %c0_i32_0 : i32, i32
  }
  func.func @transform_17(%arg0: i32) -> (i32, i32, i32) {
    %c0_i32 = arith.constant 0 : i32
    %c0_i32_0 = arith.constant 0 : i32
    %c0_i32_1 = arith.constant 0 : i32
    %c0_i32_2 = arith.constant 0 : i32
    return %c0_i32, %c0_i32_0, %c0_i32_1 : i32, i32, i32
  }
  func.func @transform_18(%arg0: i32) -> (i32, i32) {
    %c0_i32 = arith.constant 0 : i32
    %c0_i32_0 = arith.constant 0 : i32
    %c0_i32_1 = arith.constant 0 : i32
    return %c0_i32, %c0_i32_0 : i32, i32
  }
  func.func @transform_19(%arg0: i32) -> (i32, i32) {
    %c0_i32 = arith.constant 0 : i32
    %c0_i32_0 = arith.constant 0 : i32
    %c0_i32_1 = arith.constant 0 : i32
    return %c0_i32, %c0_i32_0 : i32, i32
  }
  func.func @transform_20(%arg0: i32) -> (i32, i32) {
    %c0_i32 = arith.constant 0 : i32
    %c0_i32_0 = arith.constant 0 : i32
    %c0_i32_1 = arith.constant 0 : i32
    return %c0_i32, %c0_i32_0 : i32, i32
  }
  func.func @transform_21(%arg0: i32) -> (i32, i32) {
    %c0_i32 = arith.constant 0 : i32
    %c0_i32_0 = arith.constant 0 : i32
    %c0_i32_1 = arith.constant 0 : i32
    return %c0_i32, %c0_i32_0 : i32, i32
  }
  func.func @transform_22(%arg0: i32) -> (i32, i32) {
    %c0_i32 = arith.constant 0 : i32
    %c0_i32_0 = arith.constant 0 : i32
    %c0_i32_1 = arith.constant 0 : i32
    return %c0_i32, %c0_i32_0 : i32, i32
  }
  func.func @transform_23(%arg0: i32) -> (i32, i32) {
    %c0_i32 = arith.constant 0 : i32
    %c0_i32_0 = arith.constant 0 : i32
    %c0_i32_1 = arith.constant 0 : i32
    return %c0_i32, %c0_i32_0 : i32, i32
  }
  func.func @transform_24(%arg0: i32) -> (i32, i32) {
    %c0_i32 = arith.constant 0 : i32
    %c0_i32_0 = arith.constant 0 : i32
    %c0_i32_1 = arith.constant 0 : i32
    return %c0_i32, %c0_i32_0 : i32, i32
  }
  func.func @transform_25(%arg0: i32) -> (i32, i32) {
    %c0_i32 = arith.constant 0 : i32
    %c0_i32_0 = arith.constant 0 : i32
    %c0_i32_1 = arith.constant 0 : i32
    return %c0_i32, %c0_i32_0 : i32, i32
  }
  func.func @transform_26(%arg0: i32) -> (i32, i32) {
    %c0_i32 = arith.constant 0 : i32
    %c0_i32_0 = arith.constant 0 : i32
    %c0_i32_1 = arith.constant 0 : i32
    return %c0_i32, %c0_i32_0 : i32, i32
  }
  func.func @transform_27(%arg0: i32) -> (i32, i32) {
    %c0_i32 = arith.constant 0 : i32
    %c0_i32_0 = arith.constant 0 : i32
    %c0_i32_1 = arith.constant 0 : i32
    return %c0_i32, %c0_i32_0 : i32, i32
  }
  func.func @transform_28(%arg0: i32) -> (i32, i32) {
    %c0_i32 = arith.constant 0 : i32
    %c0_i32_0 = arith.constant 0 : i32
    %c0_i32_1 = arith.constant 0 : i32
    return %c0_i32, %c0_i32_0 : i32, i32
  }
  func.func @transform_29(%arg0: i32) -> (i32, i32) {
    %c0_i32 = arith.constant 0 : i32
    %c0_i32_0 = arith.constant 0 : i32
    %c0_i32_1 = arith.constant 0 : i32
    return %c0_i32, %c0_i32_0 : i32, i32
  }
  func.func @transform_30(%arg0: i32) -> (i32, i32, i32) {
    %c0_i32 = arith.constant 0 : i32
    %c0_i32_0 = arith.constant 0 : i32
    %c0_i32_1 = arith.constant 0 : i32
    return %arg0, %c0_i32, %c0_i32_0 : i32, i32, i32
  }
  func.func @transform_31(%arg0: i32) -> (i32, i32, i32, i32) {
    %c0_i32 = arith.constant 0 : i32
    %c0_i32_0 = arith.constant 0 : i32
    %c0_i32_1 = arith.constant 0 : i32
    %c0_i32_2 = arith.constant 0 : i32
    return %arg0, %c0_i32, %c0_i32_0, %c0_i32_1 : i32, i32, i32, i32
  }
}

</mosaic_0001>

<llo_original>
// kernel: decoder_layer_forward.1
$region0: #{decoder_layer_forward.1}
  #allocation0 [shape = 'u32[]', space=smem, size = 0x4, offset = 0x4, fixed_abs, tag = 'smem constant byte address 0x4 - core index']
  #allocation1 [shape = 'u32[144,128]{1,0:T(1,128)}', space=vmem, size = 0x12000, scoped, tag = 'internal scratch']
  %s0 = inlined_call_operand.smem [shape: u32[32], index: -1, kind: input, shape index: {}]
  %s1 = sld [smem:[%s0]]
  %s2 = scalar_lea.smem %s0, 1
  %s3 = sld [smem:[%s2]]
  %s4 = scalar_lea.smem %s0, 2
  %s5 = sld [smem:[%s4]]
  %s6 = scalar_lea.smem %s0, 3
  %s7 = sld [smem:[%s6]]
  %s8 = scalar_lea.smem %s0, 4
  %s9 = sld [smem:[%s8]]
  %s10 = scalar_lea.smem %s0, 5
  %s11 = sld [smem:[%s10]]
  %s12 = scalar_lea.smem %s0, 6
  %s13 = sld [smem:[%s12]]
  %s14 = scalar_lea.smem %s0, 7
  %s15 = sld [smem:[%s14]]
  %s16 = scalar_lea.smem %s0, 8
  %s17 = sld [smem:[%s16]]
  %s18 = scalar_lea.smem %s0, 9
  %s19 = sld [smem:[%s18]]
  %s20 = scalar_lea.smem %s0, 10
  %s21 = sld [smem:[%s20]]
  %s22 = scalar_lea.smem %s0, 11
  %s23 = sld [smem:[%s22]]
  %s24 = scalar_lea.smem %s0, 12
  %s25 = sld [smem:[%s24]]
  %s26 = scalar_lea.smem %s0, 13
  %s27 = sld [smem:[%s26]]
  %s28 = scalar_lea.smem %s0, 14
  %s29 = sld [smem:[%s28]]
  %s30 = scalar_lea.smem %s0, 15
  %s31 = sld [smem:[%s30]]
  %s32 = scalar_lea.smem %s0, 16
  %s33 = sld [smem:[%s32]]
  %s34 = scalar_lea.smem %s0, 17
  %s35 = sld [smem:[%s34]]
  %s36 = scalar_lea.smem %s0, 18
  %s37 = sld [smem:[%s36]]
  %s38 = scalar_lea.smem %s0, 19
  %s39 = sld [smem:[%s38]]
  %s40 = scalar_lea.smem %s0, 20
  %s41 = sld [smem:[%s40]]
  %s42 = scalar_lea.smem %s0, 21
  %s43 = sld [smem:[%s42]]
  %s44 = scalar_lea.smem %s0, 22
  %s45 = sld [smem:[%s44]]
  %s46 = scalar_lea.smem %s0, 23
  %s47 = sld [smem:[%s46]]
  %s48 = scalar_lea.smem %s0, 24
  %s49 = sld [smem:[%s48]]
  %s50 = scalar_lea.smem %s0, 25
  %s51 = sld [smem:[%s50]]
  %s52 = scalar_lea.smem %s0, 26
  %s53 = sld [smem:[%s52]]
  %s54 = scalar_lea.smem %s0, 27
  %s55 = sld [smem:[%s54]]
  %s56 = scalar_lea.smem %s0, 28
  %s57 = sld [smem:[%s56]]
  %s58 = scalar_lea.smem %s0, 29
  %s59 = sld [smem:[%s58]]
  %s60 = scalar_lea.smem %s0, 30
  %s61 = sld [smem:[%s60]]
  %s62 = scalar_lea.smem %s0, 31
  %s63 = sld [smem:[%s62]]
  %64 = xla_tuple %s61, %s63
  %s65 = sld [smem:[#allocation0]]
  $region189: #{decoder_layer_forward.1} parent=0
    _
  %s67 = ssub.s32 1, %s65
  %s68 = scalar_select 0, %s67, %s65
  $region1: #{decoder_layer_forward.1} parent=0
    #allocation2 [shape = 'u8[8192]{0}', space=vmem, size = 0x2000, scoped, tag = 'input window, operand 14, single buffered']
    #allocation3 [shape = 's32[2]{0}', space=sflag, size = 0x8, scoped, tag = 'scoped memory for decoder_layer_forward.1']
    #allocation4 [shape = 's32[2]{0}', space=sflag, size = 0x8, scoped, tag = 'scoped memory for decoder_layer_forward.1']
    #allocation5 [shape = 'u8[8192]{0}', space=vmem, size = 0x2000, scoped, tag = 'input window, operand 15, single buffered']
    #allocation6 [shape = 's32[1]{0}', space=sflag, size = 0x4, scoped, tag = 'scoped memory for decoder_layer_forward.1']
    #allocation7 [shape = 'u8[8192]{0}', space=vmem, size = 0x2000, scoped, tag = 'input window, operand 16, single buffered']
    #allocation8 [shape = 'u8[8192]{0}', space=vmem, size = 0x2000, scoped, tag = 'input window, operand 17, single buffered']
    #allocation9 [shape = 's32[1]{0}', space=sflag, size = 0x4, scoped, tag = 'scoped memory for decoder_layer_forward.1']
    #allocation10 [shape = 'u8[8192]{0}', space=vmem, size = 0x2000, scoped, tag = 'input window, operand 24, single buffered']
    #allocation11 [shape = 'u8[512]{0}', space=vmem, size = 0x400, scoped, tag = 'input window, operand 25, single buffered']
    #allocation12 [shape = 's32[1]{0}', space=sflag, size = 0x4, scoped, tag = 'scoped memory for decoder_layer_forward.1']
    #allocation13 [shape = 'u8[512]{0}', space=vmem, size = 0x400, scoped, tag = 'input window, operand 27, single buffered']
    #allocation14 [shape = 'u8[8192]{0}', space=vmem, size = 0x2000, scoped, tag = 'output window, operand 0']
    #allocation15 [shape = 'u8[32768]{0}', space=vmem, size = 0x8000, scoped, tag = 'output window, operand 1']
    #allocation16 [shape = 's32[2]{0}', space=sflag, size = 0x8, scoped, tag = 'scoped memory for decoder_layer_forward.1']
    %69 = vsyncpa [#allocation3], 0
    %70 = vsyncpa [#allocation6], 0
    %71 = vsyncpa [#allocation9], 0
    %72 = vsyncpa [#allocation12], 0
    %73 = vsyncpa [#allocation4], 0
    %s74 = scalar_lea.sflag [#allocation4], 1
    %75 = vsyncpa %s74, 0
    %76 = vsyncpa [#allocation16], 0
    %s77 = scalar_lea.sflag [#allocation16], 1
    %78 = vsyncpa %s77, 0
    loop: start=0, step=1, limit=4
    $region2: #{decoder_layer_forward.1} parent=1 // loop_pre_header
      _
    $region3: #{decoder_layer_forward.1} parent=1 // loop_header
      %s80 = sphi 0, %s84
      %p81 = scmp.ge.s32.totalorder %s80, 4
      %s90 = sphi 0, %s92
      %s93 = sphi 0, %s90
      %s94 = sphi 0, %s93
      %s110 = sphi 0, %s94
      %s116 = sphi 0, %s118
      %s119 = sphi 0, %s116
      %s120 = sphi 0, %s119
      %s136 = sphi 0, %s120
      %s142 = sphi 0, %s144
      %s145 = sphi 0, %s142
      %s146 = sphi 0, %s145
      %s162 = sphi 0, %s146
      %s168 = sphi 0, %s170
      %s171 = sphi 0, %s168
      %s172 = sphi 0, %s171
      %s188 = sphi 0, %s172
      %s192 = sphi 0, %s192
      %s194 = sphi 0, %s192
      %s195 = sphi 0, %s194
      %s209 = sphi 0, %s195
      %s213 = sphi 0, %s213
      %s215 = sphi 0, %s213
      %s216 = sphi 0, %s215
      %s230 = sphi 0, %s216
      %s234 = sphi 0, %s234
      %s236 = sphi 0, %s234
      %s237 = sphi 0, %s236
      %s251 = sphi 0, %s237
      %s255 = sphi 0, %s255
      %s257 = sphi 0, %s255
      %s258 = sphi 0, %s257
      %s272 = sphi 0, %s258
      %s276 = sphi 0, %s276
      %s278 = sphi 0, %s276
      %s279 = sphi 0, %s278
      %s293 = sphi 0, %s279
      %s297 = sphi 0, %s297
      %s299 = sphi 0, %s297
      %s300 = sphi 0, %s299
      %s314 = sphi 0, %s300
      %s318 = sphi 0, %s318
      %s320 = sphi 0, %s318
      %s321 = sphi 0, %s320
      %s335 = sphi 0, %s321
      %s339 = sphi 0, %s339
      %s341 = sphi 0, %s339
      %s342 = sphi 0, %s341
      %s356 = sphi 0, %s342
      %s360 = sphi 0, %s360
      %s362 = sphi 0, %s360
      %s363 = sphi 0, %s362
      %s377 = sphi 0, %s363
      %s381 = sphi 0, %s381
      %s383 = sphi 0, %s381
      %s384 = sphi 0, %s383
      %s398 = sphi 0, %s384
      %s402 = sphi 0, %s402
      %s404 = sphi 0, %s402
      %s405 = sphi 0, %s404
      %s419 = sphi 0, %s405
      %s423 = sphi 0, %s423
      %s425 = sphi 0, %s423
      %s426 = sphi 0, %s425
      %s440 = sphi 0, %s426
      %s444 = sphi 0, %s444
      %s446 = sphi 0, %s444
      %s447 = sphi 0, %s446
      %s461 = sphi 0, %s447
      %s465 = sphi 0, %s465
      %s467 = sphi 0, %s465
      %s468 = sphi 0, %s467
      %s482 = sphi 0, %s468
      %s486 = sphi 0, %s486
      %s488 = sphi 0, %s486
      %s489 = sphi 0, %s488
      %s503 = sphi 0, %s489
      %s507 = sphi 0, %s507
      %s509 = sphi 0, %s507
      %s510 = sphi 0, %s509
      %s524 = sphi 0, %s510
      %s528 = sphi 0, %s528
      %s530 = sphi 0, %s528
      %s531 = sphi 0, %s530
      %s545 = sphi 0, %s531
      %s549 = sphi 0, %s549
      %s551 = sphi 0, %s549
      %s552 = sphi 0, %s551
      %s566 = sphi 0, %s552
      %s570 = sphi 0, %s570
      %s572 = sphi 0, %s570
      %s573 = sphi 0, %s572
      %s587 = sphi 0, %s573
      %s591 = sphi 0, %s591
      %s593 = sphi 0, %s591
      %s594 = sphi 0, %s593
      %s608 = sphi 0, %s594
      %s612 = sphi 0, %s612
      %s614 = sphi 0, %s612
      %s615 = sphi 0, %s614
      %s629 = sphi 0, %s615
      %s633 = sphi 0, %s633
      %s635 = sphi 0, %s633
      %s636 = sphi 0, %s635
      %s650 = sphi 0, %s636
      %s654 = sphi 0, %s654
      %s656 = sphi 0, %s654
      %s657 = sphi 0, %s656
      %s671 = sphi 0, %s657
      %s675 = sphi 0, %s675
      %s677 = sphi 0, %s675
      %s678 = sphi 0, %s677
      %s692 = sphi 0, %s678
      %s696 = sphi 0, %s696
      %s698 = sphi 0, %s696
      %s699 = sphi 0, %s698
      %s713 = sphi 0, %s699
      %s717 = sphi 0, %s717
      %s719 = sphi 0, %s717
      %s720 = sphi 0, %s719
      %s734 = sphi 0, %s720
      %s740 = sphi 0, %s742
      %s743 = sphi 0, %s740
      %s744 = sphi 0, %s743
      %s760 = sphi 0, %s744
      %s766 = sphi 0, %s768
      %s769 = sphi 0, %s766
      %s770 = sphi 0, %s769
      %s786 = sphi 0, %s770
    $region4: #{decoder_layer_forward.1} parent=1 // loop_header_branch
      %83 = sbr.rel (%p81) target = $region8
    $region5: #{decoder_layer_forward.1} parent=1 // loop_body
      %s85 = ssub.s32 %s80, 1
      %s86 = ssub.s32 %s80, 2
      %s87 = sadd.s32 %s80, 1
      %s88 = ssub.s32 %s80, %s87
      %p89 = scmp.eq.s32.totalorder %s88, 0
      %s91 = sadd.s32 %s90, 1
      %s92 = scalar_select %p89, %s90, %s91
      %p95 = pneg %p89
      %p96 = scmp.eq.s32.totalorder %s80, 1
      %p97 = por %p95, %p96
      %p98 = scmp.ne.s32.totalorder %s90, %s93
      %p99 = scmp.eq.s32.totalorder %s80, 0
      %p100 = por %p98, %p99
      %p101 = scmp.ne.s32.totalorder %s90, %s93
      %p102 = scmp.eq.s32.totalorder %s85, 1
      %p103 = por %p101, %p102
      %p104 = scmp.ne.s32.totalorder %s93, %s94
      %p105 = scmp.eq.s32.totalorder %s85, 0
      %p106 = por %p104, %p105
      %p107 = scmp.ne.s32.totalorder %s93, %s94
      %p108 = scmp.eq.s32.totalorder %s86, 1
      %p109 = por %p107, %p108
      %p111 = scmp.ne.s32.totalorder %s94, %s110
      %p112 = scmp.eq.s32.totalorder %s86, 0
      %p113 = por %p111, %p112
      %s114 = ssub.s32 %s80, %s87
      %p115 = scmp.eq.s32.totalorder %s114, 0
      %s117 = sadd.s32 %s116, 1
      %s118 = scalar_select %p115, %s116, %s117
      %p121 = pneg %p115
      %p122 = scmp.eq.s32.totalorder %s80, 1
      %p123 = por %p121, %p122
      %p124 = scmp.ne.s32.totalorder %s116, %s119
      %p125 = scmp.eq.s32.totalorder %s80, 0
      %p126 = por %p124, %p125
      %p127 = scmp.ne.s32.totalorder %s116, %s119
      %p128 = scmp.eq.s32.totalorder %s85, 1
      %p129 = por %p127, %p128
      %p130 = scmp.ne.s32.totalorder %s119, %s120
      %p131 = scmp.eq.s32.totalorder %s85, 0
      %p132 = por %p130, %p131
      %p133 = scmp.ne.s32.totalorder %s119, %s120
      %p134 = scmp.eq.s32.totalorder %s86, 1
      %p135 = por %p133, %p134
      %p137 = scmp.ne.s32.totalorder %s120, %s136
      %p138 = scmp.eq.s32.totalorder %s86, 0
      %p139 = por %p137, %p138
      %s140 = ssub.s32 %s80, %s87
      %p141 = scmp.eq.s32.totalorder %s140, 0
      %s143 = sadd.s32 %s142, 1
      %s144 = scalar_select %p141, %s142, %s143
      %p147 = pneg %p141
      %p148 = scmp.eq.s32.totalorder %s80, 1
      %p149 = por %p147, %p148
      %p150 = scmp.ne.s32.totalorder %s142, %s145
      %p151 = scmp.eq.s32.totalorder %s80, 0
      %p152 = por %p150, %p151
      %p153 = scmp.ne.s32.totalorder %s142, %s145
      %p154 = scmp.eq.s32.totalorder %s85, 1
      %p155 = por %p153, %p154
      %p156 = scmp.ne.s32.totalorder %s145, %s146
      %p157 = scmp.eq.s32.totalorder %s85, 0
      %p158 = por %p156, %p157
      %p159 = scmp.ne.s32.totalorder %s145, %s146
      %p160 = scmp.eq.s32.totalorder %s86, 1
      %p161 = por %p159, %p160
      %p163 = scmp.ne.s32.totalorder %s146, %s162
      %p164 = scmp.eq.s32.totalorder %s86, 0
      %p165 = por %p163, %p164
      %s166 = ssub.s32 %s80, %s87
      %p167 = scmp.eq.s32.totalorder %s166, 0
      %s169 = sadd.s32 %s168, 1
      %s170 = scalar_select %p167, %s168, %s169
      %p173 = pneg %p167
      %p174 = scmp.eq.s32.totalorder %s80, 1
      %p175 = por %p173, %p174
      %p176 = scmp.ne.s32.totalorder %s168, %s171
      %p177 = scmp.eq.s32.totalorder %s80, 0
      %p178 = por %p176, %p177
      %p179 = scmp.ne.s32.totalorder %s168, %s171
      %p180 = scmp.eq.s32.totalorder %s85, 1
      %p181 = por %p179, %p180
      %p182 = scmp.ne.s32.totalorder %s171, %s172
      %p183 = scmp.eq.s32.totalorder %s85, 0
      %p184 = por %p182, %p183
      %p185 = scmp.ne.s32.totalorder %s171, %s172
      %p186 = scmp.eq.s32.totalorder %s86, 1
      %p187 = por %p185, %p186
      %p189 = scmp.ne.s32.totalorder %s172, %s188
      %p190 = scmp.eq.s32.totalorder %s86, 0
      %p191 = por %p189, %p190
      %s193 = sadd.s32 %s192, 1
      %p196 = scmp.eq.s32.totalorder %s80, 1
      %p197 = scmp.ne.s32.totalorder %s192, %s194
      %p198 = scmp.eq.s32.totalorder %s80, 0
      %p199 = por %p197, %p198
      %p200 = scmp.ne.s32.totalorder %s192, %s194
      %p201 = scmp.eq.s32.totalorder %s85, 1
      %p202 = por %p200, %p201
      %p203 = scmp.ne.s32.totalorder %s194, %s195
      %p204 = scmp.eq.s32.totalorder %s85, 0
      %p205 = por %p203, %p204
      %p206 = scmp.ne.s32.totalorder %s194, %s195
      %p207 = scmp.eq.s32.totalorder %s86, 1
      %p208 = por %p206, %p207
      %p210 = scmp.ne.s32.totalorder %s195, %s209
      %p211 = scmp.eq.s32.totalorder %s86, 0
      %p212 = por %p210, %p211
      %s214 = sadd.s32 %s213, 1
      %p217 = scmp.eq.s32.totalorder %s80, 1
      %p218 = scmp.ne.s32.totalorder %s213, %s215
      %p219 = scmp.eq.s32.totalorder %s80, 0
      %p220 = por %p218, %p219
      %p221 = scmp.ne.s32.totalorder %s213, %s215
      %p222 = scmp.eq.s32.totalorder %s85, 1
      %p223 = por %p221, %p222
      %p224 = scmp.ne.s32.totalorder %s215, %s216
      %p225 = scmp.eq.s32.totalorder %s85, 0
      %p226 = por %p224, %p225
      %p227 = scmp.ne.s32.totalorder %s215, %s216
      %p228 = scmp.eq.s32.totalorder %s86, 1
      %p229 = por %p227, %p228
      %p231 = scmp.ne.s32.totalorder %s216, %s230
      %p232 = scmp.eq.s32.totalorder %s86, 0
      %p233 = por %p231, %p232
      %s235 = sadd.s32 %s234, 1
      %p238 = scmp.eq.s32.totalorder %s80, 1
      %p239 = scmp.ne.s32.totalorder %s234, %s236
      %p240 = scmp.eq.s32.totalorder %s80, 0
      %p241 = por %p239, %p240
      %p242 = scmp.ne.s32.totalorder %s234, %s236
      %p243 = scmp.eq.s32.totalorder %s85, 1
      %p244 = por %p242, %p243
      %p245 = scmp.ne.s32.totalorder %s236, %s237
      %p246 = scmp.eq.s32.totalorder %s85, 0
      %p247 = por %p245, %p246
      %p248 = scmp.ne.s32.totalorder %s236, %s237
      %p249 = scmp.eq.s32.totalorder %s86, 1
      %p250 = por %p248, %p249
      %p252 = scmp.ne.s32.totalorder %s237, %s251
      %p253 = scmp.eq.s32.totalorder %s86, 0
      %p254 = por %p252, %p253
      %s256 = sadd.s32 %s255, 1
      %p259 = scmp.eq.s32.totalorder %s80, 1
      %p260 = scmp.ne.s32.totalorder %s255, %s257
      %p261 = scmp.eq.s32.totalorder %s80, 0
      %p262 = por %p260, %p261
      %p263 = scmp.ne.s32.totalorder %s255, %s257
      %p264 = scmp.eq.s32.totalorder %s85, 1
      %p265 = por %p263, %p264
      %p266 = scmp.ne.s32.totalorder %s257, %s258
      %p267 = scmp.eq.s32.totalorder %s85, 0
      %p268 = por %p266, %p267
      %p269 = scmp.ne.s32.totalorder %s257, %s258
      %p270 = scmp.eq.s32.totalorder %s86, 1
      %p271 = por %p269, %p270
      %p273 = scmp.ne.s32.totalorder %s258, %s272
      %p274 = scmp.eq.s32.totalorder %s86, 0
      %p275 = por %p273, %p274
      %s277 = sadd.s32 %s276, 1
      %p280 = scmp.eq.s32.totalorder %s80, 1
      %p281 = scmp.ne.s32.totalorder %s276, %s278
      %p282 = scmp.eq.s32.totalorder %s80, 0
      %p283 = por %p281, %p282
      %p284 = scmp.ne.s32.totalorder %s276, %s278
      %p285 = scmp.eq.s32.totalorder %s85, 1
      %p286 = por %p284, %p285
      %p287 = scmp.ne.s32.totalorder %s278, %s279
      %p288 = scmp.eq.s32.totalorder %s85, 0
      %p289 = por %p287, %p288
      %p290 = scmp.ne.s32.totalorder %s278, %s279
      %p291 = scmp.eq.s32.totalorder %s86, 1
      %p292 = por %p290, %p291
      %p294 = scmp.ne.s32.totalorder %s279, %s293
      %p295 = scmp.eq.s32.totalorder %s86, 0
      %p296 = por %p294, %p295
      %s298 = sadd.s32 %s297, 1
      %p301 = scmp.eq.s32.totalorder %s80, 1
      %p302 = scmp.ne.s32.totalorder %s297, %s299
      %p303 = scmp.eq.s32.totalorder %s80, 0
      %p304 = por %p302, %p303
      %p305 = scmp.ne.s32.totalorder %s297, %s299
      %p306 = scmp.eq.s32.totalorder %s85, 1
      %p307 = por %p305, %p306
      %p308 = scmp.ne.s32.totalorder %s299, %s300
      %p309 = scmp.eq.s32.totalorder %s85, 0
      %p310 = por %p308, %p309
      %p311 = scmp.ne.s32.totalorder %s299, %s300
      %p312 = scmp.eq.s32.totalorder %s86, 1
      %p313 = por %p311, %p312
      %p315 = scmp.ne.s32.totalorder %s300, %s314
      %p316 = scmp.eq.s32.totalorder %s86, 0
      %p317 = por %p315, %p316
      %s319 = sadd.s32 %s318, 1
      %p322 = scmp.eq.s32.totalorder %s80, 1
      %p323 = scmp.ne.s32.totalorder %s318, %s320
      %p324 = scmp.eq.s32.totalorder %s80, 0
      %p325 = por %p323, %p324
      %p326 = scmp.ne.s32.totalorder %s318, %s320
      %p327 = scmp.eq.s32.totalorder %s85, 1
      %p328 = por %p326, %p327
      %p329 = scmp.ne.s32.totalorder %s320, %s321
      %p330 = scmp.eq.s32.totalorder %s85, 0
      %p331 = por %p329, %p330
      %p332 = scmp.ne.s32.totalorder %s320, %s321
      %p333 = scmp.eq.s32.totalorder %s86, 1
      %p334 = por %p332, %p333
      %p336 = scmp.ne.s32.totalorder %s321, %s335
      %p337 = scmp.eq.s32.totalorder %s86, 0
      %p338 = por %p336, %p337
      %s340 = sadd.s32 %s339, 1
      %p343 = scmp.eq.s32.totalorder %s80, 1
      %p344 = scmp.ne.s32.totalorder %s339, %s341
      %p345 = scmp.eq.s32.totalorder %s80, 0
      %p346 = por %p344, %p345
      %p347 = scmp.ne.s32.totalorder %s339, %s341
      %p348 = scmp.eq.s32.totalorder %s85, 1
      %p349 = por %p347, %p348
      %p350 = scmp.ne.s32.totalorder %s341, %s342
      %p351 = scmp.eq.s32.totalorder %s85, 0
      %p352 = por %p350, %p351
      %p353 = scmp.ne.s32.totalorder %s341, %s342
      %p354 = scmp.eq.s32.totalorder %s86, 1
      %p355 = por %p353, %p354
      %p357 = scmp.ne.s32.totalorder %s342, %s356
      %p358 = scmp.eq.s32.totalorder %s86, 0
      %p359 = por %p357, %p358
      %s361 = sadd.s32 %s360, 1
      %p364 = scmp.eq.s32.totalorder %s80, 1
      %p365 = scmp.ne.s32.totalorder %s360, %s362
      %p366 = scmp.eq.s32.totalorder %s80, 0
      %p367 = por %p365, %p366
      %p368 = scmp.ne.s32.totalorder %s360, %s362
      %p369 = scmp.eq.s32.totalorder %s85, 1
      %p370 = por %p368, %p369
      %p371 = scmp.ne.s32.totalorder %s362, %s363
      %p372 = scmp.eq.s32.totalorder %s85, 0
      %p373 = por %p371, %p372
      %p374 = scmp.ne.s32.totalorder %s362, %s363
      %p375 = scmp.eq.s32.totalorder %s86, 1
      %p376 = por %p374, %p375
      %p378 = scmp.ne.s32.totalorder %s363, %s377
      %p379 = scmp.eq.s32.totalorder %s86, 0
      %p380 = por %p378, %p379
      %s382 = sadd.s32 %s381, 1
      %p385 = scmp.eq.s32.totalorder %s80, 1
      %p386 = scmp.ne.s32.totalorder %s381, %s383
      %p387 = scmp.eq.s32.totalorder %s80, 0
      %p388 = por %p386, %p387
      %p389 = scmp.ne.s32.totalorder %s381, %s383
      %p390 = scmp.eq.s32.totalorder %s85, 1
      %p391 = por %p389, %p390
      %p392 = scmp.ne.s32.totalorder %s383, %s384
      %p393 = scmp.eq.s32.totalorder %s85, 0
      %p394 = por %p392, %p393
      %p395 = scmp.ne.s32.totalorder %s383, %s384
      %p396 = scmp.eq.s32.totalorder %s86, 1
      %p397 = por %p395, %p396
      %p399 = scmp.ne.s32.totalorder %s384, %s398
      %p400 = scmp.eq.s32.totalorder %s86, 0
      %p401 = por %p399, %p400
      %s403 = sadd.s32 %s402, 1
      %p406 = scmp.eq.s32.totalorder %s80, 1
      %p407 = scmp.ne.s32.totalorder %s402, %s404
      %p408 = scmp.eq.s32.totalorder %s80, 0
      %p409 = por %p407, %p408
      %p410 = scmp.ne.s32.totalorder %s402, %s404
      %p411 = scmp.eq.s32.totalorder %s85, 1
      %p412 = por %p410, %p411
      %p413 = scmp.ne.s32.totalorder %s404, %s405
      %p414 = scmp.eq.s32.totalorder %s85, 0
      %p415 = por %p413, %p414
      %p416 = scmp.ne.s32.totalorder %s404, %s405
      %p417 = scmp.eq.s32.totalorder %s86, 1
      %p418 = por %p416, %p417
      %p420 = scmp.ne.s32.totalorder %s405, %s419
      %p421 = scmp.eq.s32.totalorder %s86, 0
      %p422 = por %p420, %p421
      %s424 = sadd.s32 %s423, 1
      %p427 = scmp.eq.s32.totalorder %s80, 1
      %p428 = scmp.ne.s32.totalorder %s423, %s425
      %p429 = scmp.eq.s32.totalorder %s80, 0
      %p430 = por %p428, %p429
      %p431 = scmp.ne.s32.totalorder %s423, %s425
      %p432 = scmp.eq.s32.totalorder %s85, 1
      %p433 = por %p431, %p432
      %p434 = scmp.ne.s32.totalorder %s425, %s426
      %p435 = scmp.eq.s32.totalorder %s85, 0
      %p436 = por %p434, %p435
      %p437 = scmp.ne.s32.totalorder %s425, %s426
      %p438 = scmp.eq.s32.totalorder %s86, 1
      %p439 = por %p437, %p438
      %p441 = scmp.ne.s32.totalorder %s426, %s440
      %p442 = scmp.eq.s32.totalorder %s86, 0
      %p443 = por %p441, %p442
      %s445 = sadd.s32 %s444, 1
      %p448 = scmp.eq.s32.totalorder %s80, 1
      %p449 = scmp.ne.s32.totalorder %s444, %s446
      %p450 = scmp.eq.s32.totalorder %s80, 0
      %p451 = por %p449, %p450
      %p452 = scmp.ne.s32.totalorder %s444, %s446
      %p453 = scmp.eq.s32.totalorder %s85, 1
      %p454 = por %p452, %p453
      %p455 = scmp.ne.s32.totalorder %s446, %s447
      %p456 = scmp.eq.s32.totalorder %s85, 0
      %p457 = por %p455, %p456
      %p458 = scmp.ne.s32.totalorder %s446, %s447
      %p459 = scmp.eq.s32.totalorder %s86, 1
      %p460 = por %p458, %p459
      %p462 = scmp.ne.s32.totalorder %s447, %s461
      %p463 = scmp.eq.s32.totalorder %s86, 0
      %p464 = por %p462, %p463
      %s466 = sadd.s32 %s465, 1
      %p469 = scmp.eq.s32.totalorder %s80, 1
      %p470 = scmp.ne.s32.totalorder %s465, %s467
      %p471 = scmp.eq.s32.totalorder %s80, 0
      %p472 = por %p470, %p471
      %p473 = scmp.ne.s32.totalorder %s465, %s467
      %p474 = scmp.eq.s32.totalorder %s85, 1
      %p475 = por %p473, %p474
      %p476 = scmp.ne.s32.totalorder %s467, %s468
      %p477 = scmp.eq.s32.totalorder %s85, 0
      %p478 = por %p476, %p477
      %p479 = scmp.ne.s32.totalorder %s467, %s468
      %p480 = scmp.eq.s32.totalorder %s86, 1
      %p481 = por %p479, %p480
      %p483 = scmp.ne.s32.totalorder %s468, %s482
      %p484 = scmp.eq.s32.totalorder %s86, 0
      %p485 = por %p483, %p484
      %s487 = sadd.s32 %s486, 1
      %p490 = scmp.eq.s32.totalorder %s80, 1
      %p491 = scmp.ne.s32.totalorder %s486, %s488
      %p492 = scmp.eq.s32.totalorder %s80, 0
      %p493 = por %p491, %p492
      %p494 = scmp.ne.s32.totalorder %s486, %s488
      %p495 = scmp.eq.s32.totalorder %s85, 1
      %p496 = por %p494, %p495
      %p497 = scmp.ne.s32.totalorder %s488, %s489
      %p498 = scmp.eq.s32.totalorder %s85, 0
      %p499 = por %p497, %p498
      %p500 = scmp.ne.s32.totalorder %s488, %s489
      %p501 = scmp.eq.s32.totalorder %s86, 1
      %p502 = por %p500, %p501
      %p504 = scmp.ne.s32.totalorder %s489, %s503
      %p505 = scmp.eq.s32.totalorder %s86, 0
      %p506 = por %p504, %p505
      %s508 = sadd.s32 %s507, 1
      %p511 = scmp.eq.s32.totalorder %s80, 1
      %p512 = scmp.ne.s32.totalorder %s507, %s509
      %p513 = scmp.eq.s32.totalorder %s80, 0
      %p514 = por %p512, %p513
      %p515 = scmp.ne.s32.totalorder %s507, %s509
      %p516 = scmp.eq.s32.totalorder %s85, 1
      %p517 = por %p515, %p516
      %p518 = scmp.ne.s32.totalorder %s509, %s510
      %p519 = scmp.eq.s32.totalorder %s85, 0
      %p520 = por %p518, %p519
      %p521 = scmp.ne.s32.totalorder %s509, %s510
      %p522 = scmp.eq.s32.totalorder %s86, 1
      %p523 = por %p521, %p522
      %p525 = scmp.ne.s32.totalorder %s510, %s524
      %p526 = scmp.eq.s32.totalorder %s86, 0
      %p527 = por %p525, %p526
      %s529 = sadd.s32 %s528, 1
      %p532 = scmp.eq.s32.totalorder %s80, 1
      %p533 = scmp.ne.s32.totalorder %s528, %s530
      %p534 = scmp.eq.s32.totalorder %s80, 0
      %p535 = por %p533, %p534
      %p536 = scmp.ne.s32.totalorder %s528, %s530
      %p537 = scmp.eq.s32.totalorder %s85, 1
      %p538 = por %p536, %p537
      %p539 = scmp.ne.s32.totalorder %s530, %s531
      %p540 = scmp.eq.s32.totalorder %s85, 0
      %p541 = por %p539, %p540
      %p542 = scmp.ne.s32.totalorder %s530, %s531
      %p543 = scmp.eq.s32.totalorder %s86, 1
      %p544 = por %p542, %p543
      %p546 = scmp.ne.s32.totalorder %s531, %s545
      %p547 = scmp.eq.s32.totalorder %s86, 0
      %p548 = por %p546, %p547
      %s550 = sadd.s32 %s549, 1
      %p553 = scmp.eq.s32.totalorder %s80, 1
      %p554 = scmp.ne.s32.totalorder %s549, %s551
      %p555 = scmp.eq.s32.totalorder %s80, 0
      %p556 = por %p554, %p555
      %p557 = scmp.ne.s32.totalorder %s549, %s551
      %p558 = scmp.eq.s32.totalorder %s85, 1
      %p559 = por %p557, %p558
      %p560 = scmp.ne.s32.totalorder %s551, %s552
      %p561 = scmp.eq.s32.totalorder %s85, 0
      %p562 = por %p560, %p561
      %p563 = scmp.ne.s32.totalorder %s551, %s552
      %p564 = scmp.eq.s32.totalorder %s86, 1
      %p565 = por %p563, %p564
      %p567 = scmp.ne.s32.totalorder %s552, %s566
      %p568 = scmp.eq.s32.totalorder %s86, 0
      %p569 = por %p567, %p568
      %s571 = sadd.s32 %s570, 1
      %p574 = scmp.eq.s32.totalorder %s80, 1
      %p575 = scmp.ne.s32.totalorder %s570, %s572
      %p576 = scmp.eq.s32.totalorder %s80, 0
      %p577 = por %p575, %p576
      %p578 = scmp.ne.s32.totalorder %s570, %s572
      %p579 = scmp.eq.s32.totalorder %s85, 1
      %p580 = por %p578, %p579
      %p581 = scmp.ne.s32.totalorder %s572, %s573
      %p582 = scmp.eq.s32.totalorder %s85, 0
      %p583 = por %p581, %p582
      %p584 = scmp.ne.s32.totalorder %s572, %s573
      %p585 = scmp.eq.s32.totalorder %s86, 1
      %p586 = por %p584, %p585
      %p588 = scmp.ne.s32.totalorder %s573, %s587
      %p589 = scmp.eq.s32.totalorder %s86, 0
      %p590 = por %p588, %p589
      %s592 = sadd.s32 %s591, 1
      %p595 = scmp.eq.s32.totalorder %s80, 1
      %p596 = scmp.ne.s32.totalorder %s591, %s593
      %p597 = scmp.eq.s32.totalorder %s80, 0
      %p598 = por %p596, %p597
      %p599 = scmp.ne.s32.totalorder %s591, %s593
      %p600 = scmp.eq.s32.totalorder %s85, 1
      %p601 = por %p599, %p600
      %p602 = scmp.ne.s32.totalorder %s593, %s594
      %p603 = scmp.eq.s32.totalorder %s85, 0
      %p604 = por %p602, %p603
      %p605 = scmp.ne.s32.totalorder %s593, %s594
      %p606 = scmp.eq.s32.totalorder %s86, 1
      %p607 = por %p605, %p606
      %p609 = scmp.ne.s32.totalorder %s594, %s608
      %p610 = scmp.eq.s32.totalorder %s86, 0
      %p611 = por %p609, %p610
      %s613 = sadd.s32 %s612, 1
      %p616 = scmp.eq.s32.totalorder %s80, 1
      %p617 = scmp.ne.s32.totalorder %s612, %s614
      %p618 = scmp.eq.s32.totalorder %s80, 0
      %p619 = por %p617, %p618
      %p620 = scmp.ne.s32.totalorder %s612, %s614
      %p621 = scmp.eq.s32.totalorder %s85, 1
      %p622 = por %p620, %p621
      %p623 = scmp.ne.s32.totalorder %s614, %s615
      %p624 = scmp.eq.s32.totalorder %s85, 0
      %p625 = por %p623, %p624
      %p626 = scmp.ne.s32.totalorder %s614, %s615
      %p627 = scmp.eq.s32.totalorder %s86, 1
      %p628 = por %p626, %p627
      %p630 = scmp.ne.s32.totalorder %s615, %s629
      %p631 = scmp.eq.s32.totalorder %s86, 0
      %p632 = por %p630, %p631
      %s634 = sadd.s32 %s633, 1
      %p637 = scmp.eq.s32.totalorder %s80, 1
      %p638 = scmp.ne.s32.totalorder %s633, %s635
      %p639 = scmp.eq.s32.totalorder %s80, 0
      %p640 = por %p638, %p639
      %p641 = scmp.ne.s32.totalorder %s633, %s635
      %p642 = scmp.eq.s32.totalorder %s85, 1
      %p643 = por %p641, %p642
      %p644 = scmp.ne.s32.totalorder %s635, %s636
      %p645 = scmp.eq.s32.totalorder %s85, 0
      %p646 = por %p644, %p645
      %p647 = scmp.ne.s32.totalorder %s635, %s636
      %p648 = scmp.eq.s32.totalorder %s86, 1
      %p649 = por %p647, %p648
      %p651 = scmp.ne.s32.totalorder %s636, %s650
      %p652 = scmp.eq.s32.totalorder %s86, 0
      %p653 = por %p651, %p652
      %s655 = sadd.s32 %s654, 1
      %p658 = scmp.eq.s32.totalorder %s80, 1
      %p659 = scmp.ne.s32.totalorder %s654, %s656
      %p660 = scmp.eq.s32.totalorder %s80, 0
      %p661 = por %p659, %p660
      %p662 = scmp.ne.s32.totalorder %s654, %s656
      %p663 = scmp.eq.s32.totalorder %s85, 1
      %p664 = por %p662, %p663
      %p665 = scmp.ne.s32.totalorder %s656, %s657
      %p666 = scmp.eq.s32.totalorder %s85, 0
      %p667 = por %p665, %p666
      %p668 = scmp.ne.s32.totalorder %s656, %s657
      %p669 = scmp.eq.s32.totalorder %s86, 1
      %p670 = por %p668, %p669
      %p672 = scmp.ne.s32.totalorder %s657, %s671
      %p673 = scmp.eq.s32.totalorder %s86, 0
      %p674 = por %p672, %p673
      %s676 = sadd.s32 %s675, 1
      %p679 = scmp.eq.s32.totalorder %s80, 1
      %p680 = scmp.ne.s32.totalorder %s675, %s677
      %p681 = scmp.eq.s32.totalorder %s80, 0
      %p682 = por %p680, %p681
      %p683 = scmp.ne.s32.totalorder %s675, %s677
      %p684 = scmp.eq.s32.totalorder %s85, 1
      %p685 = por %p683, %p684
      %p686 = scmp.ne.s32.totalorder %s677, %s678
      %p687 = scmp.eq.s32.totalorder %s85, 0
      %p688 = por %p686, %p687
      %p689 = scmp.ne.s32.totalorder %s677, %s678
      %p690 = scmp.eq.s32.totalorder %s86, 1
      %p691 = por %p689, %p690
      %p693 = scmp.ne.s32.totalorder %s678, %s692
      %p694 = scmp.eq.s32.totalorder %s86, 0
      %p695 = por %p693, %p694
      %s697 = sadd.s32 %s696, 1
      %p700 = scmp.eq.s32.totalorder %s80, 1
      %p701 = scmp.ne.s32.totalorder %s696, %s698
      %p702 = scmp.eq.s32.totalorder %s80, 0
      %p703 = por %p701, %p702
      %p704 = scmp.ne.s32.totalorder %s696, %s698
      %p705 = scmp.eq.s32.totalorder %s85, 1
      %p706 = por %p704, %p705
      %p707 = scmp.ne.s32.totalorder %s698, %s699
      %p708 = scmp.eq.s32.totalorder %s85, 0
      %p709 = por %p707, %p708
      %p710 = scmp.ne.s32.totalorder %s698, %s699
      %p711 = scmp.eq.s32.totalorder %s86, 1
      %p712 = por %p710, %p711
      %p714 = scmp.ne.s32.totalorder %s699, %s713
      %p715 = scmp.eq.s32.totalorder %s86, 0
      %p716 = por %p714, %p715
      %s718 = sadd.s32 %s717, 1
      %p721 = scmp.eq.s32.totalorder %s80, 1
      %p722 = scmp.ne.s32.totalorder %s717, %s719
      %p723 = scmp.eq.s32.totalorder %s80, 0
      %p724 = por %p722, %p723
      %p725 = scmp.ne.s32.totalorder %s717, %s719
      %p726 = scmp.eq.s32.totalorder %s85, 1
      %p727 = por %p725, %p726
      %p728 = scmp.ne.s32.totalorder %s719, %s720
      %p729 = scmp.eq.s32.totalorder %s85, 0
      %p730 = por %p728, %p729
      %p731 = scmp.ne.s32.totalorder %s719, %s720
      %p732 = scmp.eq.s32.totalorder %s86, 1
      %p733 = por %p731, %p732
      %p735 = scmp.ne.s32.totalorder %s720, %s734
      %p736 = scmp.eq.s32.totalorder %s86, 0
      %p737 = por %p735, %p736
      %s738 = ssub.s32 %s80, %s87
      %p739 = scmp.eq.s32.totalorder %s738, 0
      %s741 = sadd.s32 %s740, 1
      %s742 = scalar_select %p739, %s740, %s741
      %p745 = pneg %p739
      %p746 = scmp.eq.s32.totalorder %s80, 1
      %p747 = por %p745, %p746
      %p748 = scmp.ne.s32.totalorder %s740, %s743
      %p749 = scmp.eq.s32.totalorder %s80, 0
      %p750 = por %p748, %p749
      %p751 = scmp.ne.s32.totalorder %s740, %s743
      %p752 = scmp.eq.s32.totalorder %s85, 1
      %p753 = por %p751, %p752
      %p754 = scmp.ne.s32.totalorder %s743, %s744
      %p755 = scmp.eq.s32.totalorder %s85, 0
      %p756 = por %p754, %p755
      %p757 = scmp.ne.s32.totalorder %s743, %s744
      %p758 = scmp.eq.s32.totalorder %s86, 1
      %p759 = por %p757, %p758
      %p761 = scmp.ne.s32.totalorder %s744, %s760
      %p762 = scmp.eq.s32.totalorder %s86, 0
      %p763 = por %p761, %p762
      %s764 = ssub.s32 %s80, %s87
      %p765 = scmp.eq.s32.totalorder %s764, 0
      %s767 = sadd.s32 %s766, 1
      %s768 = scalar_select %p765, %s766, %s767
      %p771 = pneg %p765
      %p772 = scmp.eq.s32.totalorder %s80, 1
      %p773 = por %p771, %p772
      %p774 = scmp.ne.s32.totalorder %s766, %s769
      %p775 = scmp.eq.s32.totalorder %s80, 0
      %p776 = por %p774, %p775
      %p777 = scmp.ne.s32.totalorder %s766, %s769
      %p778 = scmp.eq.s32.totalorder %s85, 1
      %p779 = por %p777, %p778
      %p780 = scmp.ne.s32.totalorder %s769, %s770
      %p781 = scmp.eq.s32.totalorder %s85, 0
      %p782 = por %p780, %p781
      %p783 = scmp.ne.s32.totalorder %s769, %s770
      %p784 = scmp.eq.s32.totalorder %s86, 1
      %p785 = por %p783, %p784
      %p787 = scmp.ne.s32.totalorder %s770, %s786
      %p788 = scmp.eq.s32.totalorder %s86, 0
      %p789 = por %p787, %p788
      %p790 = scmp.le.s32.totalorder 1, %s80
      %p791 = scmp.lt.s32.totalorder %s80, 3
      %p792 = pnand %p790, %p791
      %p793 = pneg %p792
      // Predicated region
      $region9: #{decoder_layer_forward.1} parent=5 // pred_check
        _
      $region10: #{decoder_layer_forward.1} parent=5 // pred_check_branch
        %795 = sbr.rel (%p792) target = $region12
      $region11: #{decoder_layer_forward.1} parent=5 // pred_region
        %s796 = ssub.s32 %s80, 1
        // Predicated region
        $region13: #{decoder_layer_forward.1} parent=11 // pred_check
          %p797 = pneg %p205
        $region14: #{decoder_layer_forward.1} parent=11 // pred_check_branch
          %799 = sbr.rel (%p797) target = $region16
        $region15: #{decoder_layer_forward.1} parent=11 // pred_region
          _
        $region16: #{decoder_layer_forward.1} parent=11 // pred_fallthru
          _
        // Predicated region
        $region17: #{decoder_layer_forward.1} parent=11 // pred_check
          %p800 = pneg %p226
        $region18: #{decoder_layer_forward.1} parent=11 // pred_check_branch
          %802 = sbr.rel (%p800) target = $region20
        $region19: #{decoder_layer_forward.1} parent=11 // pred_region
          _
        $region20: #{decoder_layer_forward.1} parent=11 // pred_fallthru
          _
        // Predicated region
        $region21: #{decoder_layer_forward.1} parent=11 // pred_check
          %p803 = pneg %p247
        $region22: #{decoder_layer_forward.1} parent=11 // pred_check_branch
          %805 = sbr.rel (%p803) target = $region24
        $region23: #{decoder_layer_forward.1} parent=11 // pred_region
          _
        $region24: #{decoder_layer_forward.1} parent=11 // pred_fallthru
          _
        // Predicated region
        $region25: #{decoder_layer_forward.1} parent=11 // pred_check
          %p806 = pneg %p268
        $region26: #{decoder_layer_forward.1} parent=11 // pred_check_branch
          %808 = sbr.rel (%p806) target = $region28
        $region27: #{decoder_layer_forward.1} parent=11 // pred_region
          _
        $region28: #{decoder_layer_forward.1} parent=11 // pred_fallthru
          _
        // Predicated region
        $region29: #{decoder_layer_forward.1} parent=11 // pred_check
          %p809 = pneg %p289
        $region30: #{decoder_layer_forward.1} parent=11 // pred_check_branch
          %811 = sbr.rel (%p809) target = $region32
        $region31: #{decoder_layer_forward.1} parent=11 // pred_region
          _
        $region32: #{decoder_layer_forward.1} parent=11 // pred_fallthru
          _
        // Predicated region
        $region33: #{decoder_layer_forward.1} parent=11 // pred_check
          %p812 = pneg %p310
        $region34: #{decoder_layer_forward.1} parent=11 // pred_check_branch
          %814 = sbr.rel (%p812) target = $region36
        $region35: #{decoder_layer_forward.1} parent=11 // pred_region
          _
        $region36: #{decoder_layer_forward.1} parent=11 // pred_fallthru
          _
        // Predicated region
        $region37: #{decoder_layer_forward.1} parent=11 // pred_check
          %p815 = pneg %p331
        $region38: #{decoder_layer_forward.1} parent=11 // pred_check_branch
          %817 = sbr.rel (%p815) target = $region40
        $region39: #{decoder_layer_forward.1} parent=11 // pred_region
          _
        $region40: #{decoder_layer_forward.1} parent=11 // pred_fallthru
          _
        // Predicated region
        $region41: #{decoder_layer_forward.1} parent=11 // pred_check
          %p818 = pneg %p352
        $region42: #{decoder_layer_forward.1} parent=11 // pred_check_branch
          %820 = sbr.rel (%p818) target = $region44
        $region43: #{decoder_layer_forward.1} parent=11 // pred_region
          _
        $region44: #{decoder_layer_forward.1} parent=11 // pred_fallthru
          _
        // Predicated region
        $region45: #{decoder_layer_forward.1} parent=11 // pred_check
          %p821 = pneg %p373
        $region46: #{decoder_layer_forward.1} parent=11 // pred_check_branch
          %823 = sbr.rel (%p821) target = $region48
        $region47: #{decoder_layer_forward.1} parent=11 // pred_region
          _
        $region48: #{decoder_layer_forward.1} parent=11 // pred_fallthru
          _
        // Predicated region
        $region49: #{decoder_layer_forward.1} parent=11 // pred_check
          %p824 = pneg %p394
        $region50: #{decoder_layer_forward.1} parent=11 // pred_check_branch
          %826 = sbr.rel (%p824) target = $region52
        $region51: #{decoder_layer_forward.1} parent=11 // pred_region
          _
        $region52: #{decoder_layer_forward.1} parent=11 // pred_fallthru
          _
        // Predicated region
        $region53: #{decoder_layer_forward.1} parent=11 // pred_check
          %p827 = pneg %p415
        $region54: #{decoder_layer_forward.1} parent=11 // pred_check_branch
          %829 = sbr.rel (%p827) target = $region56
        $region55: #{decoder_layer_forward.1} parent=11 // pred_region
          %s831 = ssub.s32 256, 256
          %832 = vsyncadd [#allocation3], %s831
          %s833 = sshll.u32 [#allocation2], 4
          %s834 = int_to_ptr.vmem [resolvable:$true] %s833
          %839 = dma.hbm_to_vmem [thread:$0]  %s29, 256, %s834, [#allocation3], 64, 64, 4
        $region56: #{decoder_layer_forward.1} parent=11 // pred_fallthru
          _
        // Predicated region
        $region57: #{decoder_layer_forward.1} parent=11 // pred_check
          %p840 = pneg %p436
        $region58: #{decoder_layer_forward.1} parent=11 // pred_check_branch
          %842 = sbr.rel (%p840) target = $region60
        $region59: #{decoder_layer_forward.1} parent=11 // pred_region
          %s844 = ssub.s32 256, 256
          %845 = vsyncadd [#allocation6], %s844
          %s846 = sshll.u32 [#allocation5], 4
          %s847 = int_to_ptr.vmem [resolvable:$true] %s846
          %852 = dma.hbm_to_vmem [thread:$0]  %s31, 256, %s847, [#allocation6], 64, 64, 4
        $region60: #{decoder_layer_forward.1} parent=11 // pred_fallthru
          _
        // Predicated region
        $region61: #{decoder_layer_forward.1} parent=11 // pred_check
          %p853 = pneg %p457
        $region62: #{decoder_layer_forward.1} parent=11 // pred_check_branch
          %855 = sbr.rel (%p853) target = $region64
        $region63: #{decoder_layer_forward.1} parent=11 // pred_region
          %s857 = ssub.s32 256, 256
          %858 = vsyncadd [#allocation6], %s857
          %s859 = sshll.u32 [#allocation7], 4
          %s860 = int_to_ptr.vmem [resolvable:$true] %s859
          %865 = dma.hbm_to_vmem [thread:$0]  %s33, 256, %s860, [#allocation6], 64, 64, 4
        $region64: #{decoder_layer_forward.1} parent=11 // pred_fallthru
          _
        // Predicated region
        $region65: #{decoder_layer_forward.1} parent=11 // pred_check
          %p866 = pneg %p478
        $region66: #{decoder_layer_forward.1} parent=11 // pred_check_branch
          %868 = sbr.rel (%p866) target = $region68
        $region67: #{decoder_layer_forward.1} parent=11 // pred_region
          %s870 = ssub.s32 256, 256
          %871 = vsyncadd [#allocation9], %s870
          %s872 = sshll.u32 [#allocation8], 4
          %s873 = int_to_ptr.vmem [resolvable:$true] %s872
          %878 = dma.hbm_to_vmem [thread:$0]  %s35, 256, %s873, [#allocation9], 64, 64, 4
        $region68: #{decoder_layer_forward.1} parent=11 // pred_fallthru
          _
        // Predicated region
        $region69: #{decoder_layer_forward.1} parent=11 // pred_check
          %p879 = pneg %p499
        $region70: #{decoder_layer_forward.1} parent=11 // pred_check_branch
          %881 = sbr.rel (%p879) target = $region72
        $region71: #{decoder_layer_forward.1} parent=11 // pred_region
          _
        $region72: #{decoder_layer_forward.1} parent=11 // pred_fallthru
          _
        // Predicated region
        $region73: #{decoder_layer_forward.1} parent=11 // pred_check
          %p882 = pneg %p520
        $region74: #{decoder_layer_forward.1} parent=11 // pred_check_branch
          %884 = sbr.rel (%p882) target = $region76
        $region75: #{decoder_layer_forward.1} parent=11 // pred_region
          _
        $region76: #{decoder_layer_forward.1} parent=11 // pred_fallthru
          _
        // Predicated region
        $region77: #{decoder_layer_forward.1} parent=11 // pred_check
          %p885 = pneg %p541
        $region78: #{decoder_layer_forward.1} parent=11 // pred_check_branch
          %887 = sbr.rel (%p885) target = $region80
        $region79: #{decoder_layer_forward.1} parent=11 // pred_region
          _
        $region80: #{decoder_layer_forward.1} parent=11 // pred_fallthru
          _
        // Predicated region
        $region81: #{decoder_layer_forward.1} parent=11 // pred_check
          %p888 = pneg %p562
        $region82: #{decoder_layer_forward.1} parent=11 // pred_check_branch
          %890 = sbr.rel (%p888) target = $region84
        $region83: #{decoder_layer_forward.1} parent=11 // pred_region
          _
        $region84: #{decoder_layer_forward.1} parent=11 // pred_fallthru
          _
        // Predicated region
        $region85: #{decoder_layer_forward.1} parent=11 // pred_check
          %p891 = pneg %p583
        $region86: #{decoder_layer_forward.1} parent=11 // pred_check_branch
          %893 = sbr.rel (%p891) target = $region88
        $region87: #{decoder_layer_forward.1} parent=11 // pred_region
          _
        $region88: #{decoder_layer_forward.1} parent=11 // pred_fallthru
          _
        // Predicated region
        $region89: #{decoder_layer_forward.1} parent=11 // pred_check
          %p894 = pneg %p604
        $region90: #{decoder_layer_forward.1} parent=11 // pred_check_branch
          %896 = sbr.rel (%p894) target = $region92
        $region91: #{decoder_layer_forward.1} parent=11 // pred_region
          _
        $region92: #{decoder_layer_forward.1} parent=11 // pred_fallthru
          _
        // Predicated region
        $region93: #{decoder_layer_forward.1} parent=11 // pred_check
          %p897 = pneg %p625
        $region94: #{decoder_layer_forward.1} parent=11 // pred_check_branch
          %899 = sbr.rel (%p897) target = $region96
        $region95: #{decoder_layer_forward.1} parent=11 // pred_region
          %s901 = ssub.s32 256, 256
          %902 = vsyncadd [#allocation9], %s901
          %s903 = sshll.u32 [#allocation10], 4
          %s904 = int_to_ptr.vmem [resolvable:$true] %s903
          %909 = dma.hbm_to_vmem [thread:$0]  %s49, 256, %s904, [#allocation9], 64, 64, 4
        $region96: #{decoder_layer_forward.1} parent=11 // pred_fallthru
          _
        // Predicated region
        $region97: #{decoder_layer_forward.1} parent=11 // pred_check
          %p910 = pneg %p646
        $region98: #{decoder_layer_forward.1} parent=11 // pred_check_branch
          %912 = sbr.rel (%p910) target = $region100
        $region99: #{decoder_layer_forward.1} parent=11 // pred_region
          %s914 = ssub.s32 16, 16
          %915 = vsyncadd [#allocation12], %s914
          %s917 = sshll.u32 [#allocation11], 4
          %s918 = int_to_ptr.vmem [resolvable:$true] %s917
          %920 = dma.hbm_to_vmem [thread:$0]  %s51, 16, %s918, [#allocation12]
        $region100: #{decoder_layer_forward.1} parent=11 // pred_fallthru
          _
        // Predicated region
        $region101: #{decoder_layer_forward.1} parent=11 // pred_check
          %p921 = pneg %p667
        $region102: #{decoder_layer_forward.1} parent=11 // pred_check_branch
          %923 = sbr.rel (%p921) target = $region104
        $region103: #{decoder_layer_forward.1} parent=11 // pred_region
          _
        $region104: #{decoder_layer_forward.1} parent=11 // pred_fallthru
          _
        // Predicated region
        $region105: #{decoder_layer_forward.1} parent=11 // pred_check
          %p924 = pneg %p688
        $region106: #{decoder_layer_forward.1} parent=11 // pred_check_branch
          %926 = sbr.rel (%p924) target = $region108
        $region107: #{decoder_layer_forward.1} parent=11 // pred_region
          %s928 = ssub.s32 16, 16
          %929 = vsyncadd [#allocation12], %s928
          %s931 = sshll.u32 [#allocation13], 4
          %s932 = int_to_ptr.vmem [resolvable:$true] %s931
          %934 = dma.hbm_to_vmem [thread:$0]  %s55, 16, %s932, [#allocation12]
        $region108: #{decoder_layer_forward.1} parent=11 // pred_fallthru
          _
        // Predicated region
        $region109: #{decoder_layer_forward.1} parent=11 // pred_check
          %p935 = pneg %p709
        $region110: #{decoder_layer_forward.1} parent=11 // pred_check_branch
          %937 = sbr.rel (%p935) target = $region112
        $region111: #{decoder_layer_forward.1} parent=11 // pred_region
          _
        $region112: #{decoder_layer_forward.1} parent=11 // pred_fallthru
          _
        // Predicated region
        $region113: #{decoder_layer_forward.1} parent=11 // pred_check
          %p938 = pneg %p730
        $region114: #{decoder_layer_forward.1} parent=11 // pred_check_branch
          %940 = sbr.rel (%p938) target = $region116
        $region115: #{decoder_layer_forward.1} parent=11 // pred_region
          _
        $region116: #{decoder_layer_forward.1} parent=11 // pred_fallthru
          _
      $region12: #{decoder_layer_forward.1} parent=5 // pred_fallthru
        _
      %p941 = scmp.lt.s32.totalorder %s80, 2
      // Predicated region
      $region117: #{decoder_layer_forward.1} parent=5 // pred_check
        %p942 = pneg %p941
      $region118: #{decoder_layer_forward.1} parent=5 // pred_check_branch
        %944 = sbr.rel (%p942) target = $region120
      $region119: #{decoder_layer_forward.1} parent=5 // pred_region
        // Predicated region
        $region121: #{decoder_layer_forward.1} parent=119 // pred_check
          %p945 = pneg %p100
        $region122: #{decoder_layer_forward.1} parent=119 // pred_check_branch
          %947 = sbr.rel (%p945) target = $region124
        $region123: #{decoder_layer_forward.1} parent=119 // pred_region
          %p948 = scmp.lt.s32.totalorder %s80, 1
          %s949 = scalar_select %p948, %s80, 1
          %s950 = smul.addr %s949, 8
          %s951 = scalar_lea.vmem %s1, %s950
        $region124: #{decoder_layer_forward.1} parent=119 // pred_fallthru
          _
        // Predicated region
        $region125: #{decoder_layer_forward.1} parent=119 // pred_check
          %p952 = pneg %p126
        $region126: #{decoder_layer_forward.1} parent=119 // pred_check_branch
          %954 = sbr.rel (%p952) target = $region128
        $region127: #{decoder_layer_forward.1} parent=119 // pred_region
          %p955 = scmp.lt.s32.totalorder %s80, 1
          %s956 = scalar_select %p955, %s80, 1
          %s957 = smul.addr %s956, 2
          %s958 = smul.addr %s957, 8
          %s959 = scalar_lea.vmem %s3, %s958
        $region128: #{decoder_layer_forward.1} parent=119 // pred_fallthru
          _
        // Predicated region
        $region129: #{decoder_layer_forward.1} parent=119 // pred_check
          %p960 = pneg %p152
        $region130: #{decoder_layer_forward.1} parent=119 // pred_check_branch
          %962 = sbr.rel (%p960) target = $region132
        $region131: #{decoder_layer_forward.1} parent=119 // pred_region
          %p963 = scmp.lt.s32.totalorder %s80, 1
          %s964 = scalar_select %p963, %s80, 1
          %s965 = smul.addr %s964, 8
          %s966 = scalar_lea.vmem %s5, %s965
        $region132: #{decoder_layer_forward.1} parent=119 // pred_fallthru
          _
        // Predicated region
        $region133: #{decoder_layer_forward.1} parent=119 // pred_check
          %p967 = pneg %p178
        $region134: #{decoder_layer_forward.1} parent=119 // pred_check_branch
          %969 = sbr.rel (%p967) target = $region136
        $region135: #{decoder_layer_forward.1} parent=119 // pred_region
          %p970 = scmp.lt.s32.totalorder %s80, 1
          %s971 = scalar_select %p970, %s80, 1
          %s972 = smul.addr %s971, 8
          %s973 = scalar_lea.vmem %s7, %s972
        $region136: #{decoder_layer_forward.1} parent=119 // pred_fallthru
          _
      $region120: #{decoder_layer_forward.1} parent=5 // pred_fallthru
        _
      %p974 = scmp.le.s32.totalorder 1, %s80
      %p975 = scmp.lt.s32.totalorder %s80, 3
      %p976 = pnand %p974, %p975
      %p977 = pneg %p976
      // Predicated region
      $region137: #{decoder_layer_forward.1} parent=5 // pred_check
        _
      $region138: #{decoder_layer_forward.1} parent=5 // pred_check_branch
        %979 = sbr.rel (%p976) target = $region140
      $region139: #{decoder_layer_forward.1} parent=5 // pred_region
        %s980 = ssub.s32 %s80, 1
        // Predicated region
        $region141: #{decoder_layer_forward.1} parent=139 // pred_check
          %p981 = pneg %p415
        $region142: #{decoder_layer_forward.1} parent=139 // pred_check_branch
          %983 = sbr.rel (%p981) target = $region144
        $region143: #{decoder_layer_forward.1} parent=139 // pred_region
          %984 = dma.done [#allocation3], 256
        $region144: #{decoder_layer_forward.1} parent=139 // pred_fallthru
          _
        // Predicated region
        $region145: #{decoder_layer_forward.1} parent=139 // pred_check
          %p985 = pneg %p436
        $region146: #{decoder_layer_forward.1} parent=139 // pred_check_branch
          %987 = sbr.rel (%p985) target = $region148
        $region147: #{decoder_layer_forward.1} parent=139 // pred_region
          %988 = dma.done [#allocation6], 256
        $region148: #{decoder_layer_forward.1} parent=139 // pred_fallthru
          _
        // Predicated region
        $region149: #{decoder_layer_forward.1} parent=139 // pred_check
          %p989 = pneg %p457
        $region150: #{decoder_layer_forward.1} parent=139 // pred_check_branch
          %991 = sbr.rel (%p989) target = $region152
        $region151: #{decoder_layer_forward.1} parent=139 // pred_region
          %992 = dma.done [#allocation6], 256
        $region152: #{decoder_layer_forward.1} parent=139 // pred_fallthru
          _
        // Predicated region
        $region153: #{decoder_layer_forward.1} parent=139 // pred_check
          %p993 = pneg %p478
        $region154: #{decoder_layer_forward.1} parent=139 // pred_check_branch
          %995 = sbr.rel (%p993) target = $region156
        $region155: #{decoder_layer_forward.1} parent=139 // pred_region
          %996 = dma.done [#allocation9], 256
        $region156: #{decoder_layer_forward.1} parent=139 // pred_fallthru
          _
        // Predicated region
        $region157: #{decoder_layer_forward.1} parent=139 // pred_check
          %p997 = pneg %p625
        $region158: #{decoder_layer_forward.1} parent=139 // pred_check_branch
          %999 = sbr.rel (%p997) target = $region160
        $region159: #{decoder_layer_forward.1} parent=139 // pred_region
          %1000 = dma.done [#allocation9], 256
        $region160: #{decoder_layer_forward.1} parent=139 // pred_fallthru
          _
        // Predicated region
        $region161: #{decoder_layer_forward.1} parent=139 // pred_check
          %p1001 = pneg %p646
        $region162: #{decoder_layer_forward.1} parent=139 // pred_check_branch
          %1003 = sbr.rel (%p1001) target = $region164
        $region163: #{decoder_layer_forward.1} parent=139 // pred_region
          %1004 = dma.done [#allocation12], 16
        $region164: #{decoder_layer_forward.1} parent=139 // pred_fallthru
          _
        // Predicated region
        $region165: #{decoder_layer_forward.1} parent=139 // pred_check
          %p1005 = pneg %p688
        $region166: #{decoder_layer_forward.1} parent=139 // pred_check_branch
          %1007 = sbr.rel (%p1005) target = $region168
        $region167: #{decoder_layer_forward.1} parent=139 // pred_region
          %1008 = dma.done [#allocation12], 16
        $region168: #{decoder_layer_forward.1} parent=139 // pred_fallthru
          _
        %p1009 = scmp.lt.s32.totalorder %s85, 1
        %s1010 = scalar_select %p1009, %s85, 1
        %s1011 = smul.addr %s1010, 8
        %s1012 = scalar_lea.vmem %s1, %s1011
        %p1013 = pneg %p106
        %p1014 = pneg %p103
        %p1015 = scmp.lt.s32.totalorder %s85, 1
        %s1016 = scalar_select %p1015, %s85, 1
        %s1017 = smul.addr %s1016, 2
        %s1018 = smul.addr %s1017, 8
        %s1019 = scalar_lea.vmem %s3, %s1018
        %p1020 = pneg %p132
        %p1021 = pneg %p129
        %p1022 = scmp.lt.s32.totalorder %s85, 1
        %s1023 = scalar_select %p1022, %s85, 1
        %s1024 = smul.addr %s1023, 8
        %s1025 = scalar_lea.vmem %s5, %s1024
        %p1026 = pneg %p158
        %p1027 = pneg %p155
        %p1028 = scmp.lt.s32.totalorder %s85, 1
        %s1029 = scalar_select %p1028, %s85, 1
        %s1030 = smul.addr %s1029, 8
        %s1031 = scalar_lea.vmem %s7, %s1030
        %p1032 = pneg %p184
        %p1033 = pneg %p181
        %p1034 = pneg %p205
        %p1035 = pneg %p202
        %p1036 = pneg %p226
        %p1037 = pneg %p223
        %p1038 = pneg %p247
        %p1039 = pneg %p244
        %p1040 = pneg %p268
        %p1041 = pneg %p265
        %p1042 = pneg %p289
        %p1043 = pneg %p286
        %p1044 = pneg %p310
        %p1045 = pneg %p307
        %p1046 = pneg %p331
        %p1047 = pneg %p328
        %p1048 = pneg %p352
        %p1049 = pneg %p349
        %p1050 = pneg %p373
        %p1051 = pneg %p370
        %p1052 = pneg %p394
        %p1053 = pneg %p391
        %p1054 = pneg %p415
        %p1055 = pneg %p412
        %p1056 = pneg %p436
        %p1057 = pneg %p433
        %p1058 = pneg %p457
        %p1059 = pneg %p454
        %p1060 = pneg %p478
        %p1061 = pneg %p475
        %p1062 = pneg %p499
        %p1063 = pneg %p496
        %p1064 = pneg %p520
        %p1065 = pneg %p517
        %p1066 = pneg %p541
        %p1067 = pneg %p538
        %p1068 = pneg %p562
        %p1069 = pneg %p559
        %p1070 = pneg %p583
        %p1071 = pneg %p580
        %p1072 = pneg %p604
        %p1073 = pneg %p601
        %p1074 = pneg %p625
        %p1075 = pneg %p622
        %p1076 = pneg %p646
        %p1077 = pneg %p643
        %p1078 = pneg %p667
        %p1079 = pneg %p664
        %p1080 = pneg %p688
        %p1081 = pneg %p685
        %p1082 = pneg %p709
        %p1083 = pneg %p706
        %p1084 = pneg %p730
        %p1085 = pneg %p727
        %p1086 = pneg %p756
        %p1087 = pneg %p753
        %s1088 = sand.u32 %s743, 1
        %s1089 = scalar_lea.sflag [#allocation4], %s1088
        %s1090 = sand.u32 %s743, 1
        %s1091 = smul.addr %s1090, 8
        %s1092 = scalar_lea.vmem [#allocation14], %s1091
        %p1093 = pneg %p782
        %p1094 = pneg %p779
        %s1095 = sand.u32 %s769, 1
        %s1096 = scalar_lea.sflag [#allocation16], %s1095
        %s1097 = sand.u32 %s769, 1
        %s1098 = smul.addr %s1097, 32
        %s1099 = scalar_lea.vmem [#allocation15], %s1098
        %p1100 = scmp.lt.s32.totalorder %s85, 1
        %s1101 = scalar_select %p1100, %s85, 1
        %s1102 = smul.addr %s1101, 8
        %s1103 = scalar_lea.vmem %s1, %s1102
        %p1104 = scmp.lt.s32.totalorder %s85, 1
        %s1105 = scalar_select %p1104, %s85, 1
        %s1106 = smul.addr %s1105, 2
        %s1107 = smul.addr %s1106, 8
        %s1108 = scalar_lea.vmem %s3, %s1107
        %p1109 = scmp.lt.s32.totalorder %s85, 1
        %s1110 = scalar_select %p1109, %s85, 1
        %s1111 = smul.addr %s1110, 8
        %s1112 = scalar_lea.vmem %s5, %s1111
        %p1113 = scmp.lt.s32.totalorder %s85, 1
        %s1114 = scalar_select %p1113, %s85, 1
        %s1115 = smul.addr %s1114, 8
        %s1116 = scalar_lea.vmem %s7, %s1115
        %v1118 = vld [vmem:[%s1103] sm:$0xff]
        %v1119 = vld [vmem:[%s1108] sm:$0xff]
        %v1120 = vld [vmem:[%s1108 + $0x8] sm:$0x3]
        %v1121 = vld [vmem:[%s1112] sm:$0xff]
        %v1122 = vld [vmem:[%s1116] sm:$0xff]
        %v1123 = vld [vmem:[%s9] sm:$0xf]
        %v1124 = vld [vmem:[%s9 + $0x4] sm:$0xf]
        %v1125 = vld [vmem:[%s9 + $0x8] sm:$0xf]
        %v1126 = vld [vmem:[%s9 + $0xc] sm:$0xf]
        %v1127 = vld [vmem:[%s11] sm:$0xf]
        %v1128 = vld [vmem:[%s11 + $0x4] sm:$0xf]
        %v1129 = vld [vmem:[%s11 + $0x8] sm:$0xf]
        %v1130 = vld [vmem:[%s11 + $0xc] sm:$0xf]
        %v1131 = vld [vmem:[%s13] sm:$0xf]
        %v1132 = vld [vmem:[%s13 + $0x4] sm:$0xf]
        %v1133 = vld [vmem:[%s13 + $0x8] sm:$0xf]
        %v1134 = vld [vmem:[%s13 + $0xc] sm:$0xf]
        %v1135 = vld [vmem:[%s15] sm:$0xf]
        %v1136 = vld [vmem:[%s15 + $0x4] sm:$0xf]
        %v1137 = vld [vmem:[%s15 + $0x8] sm:$0xf]
        %v1138 = vld [vmem:[%s15 + $0xc] sm:$0xf]
        %v1139 = vld [vmem:[%s17] sm:$0x1]
        %v1140 = vld [vmem:[%s19] sm:$0x1]
        %v1141 = vld [vmem:[%s21] sm:$0x1]
        %v1142 = vld [vmem:[%s23] sm:$0x1]
        %v1143 = vpack.c.bf16 %v1118, %v1118
        %v1145 = vlaneseq
        %v1146 = vshrl.u32 %v1145, 7
        %v1147 = vsub.s32 0, %v1146
        %v1148 = vrot.slane %v1139, %v1147
        %v1154 = vunpack.c.l.b16 %v1123
        %v1155 = vunpack.c.l.b16 %v1124
        %v1156 = vunpack.c.l.b16 %v1125
        %v1157 = vunpack.c.l.b16 %v1126
        %v1158 = vpack.c.b16 %v1155, %v1154
        %v1159 = vpack.c.b16 %v1157, %v1156
        %vm1162 = vcmask 261120
        %v1164 = vsel %vm1162, %v1143, 0
        %1166 = vmatprep.subr.bf16.mxu0 0
        %1167 = vmatpush1.bf16.msra.mxu0 %v1158
        %1168 = vmatprep.subr.bf16.mxu0 0
        %1169 = vmatpush1.bf16.msra.mxu0 %v1159
        %1170 = vmatprep.subr.bf16.mxu0 0
        %1171 = vmatpush1.bf16.msra.mxu0 0
        %1172 = vmatprep.subr.bf16.mxu0 0
        %1173 = vmatpush1.bf16.msra.mxu0 0
        %1174 = vmatprep.subr.bf16.mxu0 0
        %1175 = vmatpush1.bf16.msra.mxu0 0
        %1176 = vmatprep.subr.bf16.mxu0 0
        %1177 = vmatpush1.bf16.msra.mxu0 0
        %1178 = vmatprep.subr.bf16.mxu0 0
        %1179 = vmatpush1.bf16.msra.mxu0 0
        %1180 = vmatprep.subr.bf16.mxu0 0
        %1181 = vmatpush1.bf16.msra.mxu0 0
        %1182 = vmatprep.subr.bf16.mxu0 0
        %1183 = vmatpush1.bf16.msra.mxu0 0
        %1184 = vmatprep.subr.bf16.mxu0 0
        %1185 = vmatpush1.bf16.msra.mxu0 0
        %1186 = vmatprep.subr.bf16.mxu0 0
        %1187 = vmatpush1.bf16.msra.mxu0 0
        %1188 = vmatprep.subr.bf16.mxu0 0
        %1189 = vmatpush1.bf16.msra.mxu0 0
        %1190 = vmatprep.subr.bf16.mxu0 0
        %1191 = vmatpush1.bf16.msra.mxu0 0
        %1192 = vmatprep.subr.bf16.mxu0 0
        %1193 = vmatpush1.bf16.msra.mxu0 0
        %1194 = vmatprep.subr.bf16.mxu0 0
        %1195 = vmatpush1.bf16.msra.mxu0 0
        %1196 = vmatprep.subr.bf16.mxu0 0
        %1197 = vmatpush1.bf16.msra.mxu0 0
        %1198 = vmatprep.mubr.bf16.mxu0 0
        %1199 = vmatmul.mubr.bf16.gmra.mrb[0].mxu0 %v1164
        %v1200 = vpop.f32.mrb[0].mxu0
        %v1201 = vadd.f32 %v1148, %v1200
        %v1202 = vpop.f32.mrb[0].mxu0
        %v1203 = vpop.f32.mrb[0].mxu0
        %v1204 = vpop.f32.mrb[0].mxu0
        %1205 = vdwg.mxu0
        %v1207 = vlaneseq
        %v1208 = vshrl.u32 %v1207, 7
        %v1209 = vsub.s32 0, %v1208
        %v1210 = vrot.slane %v1140, %v1209
        %v1216 = vunpack.c.l.b16 %v1127
        %v1217 = vunpack.c.l.b16 %v1128
        %v1218 = vunpack.c.l.b16 %v1129
        %v1219 = vunpack.c.l.b16 %v1130
        %v1220 = vpack.c.b16 %v1217, %v1216
        %v1221 = vpack.c.b16 %v1219, %v1218
        %1224 = vmatprep.subr.bf16.mxu0 0
        %1225 = vmatpush1.bf16.msra.mxu0 %v1220
        %1226 = vmatprep.subr.bf16.mxu0 0
        %1227 = vmatpush1.bf16.msra.mxu0 %v1221
        %1228 = vmatprep.subr.bf16.mxu0 0
        %1229 = vmatpush1.bf16.msra.mxu0 0
        %1230 = vmatprep.subr.bf16.mxu0 0
        %1231 = vmatpush1.bf16.msra.mxu0 0
        %1232 = vmatprep.subr.bf16.mxu0 0
        %1233 = vmatpush1.bf16.msra.mxu0 0
        %1234 = vmatprep.subr.bf16.mxu0 0
        %1235 = vmatpush1.bf16.msra.mxu0 0
        %1236 = vmatprep.subr.bf16.mxu0 0
        %1237 = vmatpush1.bf16.msra.mxu0 0
        %1238 = vmatprep.subr.bf16.mxu0 0
        %1239 = vmatpush1.bf16.msra.mxu0 0
        %1240 = vmatprep.subr.bf16.mxu0 0
        %1241 = vmatpush1.bf16.msra.mxu0 0
        %1242 = vmatprep.subr.bf16.mxu0 0
        %1243 = vmatpush1.bf16.msra.mxu0 0
        %1244 = vmatprep.subr.bf16.mxu0 0
        %1245 = vmatpush1.bf16.msra.mxu0 0
        %1246 = vmatprep.subr.bf16.mxu0 0
        %1247 = vmatpush1.bf16.msra.mxu0 0
        %1248 = vmatprep.subr.bf16.mxu0 0
        %1249 = vmatpush1.bf16.msra.mxu0 0
        %1250 = vmatprep.subr.bf16.mxu0 0
        %1251 = vmatpush1.bf16.msra.mxu0 0
        %1252 = vmatprep.subr.bf16.mxu0 0
        %1253 = vmatpush1.bf16.msra.mxu0 0
        %1254 = vmatprep.subr.bf16.mxu0 0
        %1255 = vmatpush1.bf16.msra.mxu0 0
        %1256 = vmatprep.mubr.bf16.mxu0 0
        %1257 = vmatmul.mubr.bf16.gmra.mrb[0].mxu0 %v1164
        %v1258 = vpop.f32.mrb[0].mxu0
        %v1259 = vadd.f32 %v1210, %v1258
        %v1260 = vpop.f32.mrb[0].mxu0
        %v1261 = vpop.f32.mrb[0].mxu0
        %v1262 = vpop.f32.mrb[0].mxu0
        %1263 = vdwg.mxu0
        %v1265 = vlaneseq
        %v1266 = vshrl.u32 %v1265, 7
        %v1267 = vsub.s32 0, %v1266
        %v1268 = vrot.slane %v1141, %v1267
        %v1274 = vunpack.c.l.b16 %v1131
        %v1275 = vunpack.c.l.b16 %v1132
        %v1276 = vunpack.c.l.b16 %v1133
        %v1277 = vunpack.c.l.b16 %v1134
        %v1278 = vpack.c.b16 %v1275, %v1274
        %v1279 = vpack.c.b16 %v1277, %v1276
        %1282 = vmatprep.subr.bf16.mxu0 0
        %1283 = vmatpush1.bf16.msra.mxu0 %v1278
        %1284 = vmatprep.subr.bf16.mxu0 0
        %1285 = vmatpush1.bf16.msra.mxu0 %v1279
        %1286 = vmatprep.subr.bf16.mxu0 0
        %1287 = vmatpush1.bf16.msra.mxu0 0
        %1288 = vmatprep.subr.bf16.mxu0 0
        %1289 = vmatpush1.bf16.msra.mxu0 0
        %1290 = vmatprep.subr.bf16.mxu0 0
        %1291 = vmatpush1.bf16.msra.mxu0 0
        %1292 = vmatprep.subr.bf16.mxu0 0
        %1293 = vmatpush1.bf16.msra.mxu0 0
        %1294 = vmatprep.subr.bf16.mxu0 0
        %1295 = vmatpush1.bf16.msra.mxu0 0
        %1296 = vmatprep.subr.bf16.mxu0 0
        %1297 = vmatpush1.bf16.msra.mxu0 0
        %1298 = vmatprep.subr.bf16.mxu0 0
        %1299 = vmatpush1.bf16.msra.mxu0 0
        %1300 = vmatprep.subr.bf16.mxu0 0
        %1301 = vmatpush1.bf16.msra.mxu0 0
        %1302 = vmatprep.subr.bf16.mxu0 0
        %1303 = vmatpush1.bf16.msra.mxu0 0
        %1304 = vmatprep.subr.bf16.mxu0 0
        %1305 = vmatpush1.bf16.msra.mxu0 0
        %1306 = vmatprep.subr.bf16.mxu0 0
        %1307 = vmatpush1.bf16.msra.mxu0 0
        %1308 = vmatprep.subr.bf16.mxu0 0
        %1309 = vmatpush1.bf16.msra.mxu0 0
        %1310 = vmatprep.subr.bf16.mxu0 0
        %1311 = vmatpush1.bf16.msra.mxu0 0
        %1312 = vmatprep.subr.bf16.mxu0 0
        %1313 = vmatpush1.bf16.msra.mxu0 0
        %1314 = vmatprep.mubr.bf16.mxu0 0
        %1315 = vmatmul.mubr.bf16.gmra.mrb[0].mxu0 %v1164
        %v1316 = vpop.f32.mrb[0].mxu0
        %v1317 = vadd.f32 %v1268, %v1316
        %v1318 = vpop.f32.mrb[0].mxu0
        %v1319 = vpop.f32.mrb[0].mxu0
        %v1320 = vpop.f32.mrb[0].mxu0
        %1321 = vdwg.mxu0
        %v1322 = vmul.f32 %v1201, 0.35355338
        %v1323 = vpack.c.bf16 %v1322, %v1322
        %v1324 = vpack.c.bf16 %v1259, %v1259
        %v1325 = vpack.c.bf16 %v1317, %v1317
        %vm1326 = vcmask 64512
        %v1328 = vsel %vm1326, %v1323, 0
        %v1331 = vsel %vm1326, %v1324, 0
        %1333 = vmatprep.subr.bf16.mxu0 0
        %1334 = vmatpush1.bf16.xpose.msra.mxu0 %v1331
        %1335 = vmatprep.subr.bf16.mxu0 0
        %1336 = vmatpush1.bf16.xpose.msra.mxu0 0
        %1337 = vmatprep.subr.bf16.mxu0 0
        %1338 = vmatpush1.bf16.xpose.msra.mxu0 0
        %1339 = vmatprep.subr.bf16.mxu0 0
        %1340 = vmatpush1.bf16.xpose.msra.mxu0 0
        %1341 = vmatprep.subr.bf16.mxu0 0
        %1342 = vmatpush1.bf16.xpose.msra.mxu0 0
        %1343 = vmatprep.subr.bf16.mxu0 0
        %1344 = vmatpush1.bf16.xpose.msra.mxu0 0
        %1345 = vmatprep.subr.bf16.mxu0 0
        %1346 = vmatpush1.bf16.xpose.msra.mxu0 0
        %1347 = vmatprep.subr.bf16.mxu0 0
        %1348 = vmatpush1.bf16.xpose.msra.mxu0 0
        %1349 = vmatprep.subr.bf16.mxu0 0
        %1350 = vmatpush1.bf16.xpose.msra.mxu0 0
        %1351 = vmatprep.subr.bf16.mxu0 0
        %1352 = vmatpush1.bf16.xpose.msra.mxu0 0
        %1353 = vmatprep.subr.bf16.mxu0 0
        %1354 = vmatpush1.bf16.xpose.msra.mxu0 0
        %1355 = vmatprep.subr.bf16.mxu0 0
        %1356 = vmatpush1.bf16.xpose.msra.mxu0 0
        %1357 = vmatprep.subr.bf16.mxu0 0
        %1358 = vmatpush1.bf16.xpose.msra.mxu0 0
        %1359 = vmatprep.subr.bf16.mxu0 0
        %1360 = vmatpush1.bf16.xpose.msra.mxu0 0
        %1361 = vmatprep.subr.bf16.mxu0 0
        %1362 = vmatpush1.bf16.xpose.msra.mxu0 0
        %1363 = vmatprep.subr.bf16.mxu0 0
        %1364 = vmatpush1.bf16.xpose.msra.mxu0 0
        %1365 = vmatprep.mubr.bf16.mxu0 0
        %1366 = vmatmul.mubr.bf16.gmra.mrb[0].mxu0 %v1328
        %v1367 = vpop.f32.mrb[0].mxu0
        %v1368 = vadd.f32 0.0, %v1367
        %v1369 = vpop.f32.mrb[0].mxu0
        %v1370 = vpop.f32.mrb[0].mxu0
        %v1371 = vpop.f32.mrb[0].mxu0
        %1372 = vdwg.mxu0
        %1374 = vrot.lane.b32.xlu0 %v1323, 120
        %v1375 = vpop.permute.xlu0 %1374
        %1377 = vrot.lane.b32.xlu0 %v1324, 120
        %v1378 = vpop.permute.xlu0 %1377
        %v1380 = vsel %vm1326, %v1375, 0
        %v1383 = vsel %vm1326, %v1378, 0
        %1385 = vmatprep.subr.bf16.mxu0 0
        %1386 = vmatpush1.bf16.xpose.msra.mxu0 %v1383
        %1387 = vmatprep.subr.bf16.mxu0 0
        %1388 = vmatpush1.bf16.xpose.msra.mxu0 0
        %1389 = vmatprep.subr.bf16.mxu0 0
        %1390 = vmatpush1.bf16.xpose.msra.mxu0 0
        %1391 = vmatprep.subr.bf16.mxu0 0
        %1392 = vmatpush1.bf16.xpose.msra.mxu0 0
        %1393 = vmatprep.subr.bf16.mxu0 0
        %1394 = vmatpush1.bf16.xpose.msra.mxu0 0
        %1395 = vmatprep.subr.bf16.mxu0 0
        %1396 = vmatpush1.bf16.xpose.msra.mxu0 0
        %1397 = vmatprep.subr.bf16.mxu0 0
        %1398 = vmatpush1.bf16.xpose.msra.mxu0 0
        %1399 = vmatprep.subr.bf16.mxu0 0
        %1400 = vmatpush1.bf16.xpose.msra.mxu0 0
        %1401 = vmatprep.subr.bf16.mxu0 0
        %1402 = vmatpush1.bf16.xpose.msra.mxu0 0
        %1403 = vmatprep.subr.bf16.mxu0 0
        %1404 = vmatpush1.bf16.xpose.msra.mxu0 0
        %1405 = vmatprep.subr.bf16.mxu0 0
        %1406 = vmatpush1.bf16.xpose.msra.mxu0 0
        %1407 = vmatprep.subr.bf16.mxu0 0
        %1408 = vmatpush1.bf16.xpose.msra.mxu0 0
        %1409 = vmatprep.subr.bf16.mxu0 0
        %1410 = vmatpush1.bf16.xpose.msra.mxu0 0
        %1411 = vmatprep.subr.bf16.mxu0 0
        %1412 = vmatpush1.bf16.xpose.msra.mxu0 0
        %1413 = vmatprep.subr.bf16.mxu0 0
        %1414 = vmatpush1.bf16.xpose.msra.mxu0 0
        %1415 = vmatprep.subr.bf16.mxu0 0
        %1416 = vmatpush1.bf16.xpose.msra.mxu0 0
        %1417 = vmatprep.mubr.bf16.mxu0 0
        %1418 = vmatmul.mubr.bf16.gmra.mrb[0].mxu0 %v1380
        %v1419 = vpop.f32.mrb[0].mxu0
        %v1420 = vadd.f32 0.0, %v1419
        %v1421 = vpop.f32.mrb[0].mxu0
        %v1422 = vpop.f32.mrb[0].mxu0
        %v1423 = vpop.f32.mrb[0].mxu0
        %1424 = vdwg.mxu0
        %1425 = vrot.lane.b32.xlu0 %v1323, 112
        %v1426 = vpop.permute.xlu0 %1425
        %1427 = vrot.lane.b32.xlu0 %v1324, 112
        %v1428 = vpop.permute.xlu0 %1427
        %v1430 = vsel %vm1326, %v1426, 0
        %v1433 = vsel %vm1326, %v1428, 0
        %1435 = vmatprep.subr.bf16.mxu0 0
        %1436 = vmatpush1.bf16.xpose.msra.mxu0 %v1433
        %1437 = vmatprep.subr.bf16.mxu0 0
        %1438 = vmatpush1.bf16.xpose.msra.mxu0 0
        %1439 = vmatprep.subr.bf16.mxu0 0
        %1440 = vmatpush1.bf16.xpose.msra.mxu0 0
        %1441 = vmatprep.subr.bf16.mxu0 0
        %1442 = vmatpush1.bf16.xpose.msra.mxu0 0
        %1443 = vmatprep.subr.bf16.mxu0 0
        %1444 = vmatpush1.bf16.xpose.msra.mxu0 0
        %1445 = vmatprep.subr.bf16.mxu0 0
        %1446 = vmatpush1.bf16.xpose.msra.mxu0 0
        %1447 = vmatprep.subr.bf16.mxu0 0
        %1448 = vmatpush1.bf16.xpose.msra.mxu0 0
        %1449 = vmatprep.subr.bf16.mxu0 0
        %1450 = vmatpush1.bf16.xpose.msra.mxu0 0
        %1451 = vmatprep.subr.bf16.mxu0 0
        %1452 = vmatpush1.bf16.xpose.msra.mxu0 0
        %1453 = vmatprep.subr.bf16.mxu0 0
        %1454 = vmatpush1.bf16.xpose.msra.mxu0 0
        %1455 = vmatprep.subr.bf16.mxu0 0
        %1456 = vmatpush1.bf16.xpose.msra.mxu0 0
        %1457 = vmatprep.subr.bf16.mxu0 0
        %1458 = vmatpush1.bf16.xpose.msra.mxu0 0
        %1459 = vmatprep.subr.bf16.mxu0 0
        %1460 = vmatpush1.bf16.xpose.msra.mxu0 0
        %1461 = vmatprep.subr.bf16.mxu0 0
        %1462 = vmatpush1.bf16.xpose.msra.mxu0 0
        %1463 = vmatprep.subr.bf16.mxu0 0
        %1464 = vmatpush1.bf16.xpose.msra.mxu0 0
        %1465 = vmatprep.subr.bf16.mxu0 0
        %1466 = vmatpush1.bf16.xpose.msra.mxu0 0
        %1467 = vmatprep.mubr.bf16.mxu0 0
        %1468 = vmatmul.mubr.bf16.gmra.mrb[0].mxu0 %v1430
        %v1469 = vpop.f32.mrb[0].mxu0
        %v1470 = vadd.f32 0.0, %v1469
        %v1471 = vpop.f32.mrb[0].mxu0
        %v1472 = vpop.f32.mrb[0].mxu0
        %v1473 = vpop.f32.mrb[0].mxu0
        %1474 = vdwg.mxu0
        %1475 = vrot.lane.b32.xlu0 %v1323, 104
        %v1476 = vpop.permute.xlu0 %1475
        %1477 = vrot.lane.b32.xlu0 %v1324, 104
        %v1478 = vpop.permute.xlu0 %1477
        %v1480 = vsel %vm1326, %v1476, 0
        %v1483 = vsel %vm1326, %v1478, 0
        %1485 = vmatprep.subr.bf16.mxu0 0
        %1486 = vmatpush1.bf16.xpose.msra.mxu0 %v1483
        %1487 = vmatprep.subr.bf16.mxu0 0
        %1488 = vmatpush1.bf16.xpose.msra.mxu0 0
        %1489 = vmatprep.subr.bf16.mxu0 0
        %1490 = vmatpush1.bf16.xpose.msra.mxu0 0
        %1491 = vmatprep.subr.bf16.mxu0 0
        %1492 = vmatpush1.bf16.xpose.msra.mxu0 0
        %1493 = vmatprep.subr.bf16.mxu0 0
        %1494 = vmatpush1.bf16.xpose.msra.mxu0 0
        %1495 = vmatprep.subr.bf16.mxu0 0
        %1496 = vmatpush1.bf16.xpose.msra.mxu0 0
        %1497 = vmatprep.subr.bf16.mxu0 0
        %1498 = vmatpush1.bf16.xpose.msra.mxu0 0
        %1499 = vmatprep.subr.bf16.mxu0 0
        %1500 = vmatpush1.bf16.xpose.msra.mxu0 0
        %1501 = vmatprep.subr.bf16.mxu0 0
        %1502 = vmatpush1.bf16.xpose.msra.mxu0 0
        %1503 = vmatprep.subr.bf16.mxu0 0
        %1504 = vmatpush1.bf16.xpose.msra.mxu0 0
        %1505 = vmatprep.subr.bf16.mxu0 0
        %1506 = vmatpush1.bf16.xpose.msra.mxu0 0
        %1507 = vmatprep.subr.bf16.mxu0 0
        %1508 = vmatpush1.bf16.xpose.msra.mxu0 0
        %1509 = vmatprep.subr.bf16.mxu0 0
        %1510 = vmatpush1.bf16.xpose.msra.mxu0 0
        %1511 = vmatprep.subr.bf16.mxu0 0
        %1512 = vmatpush1.bf16.xpose.msra.mxu0 0
        %1513 = vmatprep.subr.bf16.mxu0 0
        %1514 = vmatpush1.bf16.xpose.msra.mxu0 0
        %1515 = vmatprep.subr.bf16.mxu0 0
        %1516 = vmatpush1.bf16.xpose.msra.mxu0 0
        %1517 = vmatprep.mubr.bf16.mxu0 0
        %1518 = vmatmul.mubr.bf16.gmra.mrb[0].mxu0 %v1480
        %v1519 = vpop.f32.mrb[0].mxu0
        %v1520 = vadd.f32 0.0, %v1519
        %v1521 = vpop.f32.mrb[0].mxu0
        %v1522 = vpop.f32.mrb[0].mxu0
        %v1523 = vpop.f32.mrb[0].mxu0
        %1524 = vdwg.mxu0
        %vm1525 = vcmp.eq.f32.partialorder %v1121, 0.0
        %v1526 = vsel %vm1525, 1, 0
        %vm1527 = vcmp.eq.s32.totalorder %v1526, 1
        %v1528 = vsel %vm1527, -1e+10, %v1368
        %v1529 = vsel %vm1527, -1e+10, %v1420
        %v1530 = vsel %vm1527, -1e+10, %v1470
        %v1531 = vsel %vm1527, -1e+10, %v1520
        %v1532 = vsel %vm1326, %v1528, -inf
        %1533 = vmax.xlane.f32.xlu0 %v1532
        %v1534 = vpop.xlane.xlu0 %1533
        %v1535 = vsel %vm1326, %v1529, -inf
        %1536 = vmax.xlane.f32.xlu0 %v1535
        %v1537 = vpop.xlane.xlu0 %1536
        %v1538 = vsel %vm1326, %v1530, -inf
        %1539 = vmax.xlane.f32.xlu0 %v1538
        %v1540 = vpop.xlane.xlu0 %1539
        %v1541 = vsel %vm1326, %v1531, -inf
        %1542 = vmax.xlane.f32.xlu0 %v1541
        %v1543 = vpop.xlane.xlu0 %1542
        %v1544 = vsub.f32 %v1528, %v1534
        %v1545 = vsub.f32 %v1529, %v1537
        %v1546 = vsub.f32 %v1530, %v1540
        %v1547 = vsub.f32 %v1531, %v1543
        %v1548 = vmul.f32 %v1544, 1.442695
        %v1549 = vpow.pop %v1548
        %v1550 = vmul.f32 %v1545, 1.442695
        %v1551 = vpow.pop %v1550
        %v1552 = vmul.f32 %v1546, 1.442695
        %v1553 = vpow.pop %v1552
        %v1554 = vmul.f32 %v1547, 1.442695
        %v1555 = vpow.pop %v1554
        %v1556 = vsel %vm1326, %v1549, 0.0
        %1557 = vadd.xlane.f32.xlu0 %v1556
        %v1558 = vpop.xlane.xlu0 %1557
        %v1559 = vsel %vm1326, %v1551, 0.0
        %1560 = vadd.xlane.f32.xlu0 %v1559
        %v1561 = vpop.xlane.xlu0 %1560
        %v1562 = vsel %vm1326, %v1553, 0.0
        %1563 = vadd.xlane.f32.xlu0 %v1562
        %v1564 = vpop.xlane.xlu0 %1563
        %v1565 = vsel %vm1326, %v1555, 0.0
        %1566 = vadd.xlane.f32.xlu0 %v1565
        %v1567 = vpop.xlane.xlu0 %1566
        %v1568 = vrcp.pop %v1558
        %v1569 = vmul.f32 %v1549, %v1568
        %v1570 = vrcp.pop %v1561
        %v1571 = vmul.f32 %v1551, %v1570
        %v1572 = vrcp.pop %v1564
        %v1573 = vmul.f32 %v1553, %v1572
        %v1574 = vrcp.pop %v1567
        %v1575 = vmul.f32 %v1555, %v1574
        %v1576 = vpack.c.bf16 %v1569, %v1569
        %v1577 = vpack.c.bf16 %v1571, %v1571
        %v1578 = vpack.c.bf16 %v1573, %v1573
        %v1579 = vpack.c.bf16 %v1575, %v1575
        %v1581 = vsel %vm1326, %v1576, 0
        %vm1583 = vcmask 1043456
        %v1585 = vsel %vm1583, %v1325, 0
        %1587 = vmatprep.subr.bf16.mxu0 0
        %1588 = vmatpush1.bf16.msra.mxu0 %v1585
        %1589 = vmatprep.subr.bf16.mxu0 0
        %1590 = vmatpush1.bf16.msra.mxu0 0
        %1591 = vmatprep.subr.bf16.mxu0 0
        %1592 = vmatpush1.bf16.msra.mxu0 0
        %1593 = vmatprep.subr.bf16.mxu0 0
        %1594 = vmatpush1.bf16.msra.mxu0 0
        %1595 = vmatprep.subr.bf16.mxu0 0
        %1596 = vmatpush1.bf16.msra.mxu0 0
        %1597 = vmatprep.subr.bf16.mxu0 0
        %1598 = vmatpush1.bf16.msra.mxu0 0
        %1599 = vmatprep.subr.bf16.mxu0 0
        %1600 = vmatpush1.bf16.msra.mxu0 0
        %1601 = vmatprep.subr.bf16.mxu0 0
        %1602 = vmatpush1.bf16.msra.mxu0 0
        %1603 = vmatprep.subr.bf16.mxu0 0
        %1604 = vmatpush1.bf16.msra.mxu0 0
        %1605 = vmatprep.subr.bf16.mxu0 0
        %1606 = vmatpush1.bf16.msra.mxu0 0
        %1607 = vmatprep.subr.bf16.mxu0 0
        %1608 = vmatpush1.bf16.msra.mxu0 0
        %1609 = vmatprep.subr.bf16.mxu0 0
        %1610 = vmatpush1.bf16.msra.mxu0 0
        %1611 = vmatprep.subr.bf16.mxu0 0
        %1612 = vmatpush1.bf16.msra.mxu0 0
        %1613 = vmatprep.subr.bf16.mxu0 0
        %1614 = vmatpush1.bf16.msra.mxu0 0
        %1615 = vmatprep.subr.bf16.mxu0 0
        %1616 = vmatpush1.bf16.msra.mxu0 0
        %1617 = vmatprep.subr.bf16.mxu0 0
        %1618 = vmatpush1.bf16.msra.mxu0 0
        %1619 = vmatprep.mubr.bf16.mxu0 0
        %1620 = vmatmul.mubr.bf16.gmra.mrb[0].mxu0 %v1581
        %v1621 = vpop.f32.mrb[0].mxu0
        %v1622 = vadd.f32 0.0, %v1621
        %v1623 = vpop.f32.mrb[0].mxu0
        %v1624 = vpop.f32.mrb[0].mxu0
        %v1625 = vpop.f32.mrb[0].mxu0
        %1626 = vdwg.mxu0
        %v1627 = vpack.c.bf16 %v1622, %v1622
        %v1629 = vsel %vm1326, %v1627, 0
        %v1632 = vsel %vm1583, %v1135, 0
        %1634 = vmatprep.subr.bf16.mxu0 0
        %1635 = vmatpush1.bf16.msra.mxu0 %v1632
        %1636 = vmatprep.subr.bf16.mxu0 0
        %1637 = vmatpush1.bf16.msra.mxu0 0
        %1638 = vmatprep.subr.bf16.mxu0 0
        %1639 = vmatpush1.bf16.msra.mxu0 0
        %1640 = vmatprep.subr.bf16.mxu0 0
        %1641 = vmatpush1.bf16.msra.mxu0 0
        %1642 = vmatprep.subr.bf16.mxu0 0
        %1643 = vmatpush1.bf16.msra.mxu0 0
        %1644 = vmatprep.subr.bf16.mxu0 0
        %1645 = vmatpush1.bf16.msra.mxu0 0
        %1646 = vmatprep.subr.bf16.mxu0 0
        %1647 = vmatpush1.bf16.msra.mxu0 0
        %1648 = vmatprep.subr.bf16.mxu0 0
        %1649 = vmatpush1.bf16.msra.mxu0 0
        %1650 = vmatprep.subr.bf16.mxu0 0
        %1651 = vmatpush1.bf16.msra.mxu0 0
        %1652 = vmatprep.subr.bf16.mxu0 0
        %1653 = vmatpush1.bf16.msra.mxu0 0
        %1654 = vmatprep.subr.bf16.mxu0 0
        %1655 = vmatpush1.bf16.msra.mxu0 0
        %1656 = vmatprep.subr.bf16.mxu0 0
        %1657 = vmatpush1.bf16.msra.mxu0 0
        %1658 = vmatprep.subr.bf16.mxu0 0
        %1659 = vmatpush1.bf16.msra.mxu0 0
        %1660 = vmatprep.subr.bf16.mxu0 0
        %1661 = vmatpush1.bf16.msra.mxu0 0
        %1662 = vmatprep.subr.bf16.mxu0 0
        %1663 = vmatpush1.bf16.msra.mxu0 0
        %1664 = vmatprep.subr.bf16.mxu0 0
        %1665 = vmatpush1.bf16.msra.mxu0 0
        %1666 = vmatprep.mubr.bf16.mxu0 0
        %1667 = vmatmul.mubr.bf16.gmra.mrb[0].mxu0 %v1629
        %v1668 = vpop.f32.mrb[0].mxu0
        %v1669 = vadd.f32 0.0, %v1668
        %v1670 = vpop.f32.mrb[0].mxu0
        %v1671 = vpop.f32.mrb[0].mxu0
        %v1672 = vpop.f32.mrb[0].mxu0
        %1673 = vdwg.mxu0
        %v1675 = vlaneseq
        %v1676 = vshrl.u32 %v1675, 7
        %v1677 = vsub.s32 0, %v1676
        %v1678 = vrot.slane %v1142, %v1677
        %v1680 = vadd.f32 %v1678, %v1669
        %1682 = vrot.lane.b32.xlu0 %v1325, 120
        %v1683 = vpop.permute.xlu0 %1682
        %v1685 = vsel %vm1326, %v1577, 0
        %v1688 = vsel %vm1583, %v1683, 0
        %1690 = vmatprep.subr.bf16.mxu0 0
        %1691 = vmatpush1.bf16.msra.mxu0 %v1688
        %1692 = vmatprep.subr.bf16.mxu0 0
        %1693 = vmatpush1.bf16.msra.mxu0 0
        %1694 = vmatprep.subr.bf16.mxu0 0
        %1695 = vmatpush1.bf16.msra.mxu0 0
        %1696 = vmatprep.subr.bf16.mxu0 0
        %1697 = vmatpush1.bf16.msra.mxu0 0
        %1698 = vmatprep.subr.bf16.mxu0 0
        %1699 = vmatpush1.bf16.msra.mxu0 0
        %1700 = vmatprep.subr.bf16.mxu0 0
        %1701 = vmatpush1.bf16.msra.mxu0 0
        %1702 = vmatprep.subr.bf16.mxu0 0
        %1703 = vmatpush1.bf16.msra.mxu0 0
        %1704 = vmatprep.subr.bf16.mxu0 0
        %1705 = vmatpush1.bf16.msra.mxu0 0
        %1706 = vmatprep.subr.bf16.mxu0 0
        %1707 = vmatpush1.bf16.msra.mxu0 0
        %1708 = vmatprep.subr.bf16.mxu0 0
        %1709 = vmatpush1.bf16.msra.mxu0 0
        %1710 = vmatprep.subr.bf16.mxu0 0
        %1711 = vmatpush1.bf16.msra.mxu0 0
        %1712 = vmatprep.subr.bf16.mxu0 0
        %1713 = vmatpush1.bf16.msra.mxu0 0
        %1714 = vmatprep.subr.bf16.mxu0 0
        %1715 = vmatpush1.bf16.msra.mxu0 0
        %1716 = vmatprep.subr.bf16.mxu0 0
        %1717 = vmatpush1.bf16.msra.mxu0 0
        %1718 = vmatprep.subr.bf16.mxu0 0
        %1719 = vmatpush1.bf16.msra.mxu0 0
        %1720 = vmatprep.subr.bf16.mxu0 0
        %1721 = vmatpush1.bf16.msra.mxu0 0
        %1722 = vmatprep.mubr.bf16.mxu0 0
        %1723 = vmatmul.mubr.bf16.gmra.mrb[0].mxu0 %v1685
        %v1724 = vpop.f32.mrb[0].mxu0
        %v1725 = vadd.f32 0.0, %v1724
        %v1726 = vpop.f32.mrb[0].mxu0
        %v1727 = vpop.f32.mrb[0].mxu0
        %v1728 = vpop.f32.mrb[0].mxu0
        %1729 = vdwg.mxu0
        %v1730 = vpack.c.bf16 %v1725, %v1725
        %v1732 = vsel %vm1326, %v1730, 0
        %v1735 = vsel %vm1583, %v1136, 0
        %1737 = vmatprep.subr.bf16.mxu0 0
        %1738 = vmatpush1.bf16.msra.mxu0 %v1735
        %1739 = vmatprep.subr.bf16.mxu0 0
        %1740 = vmatpush1.bf16.msra.mxu0 0
        %1741 = vmatprep.subr.bf16.mxu0 0
        %1742 = vmatpush1.bf16.msra.mxu0 0
        %1743 = vmatprep.subr.bf16.mxu0 0
        %1744 = vmatpush1.bf16.msra.mxu0 0
        %1745 = vmatprep.subr.bf16.mxu0 0
        %1746 = vmatpush1.bf16.msra.mxu0 0
        %1747 = vmatprep.subr.bf16.mxu0 0
        %1748 = vmatpush1.bf16.msra.mxu0 0
        %1749 = vmatprep.subr.bf16.mxu0 0
        %1750 = vmatpush1.bf16.msra.mxu0 0
        %1751 = vmatprep.subr.bf16.mxu0 0
        %1752 = vmatpush1.bf16.msra.mxu0 0
        %1753 = vmatprep.subr.bf16.mxu0 0
        %1754 = vmatpush1.bf16.msra.mxu0 0
        %1755 = vmatprep.subr.bf16.mxu0 0
        %1756 = vmatpush1.bf16.msra.mxu0 0
        %1757 = vmatprep.subr.bf16.mxu0 0
        %1758 = vmatpush1.bf16.msra.mxu0 0
        %1759 = vmatprep.subr.bf16.mxu0 0
        %1760 = vmatpush1.bf16.msra.mxu0 0
        %1761 = vmatprep.subr.bf16.mxu0 0
        %1762 = vmatpush1.bf16.msra.mxu0 0
        %1763 = vmatprep.subr.bf16.mxu0 0
        %1764 = vmatpush1.bf16.msra.mxu0 0
        %1765 = vmatprep.subr.bf16.mxu0 0
        %1766 = vmatpush1.bf16.msra.mxu0 0
        %1767 = vmatprep.subr.bf16.mxu0 0
        %1768 = vmatpush1.bf16.msra.mxu0 0
        %1769 = vmatprep.mubr.bf16.mxu0 0
        %1770 = vmatmul.mubr.bf16.gmra.mrb[0].mxu0 %v1732
        %v1771 = vpop.f32.mrb[0].mxu0
        %v1772 = vadd.f32 0.0, %v1771
        %v1773 = vpop.f32.mrb[0].mxu0
        %v1774 = vpop.f32.mrb[0].mxu0
        %v1775 = vpop.f32.mrb[0].mxu0
        %1776 = vdwg.mxu0
        %v1777 = vadd.f32 %v1680, %v1772
        %1778 = vrot.lane.b32.xlu0 %v1325, 112
        %v1779 = vpop.permute.xlu0 %1778
        %v1781 = vsel %vm1326, %v1578, 0
        %v1784 = vsel %vm1583, %v1779, 0
        %1786 = vmatprep.subr.bf16.mxu0 0
        %1787 = vmatpush1.bf16.msra.mxu0 %v1784
        %1788 = vmatprep.subr.bf16.mxu0 0
        %1789 = vmatpush1.bf16.msra.mxu0 0
        %1790 = vmatprep.subr.bf16.mxu0 0
        %1791 = vmatpush1.bf16.msra.mxu0 0
        %1792 = vmatprep.subr.bf16.mxu0 0
        %1793 = vmatpush1.bf16.msra.mxu0 0
        %1794 = vmatprep.subr.bf16.mxu0 0
        %1795 = vmatpush1.bf16.msra.mxu0 0
        %1796 = vmatprep.subr.bf16.mxu0 0
        %1797 = vmatpush1.bf16.msra.mxu0 0
        %1798 = vmatprep.subr.bf16.mxu0 0
        %1799 = vmatpush1.bf16.msra.mxu0 0
        %1800 = vmatprep.subr.bf16.mxu0 0
        %1801 = vmatpush1.bf16.msra.mxu0 0
        %1802 = vmatprep.subr.bf16.mxu0 0
        %1803 = vmatpush1.bf16.msra.mxu0 0
        %1804 = vmatprep.subr.bf16.mxu0 0
        %1805 = vmatpush1.bf16.msra.mxu0 0
        %1806 = vmatprep.subr.bf16.mxu0 0
        %1807 = vmatpush1.bf16.msra.mxu0 0
        %1808 = vmatprep.subr.bf16.mxu0 0
        %1809 = vmatpush1.bf16.msra.mxu0 0
        %1810 = vmatprep.subr.bf16.mxu0 0
        %1811 = vmatpush1.bf16.msra.mxu0 0
        %1812 = vmatprep.subr.bf16.mxu0 0
        %1813 = vmatpush1.bf16.msra.mxu0 0
        %1814 = vmatprep.subr.bf16.mxu0 0
        %1815 = vmatpush1.bf16.msra.mxu0 0
        %1816 = vmatprep.subr.bf16.mxu0 0
        %1817 = vmatpush1.bf16.msra.mxu0 0
        %1818 = vmatprep.mubr.bf16.mxu0 0
        %1819 = vmatmul.mubr.bf16.gmra.mrb[0].mxu0 %v1781
        %v1820 = vpop.f32.mrb[0].mxu0
        %v1821 = vadd.f32 0.0, %v1820
        %v1822 = vpop.f32.mrb[0].mxu0
        %v1823 = vpop.f32.mrb[0].mxu0
        %v1824 = vpop.f32.mrb[0].mxu0
        %1825 = vdwg.mxu0
        %v1826 = vpack.c.bf16 %v1821, %v1821
        %v1828 = vsel %vm1326, %v1826, 0
        %v1831 = vsel %vm1583, %v1137, 0
        %1833 = vmatprep.subr.bf16.mxu0 0
        %1834 = vmatpush1.bf16.msra.mxu0 %v1831
        %1835 = vmatprep.subr.bf16.mxu0 0
        %1836 = vmatpush1.bf16.msra.mxu0 0
        %1837 = vmatprep.subr.bf16.mxu0 0
        %1838 = vmatpush1.bf16.msra.mxu0 0
        %1839 = vmatprep.subr.bf16.mxu0 0
        %1840 = vmatpush1.bf16.msra.mxu0 0
        %1841 = vmatprep.subr.bf16.mxu0 0
        %1842 = vmatpush1.bf16.msra.mxu0 0
        %1843 = vmatprep.subr.bf16.mxu0 0
        %1844 = vmatpush1.bf16.msra.mxu0 0
        %1845 = vmatprep.subr.bf16.mxu0 0
        %1846 = vmatpush1.bf16.msra.mxu0 0
        %1847 = vmatprep.subr.bf16.mxu0 0
        %1848 = vmatpush1.bf16.msra.mxu0 0
        %1849 = vmatprep.subr.bf16.mxu0 0
        %1850 = vmatpush1.bf16.msra.mxu0 0
        %1851 = vmatprep.subr.bf16.mxu0 0
        %1852 = vmatpush1.bf16.msra.mxu0 0
        %1853 = vmatprep.subr.bf16.mxu0 0
        %1854 = vmatpush1.bf16.msra.mxu0 0
        %1855 = vmatprep.subr.bf16.mxu0 0
        %1856 = vmatpush1.bf16.msra.mxu0 0
        %1857 = vmatprep.subr.bf16.mxu0 0
        %1858 = vmatpush1.bf16.msra.mxu0 0
        %1859 = vmatprep.subr.bf16.mxu0 0
        %1860 = vmatpush1.bf16.msra.mxu0 0
        %1861 = vmatprep.subr.bf16.mxu0 0
        %1862 = vmatpush1.bf16.msra.mxu0 0
        %1863 = vmatprep.subr.bf16.mxu0 0
        %1864 = vmatpush1.bf16.msra.mxu0 0
        %1865 = vmatprep.mubr.bf16.mxu0 0
        %1866 = vmatmul.mubr.bf16.gmra.mrb[0].mxu0 %v1828
        %v1867 = vpop.f32.mrb[0].mxu0
        %v1868 = vadd.f32 0.0, %v1867
        %v1869 = vpop.f32.mrb[0].mxu0
        %v1870 = vpop.f32.mrb[0].mxu0
        %v1871 = vpop.f32.mrb[0].mxu0
        %1872 = vdwg.mxu0
        %v1873 = vadd.f32 %v1777, %v1868
        %1874 = vrot.lane.b32.xlu0 %v1325, 104
        %v1875 = vpop.permute.xlu0 %1874
        %v1877 = vsel %vm1326, %v1579, 0
        %v1880 = vsel %vm1583, %v1875, 0
        %1882 = vmatprep.subr.bf16.mxu0 0
        %1883 = vmatpush1.bf16.msra.mxu0 %v1880
        %1884 = vmatprep.subr.bf16.mxu0 0
        %1885 = vmatpush1.bf16.msra.mxu0 0
        %1886 = vmatprep.subr.bf16.mxu0 0
        %1887 = vmatpush1.bf16.msra.mxu0 0
        %1888 = vmatprep.subr.bf16.mxu0 0
        %1889 = vmatpush1.bf16.msra.mxu0 0
        %1890 = vmatprep.subr.bf16.mxu0 0
        %1891 = vmatpush1.bf16.msra.mxu0 0
        %1892 = vmatprep.subr.bf16.mxu0 0
        %1893 = vmatpush1.bf16.msra.mxu0 0
        %1894 = vmatprep.subr.bf16.mxu0 0
        %1895 = vmatpush1.bf16.msra.mxu0 0
        %1896 = vmatprep.subr.bf16.mxu0 0
        %1897 = vmatpush1.bf16.msra.mxu0 0
        %1898 = vmatprep.subr.bf16.mxu0 0
        %1899 = vmatpush1.bf16.msra.mxu0 0
        %1900 = vmatprep.subr.bf16.mxu0 0
        %1901 = vmatpush1.bf16.msra.mxu0 0
        %1902 = vmatprep.subr.bf16.mxu0 0
        %1903 = vmatpush1.bf16.msra.mxu0 0
        %1904 = vmatprep.subr.bf16.mxu0 0
        %1905 = vmatpush1.bf16.msra.mxu0 0
        %1906 = vmatprep.subr.bf16.mxu0 0
        %1907 = vmatpush1.bf16.msra.mxu0 0
        %1908 = vmatprep.subr.bf16.mxu0 0
        %1909 = vmatpush1.bf16.msra.mxu0 0
        %1910 = vmatprep.subr.bf16.mxu0 0
        %1911 = vmatpush1.bf16.msra.mxu0 0
        %1912 = vmatprep.subr.bf16.mxu0 0
        %1913 = vmatpush1.bf16.msra.mxu0 0
        %1914 = vmatprep.mubr.bf16.mxu0 0
        %1915 = vmatmul.mubr.bf16.gmra.mrb[0].mxu0 %v1877
        %v1916 = vpop.f32.mrb[0].mxu0
        %v1917 = vadd.f32 0.0, %v1916
        %v1918 = vpop.f32.mrb[0].mxu0
        %v1919 = vpop.f32.mrb[0].mxu0
        %v1920 = vpop.f32.mrb[0].mxu0
        %1921 = vdwg.mxu0
        %v1922 = vpack.c.bf16 %v1917, %v1917
        %v1924 = vsel %vm1326, %v1922, 0
        %v1927 = vsel %vm1583, %v1138, 0
        %1929 = vmatprep.subr.bf16.mxu0 0
        %1930 = vmatpush1.bf16.msra.mxu0 %v1927
        %1931 = vmatprep.subr.bf16.mxu0 0
        %1932 = vmatpush1.bf16.msra.mxu0 0
        %1933 = vmatprep.subr.bf16.mxu0 0
        %1934 = vmatpush1.bf16.msra.mxu0 0
        %1935 = vmatprep.subr.bf16.mxu0 0
        %1936 = vmatpush1.bf16.msra.mxu0 0
        %1937 = vmatprep.subr.bf16.mxu0 0
        %1938 = vmatpush1.bf16.msra.mxu0 0
        %1939 = vmatprep.subr.bf16.mxu0 0
        %1940 = vmatpush1.bf16.msra.mxu0 0
        %1941 = vmatprep.subr.bf16.mxu0 0
        %1942 = vmatpush1.bf16.msra.mxu0 0
        %1943 = vmatprep.subr.bf16.mxu0 0
        %1944 = vmatpush1.bf16.msra.mxu0 0
        %1945 = vmatprep.subr.bf16.mxu0 0
        %1946 = vmatpush1.bf16.msra.mxu0 0
        %1947 = vmatprep.subr.bf16.mxu0 0
        %1948 = vmatpush1.bf16.msra.mxu0 0
        %1949 = vmatprep.subr.bf16.mxu0 0
        %1950 = vmatpush1.bf16.msra.mxu0 0
        %1951 = vmatprep.subr.bf16.mxu0 0
        %1952 = vmatpush1.bf16.msra.mxu0 0
        %1953 = vmatprep.subr.bf16.mxu0 0
        %1954 = vmatpush1.bf16.msra.mxu0 0
        %1955 = vmatprep.subr.bf16.mxu0 0
        %1956 = vmatpush1.bf16.msra.mxu0 0
        %1957 = vmatprep.subr.bf16.mxu0 0
        %1958 = vmatpush1.bf16.msra.mxu0 0
        %1959 = vmatprep.subr.bf16.mxu0 0
        %1960 = vmatpush1.bf16.msra.mxu0 0
        %1961 = vmatprep.mubr.bf16.mxu0 0
        %1962 = vmatmul.mubr.bf16.gmra.mrb[0].mxu0 %v1924
        %v1963 = vpop.f32.mrb[0].mxu0
        %v1964 = vadd.f32 0.0, %v1963
        %v1965 = vpop.f32.mrb[0].mxu0
        %v1966 = vpop.f32.mrb[0].mxu0
        %v1967 = vpop.f32.mrb[0].mxu0
        %1968 = vdwg.mxu0
        %v1969 = vadd.f32 %v1873, %v1964
        %v1970 = vadd.f32 %v1118, %v1969
        %v1971 = vld [vmem:[%s25] sm:$0x1]
        %v1972 = vld [vmem:[%s27] sm:$0x1]
        %v1973 = vsel %vm1162, %v1970, 0.0
        %1974 = vadd.xlane.f32.xlu0 %v1973
        %v1975 = vpop.xlane.xlu0 %1974
        %v1976 = vrcp.pop 32.0
        %v1977 = vmul.f32 %v1975, %v1976
        %v1978 = vsub.f32 %v1970, %v1977
        %v1979 = vmul.f32 %v1978, %v1978
        %v1980 = vsel %vm1162, %v1979, 0.0
        %1981 = vadd.xlane.f32.xlu0 %v1980
        %v1982 = vpop.xlane.xlu0 %1981
        %v1983 = vmul.f32 %v1982, %v1976
        %v1984 = vadd.f32 %v1983, 1e-05
        %v1985 = vrsqrt.pop %v1984
        %v1986 = vmul.f32 %v1978, %v1985
        %v1988 = vlaneseq
        %v1989 = vshrl.u32 %v1988, 7
        %v1990 = vsub.s32 0, %v1989
        %v1991 = vrot.slane %v1971, %v1990
        %v1993 = vmul.f32 %v1986, %v1991
        %v1995 = vlaneseq
        %v1996 = vshrl.u32 %v1995, 7
        %v1997 = vsub.s32 0, %v1996
        %v1998 = vrot.slane %v1972, %v1997
        %v2000 = vadd.f32 %v1993, %v1998
        %v2001 = vld [vmem:[#allocation2] sm:$0xf]
        %v2002 = vld [vmem:[#allocation2 + $0x4] sm:$0xf]
        %v2003 = vld [vmem:[#allocation2 + $0x8] sm:$0xf]
        %v2004 = vld [vmem:[#allocation2 + $0xc] sm:$0xf]
        %v2005 = vld [vmem:[#allocation5] sm:$0xf]
        %v2006 = vld [vmem:[#allocation5 + $0x4] sm:$0xf]
        %v2007 = vld [vmem:[#allocation5 + $0x8] sm:$0xf]
        %v2008 = vld [vmem:[#allocation5 + $0xc] sm:$0xf]
        %v2009 = vld [vmem:[#allocation7] sm:$0xf]
        %v2010 = vld [vmem:[#allocation7 + $0x4] sm:$0xf]
        %v2011 = vld [vmem:[#allocation7 + $0x8] sm:$0xf]
        %v2012 = vld [vmem:[#allocation7 + $0xc] sm:$0xf]
        %v2013 = vld [vmem:[#allocation8] sm:$0xf]
        %v2014 = vld [vmem:[#allocation8 + $0x4] sm:$0xf]
        %v2015 = vld [vmem:[#allocation8 + $0x8] sm:$0xf]
        %v2016 = vld [vmem:[#allocation8 + $0xc] sm:$0xf]
        %v2017 = vld [vmem:[%s37] sm:$0x1]
        %v2018 = vld [vmem:[%s39] sm:$0x1]
        %v2019 = vld [vmem:[%s41] sm:$0x1]
        %v2020 = vld [vmem:[%s43] sm:$0x1]
        %v2021 = vpack.c.bf16 %v2000, %v2000
        %v2022 = vpack.c.bf16 %v1120, %v1119
        %v2024 = vlaneseq
        %v2025 = vshrl.u32 %v2024, 7
        %v2026 = vsub.s32 0, %v2025
        %v2027 = vrot.slane %v2017, %v2026
        %v2033 = vunpack.c.l.b16 %v2001
        %v2034 = vunpack.c.l.b16 %v2002
        %v2035 = vunpack.c.l.b16 %v2003
        %v2036 = vunpack.c.l.b16 %v2004
        %v2037 = vpack.c.b16 %v2034, %v2033
        %v2038 = vpack.c.b16 %v2036, %v2035
        %v2042 = vsel %vm1162, %v2021, 0
        %2044 = vmatprep.subr.bf16.mxu0 0
        %2045 = vmatpush1.bf16.msra.mxu0 %v2037
        %2046 = vmatprep.subr.bf16.mxu0 0
        %2047 = vmatpush1.bf16.msra.mxu0 %v2038
        %2048 = vmatprep.subr.bf16.mxu0 0
        %2049 = vmatpush1.bf16.msra.mxu0 0
        %2050 = vmatprep.subr.bf16.mxu0 0
        %2051 = vmatpush1.bf16.msra.mxu0 0
        %2052 = vmatprep.subr.bf16.mxu0 0
        %2053 = vmatpush1.bf16.msra.mxu0 0
        %2054 = vmatprep.subr.bf16.mxu0 0
        %2055 = vmatpush1.bf16.msra.mxu0 0
        %2056 = vmatprep.subr.bf16.mxu0 0
        %2057 = vmatpush1.bf16.msra.mxu0 0
        %2058 = vmatprep.subr.bf16.mxu0 0
        %2059 = vmatpush1.bf16.msra.mxu0 0
        %2060 = vmatprep.subr.bf16.mxu0 0
        %2061 = vmatpush1.bf16.msra.mxu0 0
        %2062 = vmatprep.subr.bf16.mxu0 0
        %2063 = vmatpush1.bf16.msra.mxu0 0
        %2064 = vmatprep.subr.bf16.mxu0 0
        %2065 = vmatpush1.bf16.msra.mxu0 0
        %2066 = vmatprep.subr.bf16.mxu0 0
        %2067 = vmatpush1.bf16.msra.mxu0 0
        %2068 = vmatprep.subr.bf16.mxu0 0
        %2069 = vmatpush1.bf16.msra.mxu0 0
        %2070 = vmatprep.subr.bf16.mxu0 0
        %2071 = vmatpush1.bf16.msra.mxu0 0
        %2072 = vmatprep.subr.bf16.mxu0 0
        %2073 = vmatpush1.bf16.msra.mxu0 0
        %2074 = vmatprep.subr.bf16.mxu0 0
        %2075 = vmatpush1.bf16.msra.mxu0 0
        %2076 = vmatprep.mubr.bf16.mxu0 0
        %2077 = vmatmul.mubr.bf16.gmra.mrb[0].mxu0 %v2042
        %v2078 = vpop.f32.mrb[0].mxu0
        %v2079 = vadd.f32 %v2027, %v2078
        %v2080 = vpop.f32.mrb[0].mxu0
        %v2081 = vpop.f32.mrb[0].mxu0
        %v2082 = vpop.f32.mrb[0].mxu0
        %2083 = vdwg.mxu0
        %v2085 = vlaneseq
        %v2086 = vshrl.u32 %v2085, 7
        %v2087 = vsub.s32 0, %v2086
        %v2088 = vrot.slane %v2018, %v2087
        %v2094 = vunpack.c.l.b16 %v2005
        %v2095 = vunpack.c.l.b16 %v2006
        %v2096 = vunpack.c.l.b16 %v2007
        %v2097 = vunpack.c.l.b16 %v2008
        %v2098 = vpack.c.b16 %v2095, %v2094
        %v2099 = vpack.c.b16 %v2097, %v2096
        %v2103 = vsel %vm1162, %v2022, 0
        %2105 = vmatprep.subr.bf16.mxu0 0
        %2106 = vmatpush1.bf16.msra.mxu0 %v2098
        %2107 = vmatprep.subr.bf16.mxu0 0
        %2108 = vmatpush1.bf16.msra.mxu0 %v2099
        %2109 = vmatprep.subr.bf16.mxu0 0
        %2110 = vmatpush1.bf16.msra.mxu0 0
        %2111 = vmatprep.subr.bf16.mxu0 0
        %2112 = vmatpush1.bf16.msra.mxu0 0
        %2113 = vmatprep.subr.bf16.mxu0 0
        %2114 = vmatpush1.bf16.msra.mxu0 0
        %2115 = vmatprep.subr.bf16.mxu0 0
        %2116 = vmatpush1.bf16.msra.mxu0 0
        %2117 = vmatprep.subr.bf16.mxu0 0
        %2118 = vmatpush1.bf16.msra.mxu0 0
        %2119 = vmatprep.subr.bf16.mxu0 0
        %2120 = vmatpush1.bf16.msra.mxu0 0
        %2121 = vmatprep.subr.bf16.mxu0 0
        %2122 = vmatpush1.bf16.msra.mxu0 0
        %2123 = vmatprep.subr.bf16.mxu0 0
        %2124 = vmatpush1.bf16.msra.mxu0 0
        %2125 = vmatprep.subr.bf16.mxu0 0
        %2126 = vmatpush1.bf16.msra.mxu0 0
        %2127 = vmatprep.subr.bf16.mxu0 0
        %2128 = vmatpush1.bf16.msra.mxu0 0
        %2129 = vmatprep.subr.bf16.mxu0 0
        %2130 = vmatpush1.bf16.msra.mxu0 0
        %2131 = vmatprep.subr.bf16.mxu0 0
        %2132 = vmatpush1.bf16.msra.mxu0 0
        %2133 = vmatprep.subr.bf16.mxu0 0
        %2134 = vmatpush1.bf16.msra.mxu0 0
        %2135 = vmatprep.subr.bf16.mxu0 0
        %2136 = vmatpush1.bf16.msra.mxu0 0
        %2137 = vmatprep.mubr.bf16.mxu0 0
        %2138 = vmatmul.mubr.bf16.gmra.mrb[0].mxu0 %v2103
        %v2139 = vpop.f32.mrb[0].mxu0
        %v2140 = vadd.f32 %v2088, %v2139
        %v2141 = vpop.f32.mrb[0].mxu0
        %v2142 = vpop.f32.mrb[0].mxu0
        %v2143 = vadd.f32 %v2088, %v2142
        %v2144 = vpop.f32.mrb[0].mxu0
        %2145 = vdwg.mxu0
        %v2147 = vlaneseq
        %v2148 = vshrl.u32 %v2147, 7
        %v2149 = vsub.s32 0, %v2148
        %v2150 = vrot.slane %v2019, %v2149
        %v2156 = vunpack.c.l.b16 %v2009
        %v2157 = vunpack.c.l.b16 %v2010
        %v2158 = vunpack.c.l.b16 %v2011
        %v2159 = vunpack.c.l.b16 %v2012
        %v2160 = vpack.c.b16 %v2157, %v2156
        %v2161 = vpack.c.b16 %v2159, %v2158
        %2164 = vmatprep.subr.bf16.mxu0 0
        %2165 = vmatpush1.bf16.msra.mxu0 %v2160
        %2166 = vmatprep.subr.bf16.mxu0 0
        %2167 = vmatpush1.bf16.msra.mxu0 %v2161
        %2168 = vmatprep.subr.bf16.mxu0 0
        %2169 = vmatpush1.bf16.msra.mxu0 0
        %2170 = vmatprep.subr.bf16.mxu0 0
        %2171 = vmatpush1.bf16.msra.mxu0 0
        %2172 = vmatprep.subr.bf16.mxu0 0
        %2173 = vmatpush1.bf16.msra.mxu0 0
        %2174 = vmatprep.subr.bf16.mxu0 0
        %2175 = vmatpush1.bf16.msra.mxu0 0
        %2176 = vmatprep.subr.bf16.mxu0 0
        %2177 = vmatpush1.bf16.msra.mxu0 0
        %2178 = vmatprep.subr.bf16.mxu0 0
        %2179 = vmatpush1.bf16.msra.mxu0 0
        %2180 = vmatprep.subr.bf16.mxu0 0
        %2181 = vmatpush1.bf16.msra.mxu0 0
        %2182 = vmatprep.subr.bf16.mxu0 0
        %2183 = vmatpush1.bf16.msra.mxu0 0
        %2184 = vmatprep.subr.bf16.mxu0 0
        %2185 = vmatpush1.bf16.msra.mxu0 0
        %2186 = vmatprep.subr.bf16.mxu0 0
        %2187 = vmatpush1.bf16.msra.mxu0 0
        %2188 = vmatprep.subr.bf16.mxu0 0
        %2189 = vmatpush1.bf16.msra.mxu0 0
        %2190 = vmatprep.subr.bf16.mxu0 0
        %2191 = vmatpush1.bf16.msra.mxu0 0
        %2192 = vmatprep.subr.bf16.mxu0 0
        %2193 = vmatpush1.bf16.msra.mxu0 0
        %2194 = vmatprep.subr.bf16.mxu0 0
        %2195 = vmatpush1.bf16.msra.mxu0 0
        %2196 = vmatprep.mubr.bf16.mxu0 0
        %2197 = vmatmul.mubr.bf16.gmra.mrb[0].mxu0 %v2103
        %v2198 = vpop.f32.mrb[0].mxu0
        %v2199 = vadd.f32 %v2150, %v2198
        %v2200 = vpop.f32.mrb[0].mxu0
        %v2201 = vpop.f32.mrb[0].mxu0
        %v2202 = vadd.f32 %v2150, %v2201
        %v2203 = vpop.f32.mrb[0].mxu0
        %2204 = vdwg.mxu0
        %v2205 = vmul.f32 %v2079, 0.35355338
        %v2206 = vpack.c.bf16 %v2205, %v2205
        %v2207 = vpack.c.bf16 %v2143, %v2140
        %v2208 = vpack.c.bf16 %v2202, %v2199
        %v2210 = vsel %vm1326, %v2206, 0
        %v2213 = vsel %vm1326, %v2207, 0
        %2215 = vmatprep.subr.bf16.mxu0 0
        %2216 = vmatpush1.bf16.xpose.msra.mxu0 %v2213
        %2217 = vmatprep.subr.bf16.mxu0 0
        %2218 = vmatpush1.bf16.xpose.msra.mxu0 0
        %2219 = vmatprep.subr.bf16.mxu0 0
        %2220 = vmatpush1.bf16.xpose.msra.mxu0 0
        %2221 = vmatprep.subr.bf16.mxu0 0
        %2222 = vmatpush1.bf16.xpose.msra.mxu0 0
        %2223 = vmatprep.subr.bf16.mxu0 0
        %2224 = vmatpush1.bf16.xpose.msra.mxu0 0
        %2225 = vmatprep.subr.bf16.mxu0 0
        %2226 = vmatpush1.bf16.xpose.msra.mxu0 0
        %2227 = vmatprep.subr.bf16.mxu0 0
        %2228 = vmatpush1.bf16.xpose.msra.mxu0 0
        %2229 = vmatprep.subr.bf16.mxu0 0
        %2230 = vmatpush1.bf16.xpose.msra.mxu0 0
        %2231 = vmatprep.subr.bf16.mxu0 0
        %2232 = vmatpush1.bf16.xpose.msra.mxu0 0
        %2233 = vmatprep.subr.bf16.mxu0 0
        %2234 = vmatpush1.bf16.xpose.msra.mxu0 0
        %2235 = vmatprep.subr.bf16.mxu0 0
        %2236 = vmatpush1.bf16.xpose.msra.mxu0 0
        %2237 = vmatprep.subr.bf16.mxu0 0
        %2238 = vmatpush1.bf16.xpose.msra.mxu0 0
        %2239 = vmatprep.subr.bf16.mxu0 0
        %2240 = vmatpush1.bf16.xpose.msra.mxu0 0
        %2241 = vmatprep.subr.bf16.mxu0 0
        %2242 = vmatpush1.bf16.xpose.msra.mxu0 0
        %2243 = vmatprep.subr.bf16.mxu0 0
        %2244 = vmatpush1.bf16.xpose.msra.mxu0 0
        %2245 = vmatprep.subr.bf16.mxu0 0
        %2246 = vmatpush1.bf16.xpose.msra.mxu0 0
        %2247 = vmatprep.mubr.bf16.mxu0 0
        %2248 = vmatmul.mubr.bf16.gmra.mrb[0].mxu0 %v2210
        %v2249 = vpop.f32.mrb[0].mxu0
        %v2250 = vadd.f32 0.0, %v2249
        %v2251 = vpop.f32.mrb[0].mxu0
        %v2252 = vpop.f32.mrb[0].mxu0
        %v2253 = vpop.f32.mrb[0].mxu0
        %2254 = vdwg.mxu0
        %2256 = vrot.lane.b32.xlu0 %v2206, 120
        %v2257 = vpop.permute.xlu0 %2256
        %2259 = vrot.lane.b32.xlu0 %v2207, 120
        %v2260 = vpop.permute.xlu0 %2259
        %v2262 = vsel %vm1326, %v2257, 0
        %v2265 = vsel %vm1326, %v2260, 0
        %2267 = vmatprep.subr.bf16.mxu0 0
        %2268 = vmatpush1.bf16.xpose.msra.mxu0 %v2265
        %2269 = vmatprep.subr.bf16.mxu0 0
        %2270 = vmatpush1.bf16.xpose.msra.mxu0 0
        %2271 = vmatprep.subr.bf16.mxu0 0
        %2272 = vmatpush1.bf16.xpose.msra.mxu0 0
        %2273 = vmatprep.subr.bf16.mxu0 0
        %2274 = vmatpush1.bf16.xpose.msra.mxu0 0
        %2275 = vmatprep.subr.bf16.mxu0 0
        %2276 = vmatpush1.bf16.xpose.msra.mxu0 0
        %2277 = vmatprep.subr.bf16.mxu0 0
        %2278 = vmatpush1.bf16.xpose.msra.mxu0 0
        %2279 = vmatprep.subr.bf16.mxu0 0
        %2280 = vmatpush1.bf16.xpose.msra.mxu0 0
        %2281 = vmatprep.subr.bf16.mxu0 0
        %2282 = vmatpush1.bf16.xpose.msra.mxu0 0
        %2283 = vmatprep.subr.bf16.mxu0 0
        %2284 = vmatpush1.bf16.xpose.msra.mxu0 0
        %2285 = vmatprep.subr.bf16.mxu0 0
        %2286 = vmatpush1.bf16.xpose.msra.mxu0 0
        %2287 = vmatprep.subr.bf16.mxu0 0
        %2288 = vmatpush1.bf16.xpose.msra.mxu0 0
        %2289 = vmatprep.subr.bf16.mxu0 0
        %2290 = vmatpush1.bf16.xpose.msra.mxu0 0
        %2291 = vmatprep.subr.bf16.mxu0 0
        %2292 = vmatpush1.bf16.xpose.msra.mxu0 0
        %2293 = vmatprep.subr.bf16.mxu0 0
        %2294 = vmatpush1.bf16.xpose.msra.mxu0 0
        %2295 = vmatprep.subr.bf16.mxu0 0
        %2296 = vmatpush1.bf16.xpose.msra.mxu0 0
        %2297 = vmatprep.subr.bf16.mxu0 0
        %2298 = vmatpush1.bf16.xpose.msra.mxu0 0
        %2299 = vmatprep.mubr.bf16.mxu0 0
        %2300 = vmatmul.mubr.bf16.gmra.mrb[0].mxu0 %v2262
        %v2301 = vpop.f32.mrb[0].mxu0
        %v2302 = vadd.f32 0.0, %v2301
        %v2303 = vpop.f32.mrb[0].mxu0
        %v2304 = vpop.f32.mrb[0].mxu0
        %v2305 = vpop.f32.mrb[0].mxu0
        %2306 = vdwg.mxu0
        %2307 = vrot.lane.b32.xlu0 %v2206, 112
        %v2308 = vpop.permute.xlu0 %2307
        %2309 = vrot.lane.b32.xlu0 %v2207, 112
        %v2310 = vpop.permute.xlu0 %2309
        %v2312 = vsel %vm1326, %v2308, 0
        %v2315 = vsel %vm1326, %v2310, 0
        %2317 = vmatprep.subr.bf16.mxu0 0
        %2318 = vmatpush1.bf16.xpose.msra.mxu0 %v2315
        %2319 = vmatprep.subr.bf16.mxu0 0
        %2320 = vmatpush1.bf16.xpose.msra.mxu0 0
        %2321 = vmatprep.subr.bf16.mxu0 0
        %2322 = vmatpush1.bf16.xpose.msra.mxu0 0
        %2323 = vmatprep.subr.bf16.mxu0 0
        %2324 = vmatpush1.bf16.xpose.msra.mxu0 0
        %2325 = vmatprep.subr.bf16.mxu0 0
        %2326 = vmatpush1.bf16.xpose.msra.mxu0 0
        %2327 = vmatprep.subr.bf16.mxu0 0
        %2328 = vmatpush1.bf16.xpose.msra.mxu0 0
        %2329 = vmatprep.subr.bf16.mxu0 0
        %2330 = vmatpush1.bf16.xpose.msra.mxu0 0
        %2331 = vmatprep.subr.bf16.mxu0 0
        %2332 = vmatpush1.bf16.xpose.msra.mxu0 0
        %2333 = vmatprep.subr.bf16.mxu0 0
        %2334 = vmatpush1.bf16.xpose.msra.mxu0 0
        %2335 = vmatprep.subr.bf16.mxu0 0
        %2336 = vmatpush1.bf16.xpose.msra.mxu0 0
        %2337 = vmatprep.subr.bf16.mxu0 0
        %2338 = vmatpush1.bf16.xpose.msra.mxu0 0
        %2339 = vmatprep.subr.bf16.mxu0 0
        %2340 = vmatpush1.bf16.xpose.msra.mxu0 0
        %2341 = vmatprep.subr.bf16.mxu0 0
        %2342 = vmatpush1.bf16.xpose.msra.mxu0 0
        %2343 = vmatprep.subr.bf16.mxu0 0
        %2344 = vmatpush1.bf16.xpose.msra.mxu0 0
        %2345 = vmatprep.subr.bf16.mxu0 0
        %2346 = vmatpush1.bf16.xpose.msra.mxu0 0
        %2347 = vmatprep.subr.bf16.mxu0 0
        %2348 = vmatpush1.bf16.xpose.msra.mxu0 0
        %2349 = vmatprep.mubr.bf16.mxu0 0
        %2350 = vmatmul.mubr.bf16.gmra.mrb[0].mxu0 %v2312
        %v2351 = vpop.f32.mrb[0].mxu0
        %v2352 = vadd.f32 0.0, %v2351
        %v2353 = vpop.f32.mrb[0].mxu0
        %v2354 = vpop.f32.mrb[0].mxu0
        %v2355 = vpop.f32.mrb[0].mxu0
        %2356 = vdwg.mxu0
        %2357 = vrot.lane.b32.xlu0 %v2206, 104
        %v2358 = vpop.permute.xlu0 %2357
        %2359 = vrot.lane.b32.xlu0 %v2207, 104
        %v2360 = vpop.permute.xlu0 %2359
        %v2362 = vsel %vm1326, %v2358, 0
        %v2365 = vsel %vm1326, %v2360, 0
        %2367 = vmatprep.subr.bf16.mxu0 0
        %2368 = vmatpush1.bf16.xpose.msra.mxu0 %v2365
        %2369 = vmatprep.subr.bf16.mxu0 0
        %2370 = vmatpush1.bf16.xpose.msra.mxu0 0
        %2371 = vmatprep.subr.bf16.mxu0 0
        %2372 = vmatpush1.bf16.xpose.msra.mxu0 0
        %2373 = vmatprep.subr.bf16.mxu0 0
        %2374 = vmatpush1.bf16.xpose.msra.mxu0 0
        %2375 = vmatprep.subr.bf16.mxu0 0
        %2376 = vmatpush1.bf16.xpose.msra.mxu0 0
        %2377 = vmatprep.subr.bf16.mxu0 0
        %2378 = vmatpush1.bf16.xpose.msra.mxu0 0
        %2379 = vmatprep.subr.bf16.mxu0 0
        %2380 = vmatpush1.bf16.xpose.msra.mxu0 0
        %2381 = vmatprep.subr.bf16.mxu0 0
        %2382 = vmatpush1.bf16.xpose.msra.mxu0 0
        %2383 = vmatprep.subr.bf16.mxu0 0
        %2384 = vmatpush1.bf16.xpose.msra.mxu0 0
        %2385 = vmatprep.subr.bf16.mxu0 0
        %2386 = vmatpush1.bf16.xpose.msra.mxu0 0
        %2387 = vmatprep.subr.bf16.mxu0 0
        %2388 = vmatpush1.bf16.xpose.msra.mxu0 0
        %2389 = vmatprep.subr.bf16.mxu0 0
        %2390 = vmatpush1.bf16.xpose.msra.mxu0 0
        %2391 = vmatprep.subr.bf16.mxu0 0
        %2392 = vmatpush1.bf16.xpose.msra.mxu0 0
        %2393 = vmatprep.subr.bf16.mxu0 0
        %2394 = vmatpush1.bf16.xpose.msra.mxu0 0
        %2395 = vmatprep.subr.bf16.mxu0 0
        %2396 = vmatpush1.bf16.xpose.msra.mxu0 0
        %2397 = vmatprep.subr.bf16.mxu0 0
        %2398 = vmatpush1.bf16.xpose.msra.mxu0 0
        %2399 = vmatprep.mubr.bf16.mxu0 0
        %2400 = vmatmul.mubr.bf16.gmra.mrb[0].mxu0 %v2362
        %v2401 = vpop.f32.mrb[0].mxu0
        %v2402 = vadd.f32 0.0, %v2401
        %v2403 = vpop.f32.mrb[0].mxu0
        %v2404 = vpop.f32.mrb[0].mxu0
        %v2405 = vpop.f32.mrb[0].mxu0
        %2406 = vdwg.mxu0
        %vm2407 = vcmp.eq.f32.partialorder %v1122, 0.0
        %v2408 = vsel %vm2407, 1, 0
        %vm2409 = vcmp.eq.s32.totalorder %v2408, 1
        %v2410 = vsel %vm2409, -1e+10, %v2250
        %v2411 = vsel %vm2409, -1e+10, %v2302
        %v2412 = vsel %vm2409, -1e+10, %v2352
        %v2413 = vsel %vm2409, -1e+10, %v2402
        %vm2414 = vcmask 80896
        %v2415 = vsel %vm2414, %v2410, -inf
        %2416 = vmax.xlane.f32.xlu0 %v2415
        %v2417 = vpop.xlane.xlu0 %2416
        %v2418 = vsel %vm2414, %v2411, -inf
        %2419 = vmax.xlane.f32.xlu0 %v2418
        %v2420 = vpop.xlane.xlu0 %2419
        %v2421 = vsel %vm2414, %v2412, -inf
        %2422 = vmax.xlane.f32.xlu0 %v2421
        %v2423 = vpop.xlane.xlu0 %2422
        %v2424 = vsel %vm2414, %v2413, -inf
        %2425 = vmax.xlane.f32.xlu0 %v2424
        %v2426 = vpop.xlane.xlu0 %2425
        %v2427 = vsub.f32 %v2410, %v2417
        %v2428 = vsub.f32 %v2411, %v2420
        %v2429 = vsub.f32 %v2412, %v2423
        %v2430 = vsub.f32 %v2413, %v2426
        %v2431 = vmul.f32 %v2427, 1.442695
        %v2432 = vpow.pop %v2431
        %v2433 = vmul.f32 %v2428, 1.442695
        %v2434 = vpow.pop %v2433
        %v2435 = vmul.f32 %v2429, 1.442695
        %v2436 = vpow.pop %v2435
        %v2437 = vmul.f32 %v2430, 1.442695
        %v2438 = vpow.pop %v2437
        %v2439 = vsel %vm2414, %v2432, 0.0
        %2440 = vadd.xlane.f32.xlu0 %v2439
        %v2441 = vpop.xlane.xlu0 %2440
        %v2442 = vsel %vm2414, %v2434, 0.0
        %2443 = vadd.xlane.f32.xlu0 %v2442
        %v2444 = vpop.xlane.xlu0 %2443
        %v2445 = vsel %vm2414, %v2436, 0.0
        %2446 = vadd.xlane.f32.xlu0 %v2445
        %v2447 = vpop.xlane.xlu0 %2446
        %v2448 = vsel %vm2414, %v2438, 0.0
        %2449 = vadd.xlane.f32.xlu0 %v2448
        %v2450 = vpop.xlane.xlu0 %2449
        %v2451 = vrcp.pop %v2441
        %v2452 = vmul.f32 %v2432, %v2451
        %v2453 = vrcp.pop %v2444
        %v2454 = vmul.f32 %v2434, %v2453
        %v2455 = vrcp.pop %v2447
        %v2456 = vmul.f32 %v2436, %v2455
        %v2457 = vrcp.pop %v2450
        %v2458 = vmul.f32 %v2438, %v2457
        %v2459 = vpack.c.bf16 %v2452, %v2452
        %v2460 = vpack.c.bf16 %v2454, %v2454
        %v2461 = vpack.c.bf16 %v2456, %v2456
        %v2462 = vpack.c.bf16 %v2458, %v2458
        %v2464 = vsel %vm2414, %v2459, 0
        %vm2466 = vcmask 1044480
        %v2468 = vsel %vm2466, %v2208, 0
        %2470 = vmatprep.subr.bf16.mxu0 0
        %2471 = vmatpush1.bf16.msra.mxu0 %v2468
        %2472 = vmatprep.subr.bf16.mxu0 0
        %2473 = vmatpush1.bf16.msra.mxu0 0
        %2474 = vmatprep.subr.bf16.mxu0 0
        %2475 = vmatpush1.bf16.msra.mxu0 0
        %2476 = vmatprep.subr.bf16.mxu0 0
        %2477 = vmatpush1.bf16.msra.mxu0 0
        %2478 = vmatprep.subr.bf16.mxu0 0
        %2479 = vmatpush1.bf16.msra.mxu0 0
        %2480 = vmatprep.subr.bf16.mxu0 0
        %2481 = vmatpush1.bf16.msra.mxu0 0
        %2482 = vmatprep.subr.bf16.mxu0 0
        %2483 = vmatpush1.bf16.msra.mxu0 0
        %2484 = vmatprep.subr.bf16.mxu0 0
        %2485 = vmatpush1.bf16.msra.mxu0 0
        %2486 = vmatprep.subr.bf16.mxu0 0
        %2487 = vmatpush1.bf16.msra.mxu0 0
        %2488 = vmatprep.subr.bf16.mxu0 0
        %2489 = vmatpush1.bf16.msra.mxu0 0
        %2490 = vmatprep.subr.bf16.mxu0 0
        %2491 = vmatpush1.bf16.msra.mxu0 0
        %2492 = vmatprep.subr.bf16.mxu0 0
        %2493 = vmatpush1.bf16.msra.mxu0 0
        %2494 = vmatprep.subr.bf16.mxu0 0
        %2495 = vmatpush1.bf16.msra.mxu0 0
        %2496 = vmatprep.subr.bf16.mxu0 0
        %2497 = vmatpush1.bf16.msra.mxu0 0
        %2498 = vmatprep.subr.bf16.mxu0 0
        %2499 = vmatpush1.bf16.msra.mxu0 0
        %2500 = vmatprep.subr.bf16.mxu0 0
        %2501 = vmatpush1.bf16.msra.mxu0 0
        %2502 = vmatprep.mubr.bf16.mxu0 0
        %2503 = vmatmul.mubr.bf16.gmra.mrb[0].mxu0 %v2464
        %v2504 = vpop.f32.mrb[0].mxu0
        %v2505 = vadd.f32 0.0, %v2504
        %v2506 = vpop.f32.mrb[0].mxu0
        %v2507 = vpop.f32.mrb[0].mxu0
        %v2508 = vpop.f32.mrb[0].mxu0
        %2509 = vdwg.mxu0
        %v2510 = vpack.c.bf16 %v2505, %v2505
        %v2512 = vsel %vm1326, %v2510, 0
        %v2515 = vsel %vm1583, %v2013, 0
        %2517 = vmatprep.subr.bf16.mxu0 0
        %2518 = vmatpush1.bf16.msra.mxu0 %v2515
        %2519 = vmatprep.subr.bf16.mxu0 0
        %2520 = vmatpush1.bf16.msra.mxu0 0
        %2521 = vmatprep.subr.bf16.mxu0 0
        %2522 = vmatpush1.bf16.msra.mxu0 0
        %2523 = vmatprep.subr.bf16.mxu0 0
        %2524 = vmatpush1.bf16.msra.mxu0 0
        %2525 = vmatprep.subr.bf16.mxu0 0
        %2526 = vmatpush1.bf16.msra.mxu0 0
        %2527 = vmatprep.subr.bf16.mxu0 0
        %2528 = vmatpush1.bf16.msra.mxu0 0
        %2529 = vmatprep.subr.bf16.mxu0 0
        %2530 = vmatpush1.bf16.msra.mxu0 0
        %2531 = vmatprep.subr.bf16.mxu0 0
        %2532 = vmatpush1.bf16.msra.mxu0 0
        %2533 = vmatprep.subr.bf16.mxu0 0
        %2534 = vmatpush1.bf16.msra.mxu0 0
        %2535 = vmatprep.subr.bf16.mxu0 0
        %2536 = vmatpush1.bf16.msra.mxu0 0
        %2537 = vmatprep.subr.bf16.mxu0 0
        %2538 = vmatpush1.bf16.msra.mxu0 0
        %2539 = vmatprep.subr.bf16.mxu0 0
        %2540 = vmatpush1.bf16.msra.mxu0 0
        %2541 = vmatprep.subr.bf16.mxu0 0
        %2542 = vmatpush1.bf16.msra.mxu0 0
        %2543 = vmatprep.subr.bf16.mxu0 0
        %2544 = vmatpush1.bf16.msra.mxu0 0
        %2545 = vmatprep.subr.bf16.mxu0 0
        %2546 = vmatpush1.bf16.msra.mxu0 0
        %2547 = vmatprep.subr.bf16.mxu0 0
        %2548 = vmatpush1.bf16.msra.mxu0 0
        %2549 = vmatprep.mubr.bf16.mxu0 0
        %2550 = vmatmul.mubr.bf16.gmra.mrb[0].mxu0 %v2512
        %v2551 = vpop.f32.mrb[0].mxu0
        %v2552 = vadd.f32 0.0, %v2551
        %v2553 = vpop.f32.mrb[0].mxu0
        %v2554 = vpop.f32.mrb[0].mxu0
        %v2555 = vpop.f32.mrb[0].mxu0
        %2556 = vdwg.mxu0
        %v2558 = vlaneseq
        %v2559 = vshrl.u32 %v2558, 7
        %v2560 = vsub.s32 0, %v2559
        %v2561 = vrot.slane %v2020, %v2560
        %v2563 = vadd.f32 %v2561, %v2552
        %2565 = vrot.lane.b32.xlu0 %v2208, 120
        %v2566 = vpop.permute.xlu0 %2565
        %v2568 = vsel %vm2414, %v2460, 0
        %v2571 = vsel %vm2466, %v2566, 0
        %2573 = vmatprep.subr.bf16.mxu0 0
        %2574 = vmatpush1.bf16.msra.mxu0 %v2571
        %2575 = vmatprep.subr.bf16.mxu0 0
        %2576 = vmatpush1.bf16.msra.mxu0 0
        %2577 = vmatprep.subr.bf16.mxu0 0
        %2578 = vmatpush1.bf16.msra.mxu0 0
        %2579 = vmatprep.subr.bf16.mxu0 0
        %2580 = vmatpush1.bf16.msra.mxu0 0
        %2581 = vmatprep.subr.bf16.mxu0 0
        %2582 = vmatpush1.bf16.msra.mxu0 0
        %2583 = vmatprep.subr.bf16.mxu0 0
        %2584 = vmatpush1.bf16.msra.mxu0 0
        %2585 = vmatprep.subr.bf16.mxu0 0
        %2586 = vmatpush1.bf16.msra.mxu0 0
        %2587 = vmatprep.subr.bf16.mxu0 0
        %2588 = vmatpush1.bf16.msra.mxu0 0
        %2589 = vmatprep.subr.bf16.mxu0 0
        %2590 = vmatpush1.bf16.msra.mxu0 0
        %2591 = vmatprep.subr.bf16.mxu0 0
        %2592 = vmatpush1.bf16.msra.mxu0 0
        %2593 = vmatprep.subr.bf16.mxu0 0
        %2594 = vmatpush1.bf16.msra.mxu0 0
        %2595 = vmatprep.subr.bf16.mxu0 0
        %2596 = vmatpush1.bf16.msra.mxu0 0
        %2597 = vmatprep.subr.bf16.mxu0 0
        %2598 = vmatpush1.bf16.msra.mxu0 0
        %2599 = vmatprep.subr.bf16.mxu0 0
        %2600 = vmatpush1.bf16.msra.mxu0 0
        %2601 = vmatprep.subr.bf16.mxu0 0
        %2602 = vmatpush1.bf16.msra.mxu0 0
        %2603 = vmatprep.subr.bf16.mxu0 0
        %2604 = vmatpush1.bf16.msra.mxu0 0
        %2605 = vmatprep.mubr.bf16.mxu0 0
        %2606 = vmatmul.mubr.bf16.gmra.mrb[0].mxu0 %v2568
        %v2607 = vpop.f32.mrb[0].mxu0
        %v2608 = vadd.f32 0.0, %v2607
        %v2609 = vpop.f32.mrb[0].mxu0
        %v2610 = vpop.f32.mrb[0].mxu0
        %v2611 = vpop.f32.mrb[0].mxu0
        %2612 = vdwg.mxu0
        %v2613 = vpack.c.bf16 %v2608, %v2608
        %v2615 = vsel %vm1326, %v2613, 0
        %v2618 = vsel %vm1583, %v2014, 0
        %2620 = vmatprep.subr.bf16.mxu0 0
        %2621 = vmatpush1.bf16.msra.mxu0 %v2618
        %2622 = vmatprep.subr.bf16.mxu0 0
        %2623 = vmatpush1.bf16.msra.mxu0 0
        %2624 = vmatprep.subr.bf16.mxu0 0
        %2625 = vmatpush1.bf16.msra.mxu0 0
        %2626 = vmatprep.subr.bf16.mxu0 0
        %2627 = vmatpush1.bf16.msra.mxu0 0
        %2628 = vmatprep.subr.bf16.mxu0 0
        %2629 = vmatpush1.bf16.msra.mxu0 0
        %2630 = vmatprep.subr.bf16.mxu0 0
        %2631 = vmatpush1.bf16.msra.mxu0 0
        %2632 = vmatprep.subr.bf16.mxu0 0
        %2633 = vmatpush1.bf16.msra.mxu0 0
        %2634 = vmatprep.subr.bf16.mxu0 0
        %2635 = vmatpush1.bf16.msra.mxu0 0
        %2636 = vmatprep.subr.bf16.mxu0 0
        %2637 = vmatpush1.bf16.msra.mxu0 0
        %2638 = vmatprep.subr.bf16.mxu0 0
        %2639 = vmatpush1.bf16.msra.mxu0 0
        %2640 = vmatprep.subr.bf16.mxu0 0
        %2641 = vmatpush1.bf16.msra.mxu0 0
        %2642 = vmatprep.subr.bf16.mxu0 0
        %2643 = vmatpush1.bf16.msra.mxu0 0
        %2644 = vmatprep.subr.bf16.mxu0 0
        %2645 = vmatpush1.bf16.msra.mxu0 0
        %2646 = vmatprep.subr.bf16.mxu0 0
        %2647 = vmatpush1.bf16.msra.mxu0 0
        %2648 = vmatprep.subr.bf16.mxu0 0
        %2649 = vmatpush1.bf16.msra.mxu0 0
        %2650 = vmatprep.subr.bf16.mxu0 0
        %2651 = vmatpush1.bf16.msra.mxu0 0
        %2652 = vmatprep.mubr.bf16.mxu0 0
        %2653 = vmatmul.mubr.bf16.gmra.mrb[0].mxu0 %v2615
        %v2654 = vpop.f32.mrb[0].mxu0
        %v2655 = vadd.f32 0.0, %v2654
        %v2656 = vpop.f32.mrb[0].mxu0
        %v2657 = vpop.f32.mrb[0].mxu0
        %v2658 = vpop.f32.mrb[0].mxu0
        %2659 = vdwg.mxu0
        %v2660 = vadd.f32 %v2563, %v2655
        %2661 = vrot.lane.b32.xlu0 %v2208, 112
        %v2662 = vpop.permute.xlu0 %2661
        %v2664 = vsel %vm2414, %v2461, 0
        %v2667 = vsel %vm2466, %v2662, 0
        %2669 = vmatprep.subr.bf16.mxu0 0
        %2670 = vmatpush1.bf16.msra.mxu0 %v2667
        %2671 = vmatprep.subr.bf16.mxu0 0
        %2672 = vmatpush1.bf16.msra.mxu0 0
        %2673 = vmatprep.subr.bf16.mxu0 0
        %2674 = vmatpush1.bf16.msra.mxu0 0
        %2675 = vmatprep.subr.bf16.mxu0 0
        %2676 = vmatpush1.bf16.msra.mxu0 0
        %2677 = vmatprep.subr.bf16.mxu0 0
        %2678 = vmatpush1.bf16.msra.mxu0 0
        %2679 = vmatprep.subr.bf16.mxu0 0
        %2680 = vmatpush1.bf16.msra.mxu0 0
        %2681 = vmatprep.subr.bf16.mxu0 0
        %2682 = vmatpush1.bf16.msra.mxu0 0
        %2683 = vmatprep.subr.bf16.mxu0 0
        %2684 = vmatpush1.bf16.msra.mxu0 0
        %2685 = vmatprep.subr.bf16.mxu0 0
        %2686 = vmatpush1.bf16.msra.mxu0 0
        %2687 = vmatprep.subr.bf16.mxu0 0
        %2688 = vmatpush1.bf16.msra.mxu0 0
        %2689 = vmatprep.subr.bf16.mxu0 0
        %2690 = vmatpush1.bf16.msra.mxu0 0
        %2691 = vmatprep.subr.bf16.mxu0 0
        %2692 = vmatpush1.bf16.msra.mxu0 0
        %2693 = vmatprep.subr.bf16.mxu0 0
        %2694 = vmatpush1.bf16.msra.mxu0 0
        %2695 = vmatprep.subr.bf16.mxu0 0
        %2696 = vmatpush1.bf16.msra.mxu0 0
        %2697 = vmatprep.subr.bf16.mxu0 0
        %2698 = vmatpush1.bf16.msra.mxu0 0
        %2699 = vmatprep.subr.bf16.mxu0 0
        %2700 = vmatpush1.bf16.msra.mxu0 0
        %2701 = vmatprep.mubr.bf16.mxu0 0
        %2702 = vmatmul.mubr.bf16.gmra.mrb[0].mxu0 %v2664
        %v2703 = vpop.f32.mrb[0].mxu0
        %v2704 = vadd.f32 0.0, %v2703
        %v2705 = vpop.f32.mrb[0].mxu0
        %v2706 = vpop.f32.mrb[0].mxu0
        %v2707 = vpop.f32.mrb[0].mxu0
        %2708 = vdwg.mxu0
        %v2709 = vpack.c.bf16 %v2704, %v2704
        %v2711 = vsel %vm1326, %v2709, 0
        %v2714 = vsel %vm1583, %v2015, 0
        %2716 = vmatprep.subr.bf16.mxu0 0
        %2717 = vmatpush1.bf16.msra.mxu0 %v2714
        %2718 = vmatprep.subr.bf16.mxu0 0
        %2719 = vmatpush1.bf16.msra.mxu0 0
        %2720 = vmatprep.subr.bf16.mxu0 0
        %2721 = vmatpush1.bf16.msra.mxu0 0
        %2722 = vmatprep.subr.bf16.mxu0 0
        %2723 = vmatpush1.bf16.msra.mxu0 0
        %2724 = vmatprep.subr.bf16.mxu0 0
        %2725 = vmatpush1.bf16.msra.mxu0 0
        %2726 = vmatprep.subr.bf16.mxu0 0
        %2727 = vmatpush1.bf16.msra.mxu0 0
        %2728 = vmatprep.subr.bf16.mxu0 0
        %2729 = vmatpush1.bf16.msra.mxu0 0
        %2730 = vmatprep.subr.bf16.mxu0 0
        %2731 = vmatpush1.bf16.msra.mxu0 0
        %2732 = vmatprep.subr.bf16.mxu0 0
        %2733 = vmatpush1.bf16.msra.mxu0 0
        %2734 = vmatprep.subr.bf16.mxu0 0
        %2735 = vmatpush1.bf16.msra.mxu0 0
        %2736 = vmatprep.subr.bf16.mxu0 0
        %2737 = vmatpush1.bf16.msra.mxu0 0
        %2738 = vmatprep.subr.bf16.mxu0 0
        %2739 = vmatpush1.bf16.msra.mxu0 0
        %2740 = vmatprep.subr.bf16.mxu0 0
        %2741 = vmatpush1.bf16.msra.mxu0 0
        %2742 = vmatprep.subr.bf16.mxu0 0
        %2743 = vmatpush1.bf16.msra.mxu0 0
        %2744 = vmatprep.subr.bf16.mxu0 0
        %2745 = vmatpush1.bf16.msra.mxu0 0
        %2746 = vmatprep.subr.bf16.mxu0 0
        %2747 = vmatpush1.bf16.msra.mxu0 0
        %2748 = vmatprep.mubr.bf16.mxu0 0
        %2749 = vmatmul.mubr.bf16.gmra.mrb[0].mxu0 %v2711
        %v2750 = vpop.f32.mrb[0].mxu0
        %v2751 = vadd.f32 0.0, %v2750
        %v2752 = vpop.f32.mrb[0].mxu0
        %v2753 = vpop.f32.mrb[0].mxu0
        %v2754 = vpop.f32.mrb[0].mxu0
        %2755 = vdwg.mxu0
        %v2756 = vadd.f32 %v2660, %v2751
        %2757 = vrot.lane.b32.xlu0 %v2208, 104
        %v2758 = vpop.permute.xlu0 %2757
        %v2760 = vsel %vm2414, %v2462, 0
        %v2763 = vsel %vm2466, %v2758, 0
        %2765 = vmatprep.subr.bf16.mxu0 0
        %2766 = vmatpush1.bf16.msra.mxu0 %v2763
        %2767 = vmatprep.subr.bf16.mxu0 0
        %2768 = vmatpush1.bf16.msra.mxu0 0
        %2769 = vmatprep.subr.bf16.mxu0 0
        %2770 = vmatpush1.bf16.msra.mxu0 0
        %2771 = vmatprep.subr.bf16.mxu0 0
        %2772 = vmatpush1.bf16.msra.mxu0 0
        %2773 = vmatprep.subr.bf16.mxu0 0
        %2774 = vmatpush1.bf16.msra.mxu0 0
        %2775 = vmatprep.subr.bf16.mxu0 0
        %2776 = vmatpush1.bf16.msra.mxu0 0
        %2777 = vmatprep.subr.bf16.mxu0 0
        %2778 = vmatpush1.bf16.msra.mxu0 0
        %2779 = vmatprep.subr.bf16.mxu0 0
        %2780 = vmatpush1.bf16.msra.mxu0 0
        %2781 = vmatprep.subr.bf16.mxu0 0
        %2782 = vmatpush1.bf16.msra.mxu0 0
        %2783 = vmatprep.subr.bf16.mxu0 0
        %2784 = vmatpush1.bf16.msra.mxu0 0
        %2785 = vmatprep.subr.bf16.mxu0 0
        %2786 = vmatpush1.bf16.msra.mxu0 0
        %2787 = vmatprep.subr.bf16.mxu0 0
        %2788 = vmatpush1.bf16.msra.mxu0 0
        %2789 = vmatprep.subr.bf16.mxu0 0
        %2790 = vmatpush1.bf16.msra.mxu0 0
        %2791 = vmatprep.subr.bf16.mxu0 0
        %2792 = vmatpush1.bf16.msra.mxu0 0
        %2793 = vmatprep.subr.bf16.mxu0 0
        %2794 = vmatpush1.bf16.msra.mxu0 0
        %2795 = vmatprep.subr.bf16.mxu0 0
        %2796 = vmatpush1.bf16.msra.mxu0 0
        %2797 = vmatprep.mubr.bf16.mxu0 0
        %2798 = vmatmul.mubr.bf16.gmra.mrb[0].mxu0 %v2760
        %v2799 = vpop.f32.mrb[0].mxu0
        %v2800 = vadd.f32 0.0, %v2799
        %v2801 = vpop.f32.mrb[0].mxu0
        %v2802 = vpop.f32.mrb[0].mxu0
        %v2803 = vpop.f32.mrb[0].mxu0
        %2804 = vdwg.mxu0
        %v2805 = vpack.c.bf16 %v2800, %v2800
        %v2807 = vsel %vm1326, %v2805, 0
        %v2810 = vsel %vm1583, %v2016, 0
        %2812 = vmatprep.subr.bf16.mxu0 0
        %2813 = vmatpush1.bf16.msra.mxu0 %v2810
        %2814 = vmatprep.subr.bf16.mxu0 0
        %2815 = vmatpush1.bf16.msra.mxu0 0
        %2816 = vmatprep.subr.bf16.mxu0 0
        %2817 = vmatpush1.bf16.msra.mxu0 0
        %2818 = vmatprep.subr.bf16.mxu0 0
        %2819 = vmatpush1.bf16.msra.mxu0 0
        %2820 = vmatprep.subr.bf16.mxu0 0
        %2821 = vmatpush1.bf16.msra.mxu0 0
        %2822 = vmatprep.subr.bf16.mxu0 0
        %2823 = vmatpush1.bf16.msra.mxu0 0
        %2824 = vmatprep.subr.bf16.mxu0 0
        %2825 = vmatpush1.bf16.msra.mxu0 0
        %2826 = vmatprep.subr.bf16.mxu0 0
        %2827 = vmatpush1.bf16.msra.mxu0 0
        %2828 = vmatprep.subr.bf16.mxu0 0
        %2829 = vmatpush1.bf16.msra.mxu0 0
        %2830 = vmatprep.subr.bf16.mxu0 0
        %2831 = vmatpush1.bf16.msra.mxu0 0
        %2832 = vmatprep.subr.bf16.mxu0 0
        %2833 = vmatpush1.bf16.msra.mxu0 0
        %2834 = vmatprep.subr.bf16.mxu0 0
        %2835 = vmatpush1.bf16.msra.mxu0 0
        %2836 = vmatprep.subr.bf16.mxu0 0
        %2837 = vmatpush1.bf16.msra.mxu0 0
        %2838 = vmatprep.subr.bf16.mxu0 0
        %2839 = vmatpush1.bf16.msra.mxu0 0
        %2840 = vmatprep.subr.bf16.mxu0 0
        %2841 = vmatpush1.bf16.msra.mxu0 0
        %2842 = vmatprep.subr.bf16.mxu0 0
        %2843 = vmatpush1.bf16.msra.mxu0 0
        %2844 = vmatprep.mubr.bf16.mxu0 0
        %2845 = vmatmul.mubr.bf16.gmra.mrb[0].mxu0 %v2807
        %v2846 = vpop.f32.mrb[0].mxu0
        %v2847 = vadd.f32 0.0, %v2846
        %v2848 = vpop.f32.mrb[0].mxu0
        %v2849 = vpop.f32.mrb[0].mxu0
        %v2850 = vpop.f32.mrb[0].mxu0
        %2851 = vdwg.mxu0
        %v2852 = vadd.f32 %v2756, %v2847
        %v2853 = vadd.f32 %v2000, %v2852
        %v2854 = vld [vmem:[%s45] sm:$0x1]
        %v2855 = vld [vmem:[%s47] sm:$0x1]
        %v2856 = vsel %vm1162, %v2853, 0.0
        %2857 = vadd.xlane.f32.xlu0 %v2856
        %v2858 = vpop.xlane.xlu0 %2857
        %v2859 = vmul.f32 %v2858, %v1976
        %v2860 = vsub.f32 %v2853, %v2859
        %v2861 = vmul.f32 %v2860, %v2860
        %v2862 = vsel %vm1162, %v2861, 0.0
        %2863 = vadd.xlane.f32.xlu0 %v2862
        %v2864 = vpop.xlane.xlu0 %2863
        %v2865 = vmul.f32 %v2864, %v1976
        %v2866 = vadd.f32 %v2865, 1e-05
        %v2867 = vrsqrt.pop %v2866
        %v2868 = vmul.f32 %v2860, %v2867
        %v2870 = vlaneseq
        %v2871 = vshrl.u32 %v2870, 7
        %v2872 = vsub.s32 0, %v2871
        %v2873 = vrot.slane %v2854, %v2872
        %v2875 = vmul.f32 %v2868, %v2873
        %v2877 = vlaneseq
        %v2878 = vshrl.u32 %v2877, 7
        %v2879 = vsub.s32 0, %v2878
        %v2880 = vrot.slane %v2855, %v2879
        %v2882 = vadd.f32 %v2875, %v2880
        %v2883 = vpack.c.bf16 %v2882, %v2882
        %v2884 = vld [vmem:[#allocation10] sm:$0xf]
        %v2885 = vld [vmem:[#allocation10 + $0x4] sm:$0xf]
        %v2886 = vld [vmem:[#allocation10 + $0x8] sm:$0xf]
        %v2887 = vld [vmem:[#allocation10 + $0xc] sm:$0xf]
        %v2888 = vld [vmem:[#allocation11] sm:$0x1]
        %v2890 = vlaneseq
        %v2891 = vshrl.u32 %v2890, 7
        %v2892 = vsub.s32 0, %v2891
        %v2893 = vrot.slane %v2888, %v2892
        %v2899 = vunpack.c.l.b16 %v2884
        %v2900 = vunpack.c.l.b16 %v2885
        %v2901 = vunpack.c.l.b16 %v2886
        %v2902 = vunpack.c.l.b16 %v2887
        %v2903 = vpack.c.b16 %v2900, %v2899
        %v2904 = vpack.c.b16 %v2902, %v2901
        %v2908 = vsel %vm1162, %v2883, 0
        %2910 = vmatprep.subr.bf16.mxu0 0
        %2911 = vmatpush1.bf16.msra.mxu0 %v2903
        %2912 = vmatprep.subr.bf16.mxu0 0
        %2913 = vmatpush1.bf16.msra.mxu0 %v2904
        %2914 = vmatprep.subr.bf16.mxu0 0
        %2915 = vmatpush1.bf16.msra.mxu0 0
        %2916 = vmatprep.subr.bf16.mxu0 0
        %2917 = vmatpush1.bf16.msra.mxu0 0
        %2918 = vmatprep.subr.bf16.mxu0 0
        %2919 = vmatpush1.bf16.msra.mxu0 0
        %2920 = vmatprep.subr.bf16.mxu0 0
        %2921 = vmatpush1.bf16.msra.mxu0 0
        %2922 = vmatprep.subr.bf16.mxu0 0
        %2923 = vmatpush1.bf16.msra.mxu0 0
        %2924 = vmatprep.subr.bf16.mxu0 0
        %2925 = vmatpush1.bf16.msra.mxu0 0
        %2926 = vmatprep.subr.bf16.mxu0 0
        %2927 = vmatpush1.bf16.msra.mxu0 0
        %2928 = vmatprep.subr.bf16.mxu0 0
        %2929 = vmatpush1.bf16.msra.mxu0 0
        %2930 = vmatprep.subr.bf16.mxu0 0
        %2931 = vmatpush1.bf16.msra.mxu0 0
        %2932 = vmatprep.subr.bf16.mxu0 0
        %2933 = vmatpush1.bf16.msra.mxu0 0
        %2934 = vmatprep.subr.bf16.mxu0 0
        %2935 = vmatpush1.bf16.msra.mxu0 0
        %2936 = vmatprep.subr.bf16.mxu0 0
        %2937 = vmatpush1.bf16.msra.mxu0 0
        %2938 = vmatprep.subr.bf16.mxu0 0
        %2939 = vmatpush1.bf16.msra.mxu0 0
        %2940 = vmatprep.subr.bf16.mxu0 0
        %2941 = vmatpush1.bf16.msra.mxu0 0
        %2942 = vmatprep.mubr.bf16.mxu0 0
        %2943 = vmatmul.mubr.bf16.gmra.mrb[0].mxu0 %v2908
        %v2944 = vpop.f32.mrb[0].mxu0
        %v2945 = vadd.f32 %v2893, %v2944
        %v2946 = vpop.f32.mrb[0].mxu0
        %v2947 = vpop.f32.mrb[0].mxu0
        %v2948 = vpop.f32.mrb[0].mxu0
        %2949 = vdwg.mxu0
        %v2950 = vmax.f32 %v2945, 0.0
        %v2951 = vpack.c.bf16 %v2950, %v2950
        %v2952 = vld [vmem:[%s53] sm:$0xf]
        %v2953 = vld [vmem:[%s53 + $0x4] sm:$0xf]
        %v2954 = vld [vmem:[%s53 + $0x8] sm:$0xf]
        %v2955 = vld [vmem:[%s53 + $0xc] sm:$0xf]
        %v2956 = vld [vmem:[%s53 + $0x10] sm:$0xf]
        %v2957 = vld [vmem:[%s53 + $0x14] sm:$0xf]
        %v2958 = vld [vmem:[%s53 + $0x18] sm:$0xf]
        %v2959 = vld [vmem:[%s53 + $0x1c] sm:$0xf]
        %v2960 = vld [vmem:[#allocation13] sm:$0x1]
        %v2962 = vlaneseq
        %v2963 = vshrl.u32 %v2962, 7
        %v2964 = vsub.s32 0, %v2963
        %v2965 = vrot.slane %v2960, %v2964
        %v2975 = vunpack.c.l.b16 %v2952
        %v2976 = vunpack.c.l.b16 %v2953
        %v2977 = vunpack.c.l.b16 %v2954
        %v2978 = vunpack.c.l.b16 %v2955
        %v2979 = vunpack.c.l.b16 %v2956
        %v2980 = vunpack.c.l.b16 %v2957
        %v2981 = vunpack.c.l.b16 %v2958
        %v2982 = vunpack.c.l.b16 %v2959
        %v2983 = vpack.c.b16 %v2976, %v2975
        %v2984 = vpack.c.b16 %v2978, %v2977
        %v2985 = vpack.c.b16 %v2980, %v2979
        %v2986 = vpack.c.b16 %v2982, %v2981
        %vm2991 = vcmask 523264
        %v2993 = vsel %vm2991, %v2951, 0
        %2995 = vmatprep.subr.bf16.mxu0 0
        %2996 = vmatpush1.bf16.msra.mxu0 %v2983
        %2997 = vmatprep.subr.bf16.mxu0 0
        %2998 = vmatpush1.bf16.msra.mxu0 %v2984
        %2999 = vmatprep.subr.bf16.mxu0 0
        %3000 = vmatpush1.bf16.msra.mxu0 %v2985
        %3001 = vmatprep.subr.bf16.mxu0 0
        %3002 = vmatpush1.bf16.msra.mxu0 %v2986
        %3003 = vmatprep.subr.bf16.mxu0 0
        %3004 = vmatpush1.bf16.msra.mxu0 0
        %3005 = vmatprep.subr.bf16.mxu0 0
        %3006 = vmatpush1.bf16.msra.mxu0 0
        %3007 = vmatprep.subr.bf16.mxu0 0
        %3008 = vmatpush1.bf16.msra.mxu0 0
        %3009 = vmatprep.subr.bf16.mxu0 0
        %3010 = vmatpush1.bf16.msra.mxu0 0
        %3011 = vmatprep.subr.bf16.mxu0 0
        %3012 = vmatpush1.bf16.msra.mxu0 0
        %3013 = vmatprep.subr.bf16.mxu0 0
        %3014 = vmatpush1.bf16.msra.mxu0 0
        %3015 = vmatprep.subr.bf16.mxu0 0
        %3016 = vmatpush1.bf16.msra.mxu0 0
        %3017 = vmatprep.subr.bf16.mxu0 0
        %3018 = vmatpush1.bf16.msra.mxu0 0
        %3019 = vmatprep.subr.bf16.mxu0 0
        %3020 = vmatpush1.bf16.msra.mxu0 0
        %3021 = vmatprep.subr.bf16.mxu0 0
        %3022 = vmatpush1.bf16.msra.mxu0 0
        %3023 = vmatprep.subr.bf16.mxu0 0
        %3024 = vmatpush1.bf16.msra.mxu0 0
        %3025 = vmatprep.subr.bf16.mxu0 0
        %3026 = vmatpush1.bf16.msra.mxu0 0
        %3027 = vmatprep.mubr.bf16.mxu0 0
        %3028 = vmatmul.mubr.bf16.gmra.mrb[0].mxu0 %v2993
        %v3029 = vpop.f32.mrb[0].mxu0
        %v3030 = vadd.f32 %v2965, %v3029
        %v3031 = vpop.f32.mrb[0].mxu0
        %v3032 = vpop.f32.mrb[0].mxu0
        %v3033 = vpop.f32.mrb[0].mxu0
        %3034 = vdwg.mxu0
        %v3035 = vadd.f32 %v2882, %v3030
        %v3036 = vld [vmem:[%s57] sm:$0x1]
        %v3037 = vld [vmem:[%s59] sm:$0x1]
        %v3038 = vsel %vm1162, %v3035, 0.0
        %3039 = vadd.xlane.f32.xlu0 %v3038
        %v3040 = vpop.xlane.xlu0 %3039
        %v3041 = vmul.f32 %v3040, %v1976
        %v3042 = vsub.f32 %v3035, %v3041
        %v3043 = vmul.f32 %v3042, %v3042
        %v3044 = vsel %vm1162, %v3043, 0.0
        %3045 = vadd.xlane.f32.xlu0 %v3044
        %v3046 = vpop.xlane.xlu0 %3045
        %v3047 = vmul.f32 %v3046, %v1976
        %v3048 = vadd.f32 %v3047, 1e-05
        %v3049 = vrsqrt.pop %v3048
        %v3050 = vmul.f32 %v3042, %v3049
        %v3052 = vlaneseq
        %v3053 = vshrl.u32 %v3052, 7
        %v3054 = vsub.s32 0, %v3053
        %v3055 = vrot.slane %v3036, %v3054
        %v3057 = vmul.f32 %v3050, %v3055
        %v3059 = vlaneseq
        %v3060 = vshrl.u32 %v3059, 7
        %v3061 = vsub.s32 0, %v3060
        %v3062 = vrot.slane %v3037, %v3061
        %v3064 = vadd.f32 %v3057, %v3062
        %3065 = vst.msk [vmem:[%s1092] sm:$0xff] %vm1162, %v3064
        %3066 = vst.msk [vmem:[%s1099] sm:$0xff] %vm2414, %v2452
        %3067 = vst.msk [vmem:[%s1099 + $0x8] sm:$0xff] %vm2414, %v2454
        %3068 = vst.msk [vmem:[%s1099 + $0x10] sm:$0xff] %vm2414, %v2456
        %3069 = vst.msk [vmem:[%s1099 + $0x18] sm:$0xff] %vm2414, %v2458
        %s3070 = sand.u32 %s743, 1
        %s3071 = scalar_lea.sflag [#allocation4], %s3070
        %s3072 = sand.u32 %s743, 1
        %s3073 = smul.addr %s3072, 8
        %s3074 = scalar_lea.vmem [#allocation14], %s3073
        %s3075 = sand.u32 %s769, 1
        %s3076 = scalar_lea.sflag [#allocation16], %s3075
        %s3077 = sand.u32 %s769, 1
        %s3078 = smul.addr %s3077, 32
        %s3079 = scalar_lea.vmem [#allocation15], %s3078
        // Predicated region
        $region169: #{decoder_layer_forward.1} parent=139 // pred_check
          %p3080 = pneg %p753
        $region170: #{decoder_layer_forward.1} parent=139 // pred_check_branch
          %3082 = sbr.rel (%p3080) target = $region172
        $region171: #{decoder_layer_forward.1} parent=139 // pred_region
          %s3084 = ssub.s32 128, 128
          %3085 = vsyncadd %s3071, %s3084
          %s3086 = smul.addr %s85, 128
          %s3087 = scalar_lea.hbm %s61, %s3086
          %s3089 = sshll.u32 %s3074, 4
          %s3090 = int_to_ptr.vmem [resolvable:$true] %s3089
          %3092 = dma.vmem_to_hbm [thread:$0]  %s3090, 128, %s3087, %s3071
        $region172: #{decoder_layer_forward.1} parent=139 // pred_fallthru
          _
        // Predicated region
        $region173: #{decoder_layer_forward.1} parent=139 // pred_check
          %p3093 = pneg %p779
        $region174: #{decoder_layer_forward.1} parent=139 // pred_check_branch
          %3095 = sbr.rel (%p3093) target = $region176
        $region175: #{decoder_layer_forward.1} parent=139 // pred_region
          %s3097 = ssub.s32 512, 512
          %3098 = vsyncadd %s3076, %s3097
          %s3099 = smul.addr %s85, 4
          %s3100 = smul.addr %s3099, 128
          %s3101 = scalar_lea.hbm %s63, %s3100
          %s3102 = sshll.u32 %s3079, 4
          %s3103 = int_to_ptr.vmem [resolvable:$true] %s3102
          %3108 = dma.vmem_to_hbm [thread:$0]  %s3103, 512, %s3101, %s3076, 128, 128, 8
        $region176: #{decoder_layer_forward.1} parent=139 // pred_fallthru
          _
      $region140: #{decoder_layer_forward.1} parent=5 // pred_fallthru
        _
      %p3109 = scmp.le.s32.totalorder 2, %s80
      // Predicated region
      $region177: #{decoder_layer_forward.1} parent=5 // pred_check
        %p3110 = pneg %p3109
      $region178: #{decoder_layer_forward.1} parent=5 // pred_check_branch
        %3112 = sbr.rel (%p3110) target = $region180
      $region179: #{decoder_layer_forward.1} parent=5 // pred_region
        %s3113 = ssub.s32 %s80, 2
        // Predicated region
        $region181: #{decoder_layer_forward.1} parent=179 // pred_check
          %p3114 = pneg %p759
        $region182: #{decoder_layer_forward.1} parent=179 // pred_check_branch
          %3116 = sbr.rel (%p3114) target = $region184
        $region183: #{decoder_layer_forward.1} parent=179 // pred_region
          %s3117 = sand.u32 %s744, 1
          %s3118 = scalar_lea.sflag [#allocation4], %s3117
          %s3119 = sand.u32 %s744, 1
          %s3120 = smul.addr %s3119, 8
          %s3121 = scalar_lea.vmem [#allocation14], %s3120
          %3122 = dma.done %s3118, 128
        $region184: #{decoder_layer_forward.1} parent=179 // pred_fallthru
          _
        // Predicated region
        $region185: #{decoder_layer_forward.1} parent=179 // pred_check
          %p3123 = pneg %p785
        $region186: #{decoder_layer_forward.1} parent=179 // pred_check_branch
          %3125 = sbr.rel (%p3123) target = $region188
        $region187: #{decoder_layer_forward.1} parent=179 // pred_region
          %s3126 = sand.u32 %s770, 1
          %s3127 = scalar_lea.sflag [#allocation16], %s3126
          %s3128 = sand.u32 %s770, 1
          %s3129 = smul.addr %s3128, 32
          %s3130 = scalar_lea.vmem [#allocation15], %s3129
          %3131 = dma.done %s3127, 512
        $region188: #{decoder_layer_forward.1} parent=179 // pred_fallthru
          _
      $region180: #{decoder_layer_forward.1} parent=5 // pred_fallthru
        _
    $region6: #{decoder_layer_forward.1} parent=1 // loop_footer
      %s84 = sadd.s32 1, %s80
    $region7: #{decoder_layer_forward.1} parent=1 // loop_footer_branch
      %79 = sbr.rel target = $region3
    $region8: #{decoder_layer_forward.1} parent=1 // loop_exit
      _
    %3132 = vsyncpa [#allocation3], 1
    %s3133 = scalar_lea.sflag [#allocation3], 1
    %3134 = vsyncpa %s3133, 1
    %3135 = vsyncpa [#allocation6], 1
    %3136 = vsyncpa [#allocation9], 1
    %3137 = vsyncpa [#allocation12], 1
    %3138 = vsyncpa [#allocation4], 1
    %s3139 = scalar_lea.sflag [#allocation4], 1
    %3140 = vsyncpa %s3139, 1
    %3141 = vsyncpa [#allocation16], 1
    %s3142 = scalar_lea.sflag [#allocation16], 1
    %3143 = vsyncpa %s3142, 1

</llo_original>
